<compile_context>
chip_gen: v6e
topology: v6e:2x2x1
jax: 0.10.0
libtpu: 0.0.40
codegen_flags: <defaults>
</compile_context>

<pallas_src>
import jax
import jax.numpy as jnp
from jax.experimental import pallas as pl
from jax.experimental.pallas import tpu as pltpu


# ----------------------------------------------------------------------------
# Pallas kernel: full encoder step (all DCGRU layers) for one batch block
# ----------------------------------------------------------------------------
def make_encoder_kernel(BB, N, U, din_per_layer, S, K, mxu_dtype):
    """BB=batch block, N=num_nodes, U=rnn_units, S=#supports, K=max_diffusion_step."""
    L = len(din_per_layer)
    f32 = jnp.float32

    def kernel(x_ref, h_ref, sup_ref, *rest):
        # x_ref:   (BB, N, Din0)
        # h_ref:   (L, BB, N, U)
        # sup_ref: (S, N, N)             resident (constant index map)
        # rest:    5 weight refs per layer, then out_ref (L, BB, N, U)
        out_ref = rest[-1]
        w_refs = rest[:-1]

        def diffuse(z):
            # z: (N, feat) f32 -> (N, M*feat) in mxu_dtype, columns ordered (m, f)
            # Chebyshev-style series [z, A z, 2A(Az)-z, ...] per support, same
            # ordering as the PyTorch DCGRU _gconv loop.
            zs = [z]
            for s in range(S):
                a = sup_ref[s]                                        # (N, N)
                z1 = jnp.dot(a, z.astype(mxu_dtype),
                             preferred_element_type=f32)
                zs.append(z1)
                zk1, zk2 = z1, z
                for _ in range(2, K + 1):
                    z2 = 2.0 * jnp.dot(a, zk1.astype(mxu_dtype),
                                       preferred_element_type=f32) - zk2
                    zs.append(z2)
                    zk1, zk2 = z2, zk1
            return jnp.concatenate(zs, axis=1).astype(mxu_dtype)      # (N, M*feat)

        for c in range(BB):
            x_cur = x_ref[c].astype(f32)                              # (N, Din0)
            for l in range(L):
                w_x   = w_refs[5 * l + 0][...]   # (M*din, 3U)  [cols: r|u|cand]
                w_hru = w_refs[5 * l + 1][...]   # (M*U, 2U)
                w_hc  = w_refs[5 * l + 2][...]   # (M*U, U)
                b_ru  = w_refs[5 * l + 3][...]   # (1, 2U) f32
                b_c   = w_refs[5 * l + 4][...]   # (1, U)  f32

                h = h_ref[l, c].astype(f32)                           # (N, U)

                d_x = diffuse(x_cur)                                  # (N, M*din)
                d_h = diffuse(h)                                      # (N, M*U)

                # x contribution to all three gates in one wide matmul.
                gx = jnp.dot(d_x, w_x, preferred_element_type=f32)    # (N, 3U)

                # r / u gates: sigmoid(gconv([x, h])), bias_start = 1.0
                ru = jax.nn.sigmoid(
                    gx[:, :2 * U]
                    + jnp.dot(d_h, w_hru, preferred_element_type=f32)
                    + b_ru)                                           # (N, 2U)
                r = ru[:, :U]
                u = ru[:, U:]

                # candidate: tanh(gconv([x, r*h])), bias_start = 0.0
                d_rh = diffuse(r * h)                                 # (N, M*U)
                cand = jnp.tanh(
                    gx[:, 2 * U:]
                    + jnp.dot(d_rh, w_hc, preferred_element_type=f32)
                    + b_c)                                            # (N, U)

                # GRU state update
                h_new = u * h + (1.0 - u) * cand                      # (N, U) f32
                out_ref[l, c] = h_new.astype(out_ref.dtype)
                x_cur = h_new                                         # next layer input

    return kernel


def dcrnn_encoder_step(inputs, hidden, supports, layer_params, *,
                       num_nodes, input_dim, rnn_units, max_diffusion_step,
                       mxu_dtype=jnp.bfloat16, batch_block=1):
    """inputs: (B, N*Din), hidden: (L, B, N*U) -> (output (B, N*U), new hidden)."""
    B = inputs.shape[0]
    N, U = num_nodes, rnn_units
    L = len(layer_params)
    S, K = supports.shape[0], max_diffusion_step
    din_per_layer = tuple([input_dim] + [rnn_units] * (L - 1))

    batch_block = min(batch_block, B)
    assert B % batch_block == 0, "batch must be divisible by batch_block"

    # Pure metadata reshapes on the host side (no transposes).
    x = inputs.reshape(B, N, input_dim).astype(jnp.float32)
    h = hidden.reshape(L, B, N, U).astype(jnp.float32)

    args = [x, h, supports.astype(mxu_dtype)]
    in_specs = [
        pl.BlockSpec((batch_block, N, input_dim), lambda b: (b, 0, 0)),
        pl.BlockSpec((L, batch_block, N, U), lambda b: (0, b, 0, 0)),
        pl.BlockSpec((S, N, N), lambda b: (0, 0, 0)),      # resident
    ]
    for p in layer_params:
        for name in ("w_x", "w_h_ru", "w_h_c"):
            w = p[name].astype(mxu_dtype)
            args.append(w)
            in_specs.append(pl.BlockSpec(w.shape, lambda b: (0, 0)))   # resident
        for name in ("b_ru", "b_c"):
            bb = p[name].astype(jnp.float32)
            args.append(bb)
            in_specs.append(pl.BlockSpec(bb.shape, lambda b: (0, 0)))  # resident

    kernel = make_encoder_kernel(batch_block, N, U, din_per_layer, S, K, mxu_dtype)
    new_h = pl.pallas_call(
        kernel,
        grid=(B // batch_block,),
        out_shape=jax.ShapeDtypeStruct((L, B, N, U), jnp.float32),
        in_specs=in_specs,
        out_specs=pl.BlockSpec((L, batch_block, N, U), lambda b: (0, b, 0, 0)),
        compiler_params=pltpu.CompilerParams(
            dimension_semantics=("parallel",)),
    )(*args)

    new_h = new_h.reshape(L, B, N * U)
    return new_h[-1], new_h


# ----------------------------------------------------------------------------
# Glue: supports, parameter init, encoder module
# ----------------------------------------------------------------------------
def build_supports(adj, filter_type="dual_random_walk"):
    # torch.sparse supports are materialized as dense (N, N) matrices here.
    def random_walk(a):
        d = a.sum(axis=1)
        d_inv = jnp.where(d > 0, 1.0 / d, 0.0)
        return d_inv[:, None] * a                      # D^-1 A

    n = adj.shape[0]
    if filter_type == "random_walk":
        sups = [random_walk(adj).T]
    elif filter_type == "dual_random_walk":
        sups = [random_walk(adj).T, random_walk(adj.T).T]
    else:  # "laplacian": scaled Laplacian, lambda_max ~= 2
        d = adj.sum(axis=1)
        d_inv_sqrt = jnp.where(d > 0, d ** -0.5, 0.0)
        lap = jnp.eye(n) - d_inv_sqrt[:, None] * adj * d_inv_sqrt[None, :]
        sups = [lap - jnp.eye(n)]
    return jnp.stack(sups).astype(jnp.float32)


def init_layer_params(key, din, U, M):
    # Split gconv weights: x-block and h-block, rows ordered (m, f) / (m, u).
    # The x-block packs the r|u and candidate columns side-by-side so d_x is
    # contracted once with a single wide (3U-lane) matmul in the kernel.
    # xavier-normal std of the (conceptual) fused matrix; biases 1.0 for r/u,
    # 0.0 for the candidate (matching bias_start in the PyTorch DCGRU cell).
    ks = jax.random.split(key, 4)
    fan_in = (din + U) * M
    std_ru = (2.0 / (fan_in + 2 * U)) ** 0.5
    std_c = (2.0 / (fan_in + U)) ** 0.5
    w_x_ru = std_ru * jax.random.normal(ks[0], (M * din, 2 * U), jnp.float32)
    w_x_c = std_c * jax.random.normal(ks[1], (M * din, U), jnp.float32)
    return {
        "w_x": jnp.concatenate([w_x_ru, w_x_c], axis=1),        # (M*din, 3U)
        "w_h_ru": std_ru * jax.random.normal(ks[2], (M * U, 2 * U), jnp.float32),
        "w_h_c": std_c * jax.random.normal(ks[3], (M * U, U), jnp.float32),
        "b_ru": jnp.full((1, 2 * U), 1.0, jnp.float32),
        "b_c": jnp.zeros((1, U), jnp.float32),
    }


class EncoderModelPallas:
    """JAX/Pallas equivalent of DCRNN EncoderModel.forward (single time step)."""

    def __init__(self, adj, *, input_dim, rnn_units, num_rnn_layers,
                 max_diffusion_step, filter_type="dual_random_walk",
                 key=jax.random.PRNGKey(0)):
        self.num_nodes = adj.shape[0]
        self.input_dim = input_dim
        self.rnn_units = rnn_units
        self.num_rnn_layers = num_rnn_layers
        self.max_diffusion_step = max_diffusion_step
        self.hidden_state_size = self.num_nodes * rnn_units
        self.supports = build_supports(adj, filter_type)
        M = self.supports.shape[0] * max_diffusion_step + 1

        layer_keys = jax.random.split(key, num_rnn_layers)
        self.params = []
        for layer in range(num_rnn_layers):
            din = input_dim if layer == 0 else rnn_units
            self.params.append(init_layer_params(layer_keys[layer], din, rnn_units, M))

    def __call__(self, inputs, hidden_state=None, *,
                 mxu_dtype=jnp.bfloat16, batch_block=1):
        B = inputs.shape[0]
        if hidden_state is None:
            hidden_state = jnp.zeros(
                (self.num_rnn_layers, B, self.hidden_state_size), jnp.float32)
        return dcrnn_encoder_step(
            inputs, hidden_state, self.supports, self.params,
            num_nodes=self.num_nodes, input_dim=self.input_dim,
            rnn_units=self.rnn_units, max_diffusion_step=self.max_diffusion_step,
            mxu_dtype=mxu_dtype, batch_block=batch_block)


# ----------------------------------------------------------------------------
# Pure-JAX reference (same math, natural (B, N, feat) layout) for self-check
# ----------------------------------------------------------------------------
def _reference_forward(inputs, hidden, supports, layer_params, *,
                       num_nodes, input_dim, rnn_units, max_diffusion_step):
    B = inputs.shape[0]
    N, U = num_nodes, rnn_units
    L = len(layer_params)
    S, K = supports.shape[0], max_diffusion_step
    hp = jax.lax.Precision.HIGHEST

    def diffuse(z):                           # z: (B, N, feat)
        zs = [z]
        for s in range(S):
            a = supports[s]
            z1 = jnp.einsum('ij,bjf->bif', a, z, precision=hp)
            zs.append(z1)
            zk1, zk2 = z1, z
            for _ in range(2, K + 1):
                z2 = 2.0 * jnp.einsum('ij,bjf->bif', a, zk1, precision=hp) - zk2
                zs.append(z2)
                zk1, zk2 = z2, zk1
        return jnp.concatenate(zs, axis=-1)   # (B, N, M*feat), cols (m, f)

    x_cur = inputs.reshape(B, N, input_dim)
    h_all = hidden.reshape(L, B, N, U)
    outs = []
    for l, p in enumerate(layer_params):
        h = h_all[l]
        d_x = diffuse(x_cur)
        d_h = diffuse(h)
        gx = jnp.matmul(d_x, p["w_x"], precision=hp)                  # (B, N, 3U)
        ru = jax.nn.sigmoid(
            gx[..., :2 * U] + jnp.matmul(d_h, p["w_h_ru"], precision=hp)
            + p["b_ru"])
        r, u = ru[..., :U], ru[..., U:]
        d_rh = diffuse(r * h)
        c = jnp.tanh(
            gx[..., 2 * U:] + jnp.matmul(d_rh, p["w_h_c"], precision=hp)
            + p["b_c"])
        nh = u * h + (1.0 - u) * c
        outs.append(nh.reshape(B, N * U))
        x_cur = nh
    return outs[-1], jnp.stack(outs)


# ----------------------------------------------------------------------------
if __name__ == "__main__":
    key = jax.random.PRNGKey(0)
    B, N, Din, U, L, K = 2, 16, 8, 32, 2, 2
    k_adj, k_inp, k_hid, k_par = jax.random.split(key, 4)

    adj = jax.random.uniform(k_adj, (N, N), jnp.float32)
    adj = 0.5 * (adj + adj.T) + jnp.eye(N)        # symmetric adjacency w/ self-loops

    model = EncoderModelPallas(
        adj, input_dim=Din, rnn_units=U, num_rnn_layers=L,
        max_diffusion_step=K, filter_type="dual_random_walk", key=k_par)

    inputs = jax.random.normal(k_inp, (B, N * Din), jnp.float32)
    hidden0 = 0.5 * jax.random.normal(k_hid, (L, B, N * U), jnp.float32)

    # Default (zero) hidden state path, bf16 MXU inputs.
    out0, hid0 = model(inputs, hidden_state=None)
    jax.block_until_ready((out0, hid0))
    assert out0.shape == (B, N * U)
    assert hid0.shape == (L, B, N * U)
    assert bool(jnp.all(jnp.isfinite(out0))) and bool(jnp.all(jnp.isfinite(hid0)))

    # Pure-JAX reference.
    ref_out, ref_hid = _reference_forward(
        inputs, hidden0, model.supports, model.params,
        num_nodes=N, input_dim=Din, rnn_units=U, max_diffusion_step=K)

    # Tight check: f32 MXU inputs.
    out_f32, hid_f32 = model(inputs, hidden_state=hidden0, mxu_dtype=jnp.float32)
    jax.block_until_ready((out_f32, hid_f32))
    assert bool(jnp.max(jnp.abs(out_f32 - ref_out)) < 5e-4)
    assert bool(jnp.max(jnp.abs(hid_f32 - ref_hid)) < 5e-4)

    # Fast path check: bf16 MXU inputs with f32 accumulation (looser tolerance).
    out_bf, hid_bf = model(inputs, hidden_state=hidden0, mxu_dtype=jnp.bfloat16)
    jax.block_until_ready((out_bf, hid_bf))
    assert bool(jnp.max(jnp.abs(out_bf - ref_out)) < 5e-2)
    assert bool(jnp.max(jnp.abs(hid_bf - ref_hid)) < 5e-2)

    print("KERNEL_OK")
</pallas_src>

<mosaic_0001>
module attributes {stable_mosaic.version = 11 : i64} {
  func.func @kernel(%arg0: i32, %arg1: memref<1x16x8xf32, #tpu.memory_space<vmem>>, %arg2: memref<2x1x16x32xf32, #tpu.memory_space<vmem>>, %arg3: memref<2x16x16xbf16, #tpu.memory_space<vmem>>, %arg4: memref<40x96xbf16, #tpu.memory_space<vmem>>, %arg5: memref<160x64xbf16, #tpu.memory_space<vmem>>, %arg6: memref<160x32xbf16, #tpu.memory_space<vmem>>, %arg7: memref<1x64xf32, #tpu.memory_space<vmem>>, %arg8: memref<1x32xf32, #tpu.memory_space<vmem>>, %arg9: memref<160x96xbf16, #tpu.memory_space<vmem>>, %arg10: memref<160x64xbf16, #tpu.memory_space<vmem>>, %arg11: memref<160x32xbf16, #tpu.memory_space<vmem>>, %arg12: memref<1x64xf32, #tpu.memory_space<vmem>>, %arg13: memref<1x32xf32, #tpu.memory_space<vmem>>, %arg14: memref<2x1x16x32xf32, #tpu.memory_space<vmem>>) attributes {dimension_semantics = [#tpu.dimension_semantics<parallel>], iteration_bounds = array<i64: 2>, scalar_prefetch = 0 : i64, scratch_operands = 0 : i64, tpu.core_type = #tpu.core_type<tc>, window_params = [{transform_indices = @transform_0, window_bounds = array<i64: 1, 16, 8>}, {transform_indices = @transform_1, window_bounds = array<i64: 2, 1, 16, 32>}, {pipeline_mode = #tpu.pipeline_mode<synchronous>, transform_indices = @transform_2, window_bounds = array<i64: 2, 16, 16>}, {pipeline_mode = #tpu.pipeline_mode<synchronous>, transform_indices = @transform_3, window_bounds = array<i64: 40, 96>}, {pipeline_mode = #tpu.pipeline_mode<synchronous>, transform_indices = @transform_4, window_bounds = array<i64: 160, 64>}, {pipeline_mode = #tpu.pipeline_mode<synchronous>, transform_indices = @transform_5, window_bounds = array<i64: 160, 32>}, {pipeline_mode = #tpu.pipeline_mode<synchronous>, transform_indices = @transform_6, window_bounds = array<i64: 1, 64>}, {pipeline_mode = #tpu.pipeline_mode<synchronous>, transform_indices = @transform_7, window_bounds = array<i64: 1, 32>}, {pipeline_mode = #tpu.pipeline_mode<synchronous>, transform_indices = @transform_8, window_bounds = array<i64: 160, 96>}, {pipeline_mode = #tpu.pipeline_mode<synchronous>, transform_indices = @transform_9, window_bounds = array<i64: 160, 64>}, {pipeline_mode = #tpu.pipeline_mode<synchronous>, transform_indices = @transform_10, window_bounds = array<i64: 160, 32>}, {pipeline_mode = #tpu.pipeline_mode<synchronous>, transform_indices = @transform_11, window_bounds = array<i64: 1, 64>}, {pipeline_mode = #tpu.pipeline_mode<synchronous>, transform_indices = @transform_12, window_bounds = array<i64: 1, 32>}, {transform_indices = @transform_13, window_bounds = array<i64: 2, 1, 16, 32>}]} {
    %c0 = arith.constant 0 : index
    %c0_0 = arith.constant 0 : index
    %c0_1 = arith.constant 0 : index
    %0 = vector.load %arg1[%c0, %c0_0, %c0_1] : memref<1x16x8xf32, #tpu.memory_space<vmem>>, vector<1x16x8xf32>
    %1 = vector.shape_cast %0 : vector<1x16x8xf32> to vector<16x8xf32>
    %c0_2 = arith.constant 0 : index
    %c0_3 = arith.constant 0 : index
    %2 = vector.load %arg4[%c0_2, %c0_3] : memref<40x96xbf16, #tpu.memory_space<vmem>>, vector<40x96xbf16>
    %c0_4 = arith.constant 0 : index
    %c0_5 = arith.constant 0 : index
    %3 = vector.load %arg5[%c0_4, %c0_5] : memref<160x64xbf16, #tpu.memory_space<vmem>>, vector<160x64xbf16>
    %c0_6 = arith.constant 0 : index
    %c0_7 = arith.constant 0 : index
    %4 = vector.load %arg6[%c0_6, %c0_7] : memref<160x32xbf16, #tpu.memory_space<vmem>>, vector<160x32xbf16>
    %c0_8 = arith.constant 0 : index
    %c0_9 = arith.constant 0 : index
    %5 = vector.load %arg7[%c0_8, %c0_9] : memref<1x64xf32, #tpu.memory_space<vmem>>, vector<1x64xf32>
    %c0_10 = arith.constant 0 : index
    %c0_11 = arith.constant 0 : index
    %6 = vector.load %arg8[%c0_10, %c0_11] : memref<1x32xf32, #tpu.memory_space<vmem>>, vector<1x32xf32>
    %c0_12 = arith.constant 0 : index
    %c0_13 = arith.constant 0 : index
    %c0_14 = arith.constant 0 : index
    %c0_15 = arith.constant 0 : index
    %7 = vector.load %arg2[%c0_12, %c0_13, %c0_14, %c0_15] : memref<2x1x16x32xf32, #tpu.memory_space<vmem>>, vector<1x1x16x32xf32>
    %8 = vector.shape_cast %7 : vector<1x1x16x32xf32> to vector<16x32xf32>
    %c0_16 = arith.constant 0 : index
    %c0_17 = arith.constant 0 : index
    %c0_18 = arith.constant 0 : index
    %9 = vector.load %arg3[%c0_16, %c0_17, %c0_18] : memref<2x16x16xbf16, #tpu.memory_space<vmem>>, vector<1x16x16xbf16>
    %10 = vector.shape_cast %9 : vector<1x16x16xbf16> to vector<16x16xbf16>
    %11 = arith.truncf %1 : vector<16x8xf32> to vector<16x8xbf16>
    %cst = arith.constant dense<0.000000e+00> : vector<16x8xf32>
    %12 = tpu.matmul %10, %11, %cst {dimension_numbers = #tpu.dot_dimension_numbers<[1], [0], [0], [1], [0, 0, 1, 1], [], []>} : vector<16x16xbf16>, vector<16x8xbf16>, vector<16x8xf32> -> vector<16x8xf32>
    %13 = arith.truncf %12 : vector<16x8xf32> to vector<16x8xbf16>
    %cst_19 = arith.constant dense<0.000000e+00> : vector<16x8xf32>
    %14 = tpu.matmul %10, %13, %cst_19 {dimension_numbers = #tpu.dot_dimension_numbers<[1], [0], [0], [1], [0, 0, 1, 1], [], []>} : vector<16x16xbf16>, vector<16x8xbf16>, vector<16x8xf32> -> vector<16x8xf32>
    %cst_20 = arith.constant 2.000000e+00 : f32
    %15 = vector.broadcast %cst_20 : f32 to vector<16x8xf32>
    %16 = arith.mulf %15, %14 : vector<16x8xf32>
    %17 = arith.subf %16, %1 : vector<16x8xf32>
    %c1 = arith.constant 1 : index
    %c0_21 = arith.constant 0 : index
    %c0_22 = arith.constant 0 : index
    %18 = vector.load %arg3[%c1, %c0_21, %c0_22] : memref<2x16x16xbf16, #tpu.memory_space<vmem>>, vector<1x16x16xbf16>
    %19 = vector.shape_cast %18 : vector<1x16x16xbf16> to vector<16x16xbf16>
    %20 = arith.truncf %1 : vector<16x8xf32> to vector<16x8xbf16>
    %cst_23 = arith.constant dense<0.000000e+00> : vector<16x8xf32>
    %21 = tpu.matmul %19, %20, %cst_23 {dimension_numbers = #tpu.dot_dimension_numbers<[1], [0], [0], [1], [0, 0, 1, 1], [], []>} : vector<16x16xbf16>, vector<16x8xbf16>, vector<16x8xf32> -> vector<16x8xf32>
    %22 = arith.truncf %21 : vector<16x8xf32> to vector<16x8xbf16>
    %cst_24 = arith.constant dense<0.000000e+00> : vector<16x8xf32>
    %23 = tpu.matmul %19, %22, %cst_24 {dimension_numbers = #tpu.dot_dimension_numbers<[1], [0], [0], [1], [0, 0, 1, 1], [], []>} : vector<16x16xbf16>, vector<16x8xbf16>, vector<16x8xf32> -> vector<16x8xf32>
    %cst_25 = arith.constant 2.000000e+00 : f32
    %24 = vector.broadcast %cst_25 : f32 to vector<16x8xf32>
    %25 = arith.mulf %24, %23 : vector<16x8xf32>
    %26 = arith.subf %25, %1 : vector<16x8xf32>
    %27 = tpu.concatenate %1, %12, %17, %21, %26 in 1 : vector<16x8xf32>, vector<16x8xf32>, vector<16x8xf32>, vector<16x8xf32>, vector<16x8xf32> -> vector<16x40xf32>
    %28 = arith.truncf %27 : vector<16x40xf32> to vector<16x40xbf16>
    %c0_26 = arith.constant 0 : index
    %c0_27 = arith.constant 0 : index
    %c0_28 = arith.constant 0 : index
    %29 = vector.load %arg3[%c0_26, %c0_27, %c0_28] : memref<2x16x16xbf16, #tpu.memory_space<vmem>>, vector<1x16x16xbf16>
    %30 = vector.shape_cast %29 : vector<1x16x16xbf16> to vector<16x16xbf16>
    %31 = arith.truncf %8 : vector<16x32xf32> to vector<16x32xbf16>
    %cst_29 = arith.constant dense<0.000000e+00> : vector<16x32xf32>
    %32 = tpu.matmul %30, %31, %cst_29 {dimension_numbers = #tpu.dot_dimension_numbers<[1], [0], [0], [1], [0, 0, 1, 1], [], []>} : vector<16x16xbf16>, vector<16x32xbf16>, vector<16x32xf32> -> vector<16x32xf32>
    %33 = arith.truncf %32 : vector<16x32xf32> to vector<16x32xbf16>
    %cst_30 = arith.constant dense<0.000000e+00> : vector<16x32xf32>
    %34 = tpu.matmul %30, %33, %cst_30 {dimension_numbers = #tpu.dot_dimension_numbers<[1], [0], [0], [1], [0, 0, 1, 1], [], []>} : vector<16x16xbf16>, vector<16x32xbf16>, vector<16x32xf32> -> vector<16x32xf32>
    %cst_31 = arith.constant 2.000000e+00 : f32
    %35 = vector.broadcast %cst_31 : f32 to vector<16x32xf32>
    %36 = arith.mulf %35, %34 : vector<16x32xf32>
    %37 = arith.subf %36, %8 : vector<16x32xf32>
    %c1_32 = arith.constant 1 : index
    %c0_33 = arith.constant 0 : index
    %c0_34 = arith.constant 0 : index
    %38 = vector.load %arg3[%c1_32, %c0_33, %c0_34] : memref<2x16x16xbf16, #tpu.memory_space<vmem>>, vector<1x16x16xbf16>
    %39 = vector.shape_cast %38 : vector<1x16x16xbf16> to vector<16x16xbf16>
    %40 = arith.truncf %8 : vector<16x32xf32> to vector<16x32xbf16>
    %cst_35 = arith.constant dense<0.000000e+00> : vector<16x32xf32>
    %41 = tpu.matmul %39, %40, %cst_35 {dimension_numbers = #tpu.dot_dimension_numbers<[1], [0], [0], [1], [0, 0, 1, 1], [], []>} : vector<16x16xbf16>, vector<16x32xbf16>, vector<16x32xf32> -> vector<16x32xf32>
    %42 = arith.truncf %41 : vector<16x32xf32> to vector<16x32xbf16>
    %cst_36 = arith.constant dense<0.000000e+00> : vector<16x32xf32>
    %43 = tpu.matmul %39, %42, %cst_36 {dimension_numbers = #tpu.dot_dimension_numbers<[1], [0], [0], [1], [0, 0, 1, 1], [], []>} : vector<16x16xbf16>, vector<16x32xbf16>, vector<16x32xf32> -> vector<16x32xf32>
    %cst_37 = arith.constant 2.000000e+00 : f32
    %44 = vector.broadcast %cst_37 : f32 to vector<16x32xf32>
    %45 = arith.mulf %44, %43 : vector<16x32xf32>
    %46 = arith.subf %45, %8 : vector<16x32xf32>
    %47 = tpu.concatenate %8, %32, %37, %41, %46 in 1 : vector<16x32xf32>, vector<16x32xf32>, vector<16x32xf32>, vector<16x32xf32>, vector<16x32xf32> -> vector<16x160xf32>
    %48 = arith.truncf %47 : vector<16x160xf32> to vector<16x160xbf16>
    %cst_38 = arith.constant dense<0.000000e+00> : vector<16x96xf32>
    %49 = tpu.matmul %28, %2, %cst_38 {dimension_numbers = #tpu.dot_dimension_numbers<[1], [0], [0], [1], [0, 0, 1, 1], [], []>} : vector<16x40xbf16>, vector<40x96xbf16>, vector<16x96xf32> -> vector<16x96xf32>
    %50 = vector.extract_strided_slice %49 {offsets = [0, 0], sizes = [16, 64], strides = [1, 1]} : vector<16x96xf32> to vector<16x64xf32>
    %cst_39 = arith.constant dense<0.000000e+00> : vector<16x64xf32>
    %51 = tpu.matmul %48, %3, %cst_39 {dimension_numbers = #tpu.dot_dimension_numbers<[1], [0], [0], [1], [0, 0, 1, 1], [], []>} : vector<16x160xbf16>, vector<160x64xbf16>, vector<16x64xf32> -> vector<16x64xf32>
    %52 = arith.addf %50, %51 : vector<16x64xf32>
    %53 = vector.broadcast %5 : vector<1x64xf32> to vector<16x64xf32>
    %54 = arith.addf %52, %53 : vector<16x64xf32>
    %55 = arith.negf %54 : vector<16x64xf32>
    %56 = math.exp %55 : vector<16x64xf32>
    %cst_40 = arith.constant 1.000000e+00 : f32
    %57 = vector.broadcast %cst_40 : f32 to vector<16x64xf32>
    %58 = arith.addf %57, %56 : vector<16x64xf32>
    %59 = arith.divf %57, %58 : vector<16x64xf32>
    %60 = vector.extract_strided_slice %59 {offsets = [0, 0], sizes = [16, 32], strides = [1, 1]} : vector<16x64xf32> to vector<16x32xf32>
    %61 = vector.extract_strided_slice %59 {offsets = [0, 32], sizes = [16, 32], strides = [1, 1]} : vector<16x64xf32> to vector<16x32xf32>
    %62 = arith.mulf %60, %8 : vector<16x32xf32>
    %c0_41 = arith.constant 0 : index
    %c0_42 = arith.constant 0 : index
    %c0_43 = arith.constant 0 : index
    %63 = vector.load %arg3[%c0_41, %c0_42, %c0_43] : memref<2x16x16xbf16, #tpu.memory_space<vmem>>, vector<1x16x16xbf16>
    %64 = vector.shape_cast %63 : vector<1x16x16xbf16> to vector<16x16xbf16>
    %65 = arith.truncf %62 : vector<16x32xf32> to vector<16x32xbf16>
    %cst_44 = arith.constant dense<0.000000e+00> : vector<16x32xf32>
    %66 = tpu.matmul %64, %65, %cst_44 {dimension_numbers = #tpu.dot_dimension_numbers<[1], [0], [0], [1], [0, 0, 1, 1], [], []>} : vector<16x16xbf16>, vector<16x32xbf16>, vector<16x32xf32> -> vector<16x32xf32>
    %67 = arith.truncf %66 : vector<16x32xf32> to vector<16x32xbf16>
    %cst_45 = arith.constant dense<0.000000e+00> : vector<16x32xf32>
    %68 = tpu.matmul %64, %67, %cst_45 {dimension_numbers = #tpu.dot_dimension_numbers<[1], [0], [0], [1], [0, 0, 1, 1], [], []>} : vector<16x16xbf16>, vector<16x32xbf16>, vector<16x32xf32> -> vector<16x32xf32>
    %cst_46 = arith.constant 2.000000e+00 : f32
    %69 = vector.broadcast %cst_46 : f32 to vector<16x32xf32>
    %70 = arith.mulf %69, %68 : vector<16x32xf32>
    %71 = arith.subf %70, %62 : vector<16x32xf32>
    %c1_47 = arith.constant 1 : index
    %c0_48 = arith.constant 0 : index
    %c0_49 = arith.constant 0 : index
    %72 = vector.load %arg3[%c1_47, %c0_48, %c0_49] : memref<2x16x16xbf16, #tpu.memory_space<vmem>>, vector<1x16x16xbf16>
    %73 = vector.shape_cast %72 : vector<1x16x16xbf16> to vector<16x16xbf16>
    %74 = arith.truncf %62 : vector<16x32xf32> to vector<16x32xbf16>
    %cst_50 = arith.constant dense<0.000000e+00> : vector<16x32xf32>
    %75 = tpu.matmul %73, %74, %cst_50 {dimension_numbers = #tpu.dot_dimension_numbers<[1], [0], [0], [1], [0, 0, 1, 1], [], []>} : vector<16x16xbf16>, vector<16x32xbf16>, vector<16x32xf32> -> vector<16x32xf32>
    %76 = arith.truncf %75 : vector<16x32xf32> to vector<16x32xbf16>
    %cst_51 = arith.constant dense<0.000000e+00> : vector<16x32xf32>
    %77 = tpu.matmul %73, %76, %cst_51 {dimension_numbers = #tpu.dot_dimension_numbers<[1], [0], [0], [1], [0, 0, 1, 1], [], []>} : vector<16x16xbf16>, vector<16x32xbf16>, vector<16x32xf32> -> vector<16x32xf32>
    %cst_52 = arith.constant 2.000000e+00 : f32
    %78 = vector.broadcast %cst_52 : f32 to vector<16x32xf32>
    %79 = arith.mulf %78, %77 : vector<16x32xf32>
    %80 = arith.subf %79, %62 : vector<16x32xf32>
    %81 = tpu.concatenate %62, %66, %71, %75, %80 in 1 : vector<16x32xf32>, vector<16x32xf32>, vector<16x32xf32>, vector<16x32xf32>, vector<16x32xf32> -> vector<16x160xf32>
    %82 = arith.truncf %81 : vector<16x160xf32> to vector<16x160xbf16>
    %83 = vector.extract_strided_slice %49 {offsets = [0, 64], sizes = [16, 32], strides = [1, 1]} : vector<16x96xf32> to vector<16x32xf32>
    %cst_53 = arith.constant dense<0.000000e+00> : vector<16x32xf32>
    %84 = tpu.matmul %82, %4, %cst_53 {dimension_numbers = #tpu.dot_dimension_numbers<[1], [0], [0], [1], [0, 0, 1, 1], [], []>} : vector<16x160xbf16>, vector<160x32xbf16>, vector<16x32xf32> -> vector<16x32xf32>
    %85 = arith.addf %83, %84 : vector<16x32xf32>
    %86 = vector.broadcast %6 : vector<1x32xf32> to vector<16x32xf32>
    %87 = arith.addf %85, %86 : vector<16x32xf32>
    %88 = math.tanh %87 : vector<16x32xf32>
    %89 = arith.mulf %61, %8 : vector<16x32xf32>
    %cst_54 = arith.constant 1.000000e+00 : f32
    %90 = vector.broadcast %cst_54 : f32 to vector<16x32xf32>
    %91 = arith.subf %90, %61 : vector<16x32xf32>
    %92 = arith.mulf %91, %88 : vector<16x32xf32>
    %93 = arith.addf %89, %92 : vector<16x32xf32>
    %c0_55 = arith.constant 0 : index
    %c0_56 = arith.constant 0 : index
    %c0_57 = arith.constant 0 : index
    %c0_58 = arith.constant 0 : index
    %94 = vector.load %arg14[%c0_55, %c0_56, %c0_57, %c0_58] : memref<2x1x16x32xf32, #tpu.memory_space<vmem>>, vector<1x1x16x32xf32>
    %95 = vector.shape_cast %94 : vector<1x1x16x32xf32> to vector<16x32xf32>
    %96 = vector.shape_cast %93 : vector<16x32xf32> to vector<1x1x16x32xf32>
    tpu.vector_store %arg14[%c0_55, %c0_56, %c0_57, %c0_58], %96 {strides = array<i32>} : memref<2x1x16x32xf32, #tpu.memory_space<vmem>>, vector<1x1x16x32xf32>,
    %c0_59 = arith.constant 0 : index
    %c0_60 = arith.constant 0 : index
    %97 = vector.load %arg9[%c0_59, %c0_60] : memref<160x96xbf16, #tpu.memory_space<vmem>>, vector<160x96xbf16>
    %c0_61 = arith.constant 0 : index
    %c0_62 = arith.constant 0 : index
    %98 = vector.load %arg10[%c0_61, %c0_62] : memref<160x64xbf16, #tpu.memory_space<vmem>>, vector<160x64xbf16>
    %c0_63 = arith.constant 0 : index
    %c0_64 = arith.constant 0 : index
    %99 = vector.load %arg11[%c0_63, %c0_64] : memref<160x32xbf16, #tpu.memory_space<vmem>>, vector<160x32xbf16>
    %c0_65 = arith.constant 0 : index
    %c0_66 = arith.constant 0 : index
    %100 = vector.load %arg12[%c0_65, %c0_66] : memref<1x64xf32, #tpu.memory_space<vmem>>, vector<1x64xf32>
    %c0_67 = arith.constant 0 : index
    %c0_68 = arith.constant 0 : index
    %101 = vector.load %arg13[%c0_67, %c0_68] : memref<1x32xf32, #tpu.memory_space<vmem>>, vector<1x32xf32>
    %c1_69 = arith.constant 1 : index
    %c0_70 = arith.constant 0 : index
    %c0_71 = arith.constant 0 : index
    %c0_72 = arith.constant 0 : index
    %102 = vector.load %arg2[%c1_69, %c0_70, %c0_71, %c0_72] : memref<2x1x16x32xf32, #tpu.memory_space<vmem>>, vector<1x1x16x32xf32>
    %103 = vector.shape_cast %102 : vector<1x1x16x32xf32> to vector<16x32xf32>
    %c0_73 = arith.constant 0 : index
    %c0_74 = arith.constant 0 : index
    %c0_75 = arith.constant 0 : index
    %104 = vector.load %arg3[%c0_73, %c0_74, %c0_75] : memref<2x16x16xbf16, #tpu.memory_space<vmem>>, vector<1x16x16xbf16>
    %105 = vector.shape_cast %104 : vector<1x16x16xbf16> to vector<16x16xbf16>
    %106 = arith.truncf %93 : vector<16x32xf32> to vector<16x32xbf16>
    %cst_76 = arith.constant dense<0.000000e+00> : vector<16x32xf32>
    %107 = tpu.matmul %105, %106, %cst_76 {dimension_numbers = #tpu.dot_dimension_numbers<[1], [0], [0], [1], [0, 0, 1, 1], [], []>} : vector<16x16xbf16>, vector<16x32xbf16>, vector<16x32xf32> -> vector<16x32xf32>
    %108 = arith.truncf %107 : vector<16x32xf32> to vector<16x32xbf16>
    %cst_77 = arith.constant dense<0.000000e+00> : vector<16x32xf32>
    %109 = tpu.matmul %105, %108, %cst_77 {dimension_numbers = #tpu.dot_dimension_numbers<[1], [0], [0], [1], [0, 0, 1, 1], [], []>} : vector<16x16xbf16>, vector<16x32xbf16>, vector<16x32xf32> -> vector<16x32xf32>
    %cst_78 = arith.constant 2.000000e+00 : f32
    %110 = vector.broadcast %cst_78 : f32 to vector<16x32xf32>
    %111 = arith.mulf %110, %109 : vector<16x32xf32>
    %112 = arith.subf %111, %93 : vector<16x32xf32>
    %c1_79 = arith.constant 1 : index
    %c0_80 = arith.constant 0 : index
    %c0_81 = arith.constant 0 : index
    %113 = vector.load %arg3[%c1_79, %c0_80, %c0_81] : memref<2x16x16xbf16, #tpu.memory_space<vmem>>, vector<1x16x16xbf16>
    %114 = vector.shape_cast %113 : vector<1x16x16xbf16> to vector<16x16xbf16>
    %115 = arith.truncf %93 : vector<16x32xf32> to vector<16x32xbf16>
    %cst_82 = arith.constant dense<0.000000e+00> : vector<16x32xf32>
    %116 = tpu.matmul %114, %115, %cst_82 {dimension_numbers = #tpu.dot_dimension_numbers<[1], [0], [0], [1], [0, 0, 1, 1], [], []>} : vector<16x16xbf16>, vector<16x32xbf16>, vector<16x32xf32> -> vector<16x32xf32>
    %117 = arith.truncf %116 : vector<16x32xf32> to vector<16x32xbf16>
    %cst_83 = arith.constant dense<0.000000e+00> : vector<16x32xf32>
    %118 = tpu.matmul %114, %117, %cst_83 {dimension_numbers = #tpu.dot_dimension_numbers<[1], [0], [0], [1], [0, 0, 1, 1], [], []>} : vector<16x16xbf16>, vector<16x32xbf16>, vector<16x32xf32> -> vector<16x32xf32>
    %cst_84 = arith.constant 2.000000e+00 : f32
    %119 = vector.broadcast %cst_84 : f32 to vector<16x32xf32>
    %120 = arith.mulf %119, %118 : vector<16x32xf32>
    %121 = arith.subf %120, %93 : vector<16x32xf32>
    %122 = tpu.concatenate %93, %107, %112, %116, %121 in 1 : vector<16x32xf32>, vector<16x32xf32>, vector<16x32xf32>, vector<16x32xf32>, vector<16x32xf32> -> vector<16x160xf32>
    %123 = arith.truncf %122 : vector<16x160xf32> to vector<16x160xbf16>
    %c0_85 = arith.constant 0 : index
    %c0_86 = arith.constant 0 : index
    %c0_87 = arith.constant 0 : index
    %124 = vector.load %arg3[%c0_85, %c0_86, %c0_87] : memref<2x16x16xbf16, #tpu.memory_space<vmem>>, vector<1x16x16xbf16>
    %125 = vector.shape_cast %124 : vector<1x16x16xbf16> to vector<16x16xbf16>
    %126 = arith.truncf %103 : vector<16x32xf32> to vector<16x32xbf16>
    %cst_88 = arith.constant dense<0.000000e+00> : vector<16x32xf32>
    %127 = tpu.matmul %125, %126, %cst_88 {dimension_numbers = #tpu.dot_dimension_numbers<[1], [0], [0], [1], [0, 0, 1, 1], [], []>} : vector<16x16xbf16>, vector<16x32xbf16>, vector<16x32xf32> -> vector<16x32xf32>
    %128 = arith.truncf %127 : vector<16x32xf32> to vector<16x32xbf16>
    %cst_89 = arith.constant dense<0.000000e+00> : vector<16x32xf32>
    %129 = tpu.matmul %125, %128, %cst_89 {dimension_numbers = #tpu.dot_dimension_numbers<[1], [0], [0], [1], [0, 0, 1, 1], [], []>} : vector<16x16xbf16>, vector<16x32xbf16>, vector<16x32xf32> -> vector<16x32xf32>
    %cst_90 = arith.constant 2.000000e+00 : f32
    %130 = vector.broadcast %cst_90 : f32 to vector<16x32xf32>
    %131 = arith.mulf %130, %129 : vector<16x32xf32>
    %132 = arith.subf %131, %103 : vector<16x32xf32>
    %c1_91 = arith.constant 1 : index
    %c0_92 = arith.constant 0 : index
    %c0_93 = arith.constant 0 : index
    %133 = vector.load %arg3[%c1_91, %c0_92, %c0_93] : memref<2x16x16xbf16, #tpu.memory_space<vmem>>, vector<1x16x16xbf16>
    %134 = vector.shape_cast %133 : vector<1x16x16xbf16> to vector<16x16xbf16>
    %135 = arith.truncf %103 : vector<16x32xf32> to vector<16x32xbf16>
    %cst_94 = arith.constant dense<0.000000e+00> : vector<16x32xf32>
    %136 = tpu.matmul %134, %135, %cst_94 {dimension_numbers = #tpu.dot_dimension_numbers<[1], [0], [0], [1], [0, 0, 1, 1], [], []>} : vector<16x16xbf16>, vector<16x32xbf16>, vector<16x32xf32> -> vector<16x32xf32>
    %137 = arith.truncf %136 : vector<16x32xf32> to vector<16x32xbf16>
    %cst_95 = arith.constant dense<0.000000e+00> : vector<16x32xf32>
    %138 = tpu.matmul %134, %137, %cst_95 {dimension_numbers = #tpu.dot_dimension_numbers<[1], [0], [0], [1], [0, 0, 1, 1], [], []>} : vector<16x16xbf16>, vector<16x32xbf16>, vector<16x32xf32> -> vector<16x32xf32>
    %cst_96 = arith.constant 2.000000e+00 : f32
    %139 = vector.broadcast %cst_96 : f32 to vector<16x32xf32>
    %140 = arith.mulf %139, %138 : vector<16x32xf32>
    %141 = arith.subf %140, %103 : vector<16x32xf32>
    %142 = tpu.concatenate %103, %127, %132, %136, %141 in 1 : vector<16x32xf32>, vector<16x32xf32>, vector<16x32xf32>, vector<16x32xf32>, vector<16x32xf32> -> vector<16x160xf32>
    %143 = arith.truncf %142 : vector<16x160xf32> to vector<16x160xbf16>
    %cst_97 = arith.constant dense<0.000000e+00> : vector<16x96xf32>
    %144 = tpu.matmul %123, %97, %cst_97 {dimension_numbers = #tpu.dot_dimension_numbers<[1], [0], [0], [1], [0, 0, 1, 1], [], []>} : vector<16x160xbf16>, vector<160x96xbf16>, vector<16x96xf32> -> vector<16x96xf32>
    %145 = vector.extract_strided_slice %144 {offsets = [0, 0], sizes = [16, 64], strides = [1, 1]} : vector<16x96xf32> to vector<16x64xf32>
    %cst_98 = arith.constant dense<0.000000e+00> : vector<16x64xf32>
    %146 = tpu.matmul %143, %98, %cst_98 {dimension_numbers = #tpu.dot_dimension_numbers<[1], [0], [0], [1], [0, 0, 1, 1], [], []>} : vector<16x160xbf16>, vector<160x64xbf16>, vector<16x64xf32> -> vector<16x64xf32>
    %147 = arith.addf %145, %146 : vector<16x64xf32>
    %148 = vector.broadcast %100 : vector<1x64xf32> to vector<16x64xf32>
    %149 = arith.addf %147, %148 : vector<16x64xf32>
    %150 = arith.negf %149 : vector<16x64xf32>
    %151 = math.exp %150 : vector<16x64xf32>
    %cst_99 = arith.constant 1.000000e+00 : f32
    %152 = vector.broadcast %cst_99 : f32 to vector<16x64xf32>
    %153 = arith.addf %152, %151 : vector<16x64xf32>
    %154 = arith.divf %152, %153 : vector<16x64xf32>
    %155 = vector.extract_strided_slice %154 {offsets = [0, 0], sizes = [16, 32], strides = [1, 1]} : vector<16x64xf32> to vector<16x32xf32>
    %156 = vector.extract_strided_slice %154 {offsets = [0, 32], sizes = [16, 32], strides = [1, 1]} : vector<16x64xf32> to vector<16x32xf32>
    %157 = arith.mulf %155, %103 : vector<16x32xf32>
    %c0_100 = arith.constant 0 : index
    %c0_101 = arith.constant 0 : index
    %c0_102 = arith.constant 0 : index
    %158 = vector.load %arg3[%c0_100, %c0_101, %c0_102] : memref<2x16x16xbf16, #tpu.memory_space<vmem>>, vector<1x16x16xbf16>
    %159 = vector.shape_cast %158 : vector<1x16x16xbf16> to vector<16x16xbf16>
    %160 = arith.truncf %157 : vector<16x32xf32> to vector<16x32xbf16>
    %cst_103 = arith.constant dense<0.000000e+00> : vector<16x32xf32>
    %161 = tpu.matmul %159, %160, %cst_103 {dimension_numbers = #tpu.dot_dimension_numbers<[1], [0], [0], [1], [0, 0, 1, 1], [], []>} : vector<16x16xbf16>, vector<16x32xbf16>, vector<16x32xf32> -> vector<16x32xf32>
    %162 = arith.truncf %161 : vector<16x32xf32> to vector<16x32xbf16>
    %cst_104 = arith.constant dense<0.000000e+00> : vector<16x32xf32>
    %163 = tpu.matmul %159, %162, %cst_104 {dimension_numbers = #tpu.dot_dimension_numbers<[1], [0], [0], [1], [0, 0, 1, 1], [], []>} : vector<16x16xbf16>, vector<16x32xbf16>, vector<16x32xf32> -> vector<16x32xf32>
    %cst_105 = arith.constant 2.000000e+00 : f32
    %164 = vector.broadcast %cst_105 : f32 to vector<16x32xf32>
    %165 = arith.mulf %164, %163 : vector<16x32xf32>
    %166 = arith.subf %165, %157 : vector<16x32xf32>
    %c1_106 = arith.constant 1 : index
    %c0_107 = arith.constant 0 : index
    %c0_108 = arith.constant 0 : index
    %167 = vector.load %arg3[%c1_106, %c0_107, %c0_108] : memref<2x16x16xbf16, #tpu.memory_space<vmem>>, vector<1x16x16xbf16>
    %168 = vector.shape_cast %167 : vector<1x16x16xbf16> to vector<16x16xbf16>
    %169 = arith.truncf %157 : vector<16x32xf32> to vector<16x32xbf16>
    %cst_109 = arith.constant dense<0.000000e+00> : vector<16x32xf32>
    %170 = tpu.matmul %168, %169, %cst_109 {dimension_numbers = #tpu.dot_dimension_numbers<[1], [0], [0], [1], [0, 0, 1, 1], [], []>} : vector<16x16xbf16>, vector<16x32xbf16>, vector<16x32xf32> -> vector<16x32xf32>
    %171 = arith.truncf %170 : vector<16x32xf32> to vector<16x32xbf16>
    %cst_110 = arith.constant dense<0.000000e+00> : vector<16x32xf32>
    %172 = tpu.matmul %168, %171, %cst_110 {dimension_numbers = #tpu.dot_dimension_numbers<[1], [0], [0], [1], [0, 0, 1, 1], [], []>} : vector<16x16xbf16>, vector<16x32xbf16>, vector<16x32xf32> -> vector<16x32xf32>
    %cst_111 = arith.constant 2.000000e+00 : f32
    %173 = vector.broadcast %cst_111 : f32 to vector<16x32xf32>
    %174 = arith.mulf %173, %172 : vector<16x32xf32>
    %175 = arith.subf %174, %157 : vector<16x32xf32>
    %176 = tpu.concatenate %157, %161, %166, %170, %175 in 1 : vector<16x32xf32>, vector<16x32xf32>, vector<16x32xf32>, vector<16x32xf32>, vector<16x32xf32> -> vector<16x160xf32>
    %177 = arith.truncf %176 : vector<16x160xf32> to vector<16x160xbf16>
    %178 = vector.extract_strided_slice %144 {offsets = [0, 64], sizes = [16, 32], strides = [1, 1]} : vector<16x96xf32> to vector<16x32xf32>
    %cst_112 = arith.constant dense<0.000000e+00> : vector<16x32xf32>
    %179 = tpu.matmul %177, %99, %cst_112 {dimension_numbers = #tpu.dot_dimension_numbers<[1], [0], [0], [1], [0, 0, 1, 1], [], []>} : vector<16x160xbf16>, vector<160x32xbf16>, vector<16x32xf32> -> vector<16x32xf32>
    %180 = arith.addf %178, %179 : vector<16x32xf32>
    %181 = vector.broadcast %101 : vector<1x32xf32> to vector<16x32xf32>
    %182 = arith.addf %180, %181 : vector<16x32xf32>
    %183 = math.tanh %182 : vector<16x32xf32>
    %184 = arith.mulf %156, %103 : vector<16x32xf32>
    %cst_113 = arith.constant 1.000000e+00 : f32
    %185 = vector.broadcast %cst_113 : f32 to vector<16x32xf32>
    %186 = arith.subf %185, %156 : vector<16x32xf32>
    %187 = arith.mulf %186, %183 : vector<16x32xf32>
    %188 = arith.addf %184, %187 : vector<16x32xf32>
    %c1_114 = arith.constant 1 : index
    %c0_115 = arith.constant 0 : index
    %c0_116 = arith.constant 0 : index
    %c0_117 = arith.constant 0 : index
    %189 = vector.load %arg14[%c1_114, %c0_115, %c0_116, %c0_117] : memref<2x1x16x32xf32, #tpu.memory_space<vmem>>, vector<1x1x16x32xf32>
    %190 = vector.shape_cast %189 : vector<1x1x16x32xf32> to vector<16x32xf32>
    %191 = vector.shape_cast %188 : vector<16x32xf32> to vector<1x1x16x32xf32>
    tpu.vector_store %arg14[%c1_114, %c0_115, %c0_116, %c0_117], %191 {strides = array<i32>} : memref<2x1x16x32xf32, #tpu.memory_space<vmem>>, vector<1x1x16x32xf32>,
    return
  }
  func.func @transform_0(%arg0: i32) -> (i32, i32, i32) {
    %c0_i32 = arith.constant 0 : i32
    %c0_i32_0 = arith.constant 0 : i32
    %c0_i32_1 = arith.constant 0 : i32
    return %arg0, %c0_i32, %c0_i32_0 : i32, i32, i32
  }
  func.func @transform_1(%arg0: i32) -> (i32, i32, i32, i32) {
    %c0_i32 = arith.constant 0 : i32
    %c0_i32_0 = arith.constant 0 : i32
    %c0_i32_1 = arith.constant 0 : i32
    %c0_i32_2 = arith.constant 0 : i32
    return %c0_i32, %arg0, %c0_i32_0, %c0_i32_1 : i32, i32, i32, i32
  }
  func.func @transform_2(%arg0: i32) -> (i32, i32, i32) {
    %c0_i32 = arith.constant 0 : i32
    %c0_i32_0 = arith.constant 0 : i32
    %c0_i32_1 = arith.constant 0 : i32
    %c0_i32_2 = arith.constant 0 : i32
    return %c0_i32, %c0_i32_0, %c0_i32_1 : i32, i32, i32
  }
  func.func @transform_3(%arg0: i32) -> (i32, i32) {
    %c0_i32 = arith.constant 0 : i32
    %c0_i32_0 = arith.constant 0 : i32
    %c0_i32_1 = arith.constant 0 : i32
    return %c0_i32, %c0_i32_0 : i32, i32
  }
  func.func @transform_4(%arg0: i32) -> (i32, i32) {
    %c0_i32 = arith.constant 0 : i32
    %c0_i32_0 = arith.constant 0 : i32
    %c0_i32_1 = arith.constant 0 : i32
    return %c0_i32, %c0_i32_0 : i32, i32
  }
  func.func @transform_5(%arg0: i32) -> (i32, i32) {
    %c0_i32 = arith.constant 0 : i32
    %c0_i32_0 = arith.constant 0 : i32
    %c0_i32_1 = arith.constant 0 : i32
    return %c0_i32, %c0_i32_0 : i32, i32
  }
  func.func @transform_6(%arg0: i32) -> (i32, i32) {
    %c0_i32 = arith.constant 0 : i32
    %c0_i32_0 = arith.constant 0 : i32
    %c0_i32_1 = arith.constant 0 : i32
    return %c0_i32, %c0_i32_0 : i32, i32
  }
  func.func @transform_7(%arg0: i32) -> (i32, i32) {
    %c0_i32 = arith.constant 0 : i32
    %c0_i32_0 = arith.constant 0 : i32
    %c0_i32_1 = arith.constant 0 : i32
    return %c0_i32, %c0_i32_0 : i32, i32
  }
  func.func @transform_8(%arg0: i32) -> (i32, i32) {
    %c0_i32 = arith.constant 0 : i32
    %c0_i32_0 = arith.constant 0 : i32
    %c0_i32_1 = arith.constant 0 : i32
    return %c0_i32, %c0_i32_0 : i32, i32
  }
  func.func @transform_9(%arg0: i32) -> (i32, i32) {
    %c0_i32 = arith.constant 0 : i32
    %c0_i32_0 = arith.constant 0 : i32
    %c0_i32_1 = arith.constant 0 : i32
    return %c0_i32, %c0_i32_0 : i32, i32
  }
  func.func @transform_10(%arg0: i32) -> (i32, i32) {
    %c0_i32 = arith.constant 0 : i32
    %c0_i32_0 = arith.constant 0 : i32
    %c0_i32_1 = arith.constant 0 : i32
    return %c0_i32, %c0_i32_0 : i32, i32
  }
  func.func @transform_11(%arg0: i32) -> (i32, i32) {
    %c0_i32 = arith.constant 0 : i32
    %c0_i32_0 = arith.constant 0 : i32
    %c0_i32_1 = arith.constant 0 : i32
    return %c0_i32, %c0_i32_0 : i32, i32
  }
  func.func @transform_12(%arg0: i32) -> (i32, i32) {
    %c0_i32 = arith.constant 0 : i32
    %c0_i32_0 = arith.constant 0 : i32
    %c0_i32_1 = arith.constant 0 : i32
    return %c0_i32, %c0_i32_0 : i32, i32
  }
  func.func @transform_13(%arg0: i32) -> (i32, i32, i32, i32) {
    %c0_i32 = arith.constant 0 : i32
    %c0_i32_0 = arith.constant 0 : i32
    %c0_i32_1 = arith.constant 0 : i32
    %c0_i32_2 = arith.constant 0 : i32
    return %c0_i32, %arg0, %c0_i32_0, %c0_i32_1 : i32, i32, i32, i32
  }
}

</mosaic_0001>

<llo_original>
// kernel: tpu_custom_call.1
$region0: #{tpu_custom_call.1}
  #allocation0 [shape = 'u32[]', space=smem, size = 0x4, offset = 0x4, fixed_abs, tag = 'smem constant byte address 0x4 - core index']
  #allocation1 [shape = 'u32[144,128]{1,0:T(1,128)}', space=vmem, size = 0x12000, scoped, tag = 'internal scratch']
  #allocation5 [shape = 's32[]', space=sflag, size = 0x4, offset = 0, fixed_abs, tag = 'sflag constant byte address 0x0 - dummy sync flag']
  %s0 = inlined_call_operand.vmem [shape: f32[2,16,8], index: 0, kind: input, shape index: {}]
  %s1 = inlined_call_operand.vmem [shape: f32[2,2,16,32], index: 1, kind: input, shape index: {}]
  %s2 = inlined_call_operand.vmem [shape: bf16[2,16,16], index: 2, kind: input, shape index: {}]
  %s3 = inlined_call_operand.vmem [shape: bf16[40,96], index: 3, kind: input, shape index: {}]
  %s4 = inlined_call_operand.vmem [shape: bf16[160,64], index: 4, kind: input, shape index: {}]
  %s5 = inlined_call_operand.vmem [shape: bf16[160,32], index: 5, kind: input, shape index: {}]
  %s6 = inlined_call_operand.vmem [shape: f32[1,64], index: 6, kind: input, shape index: {}]
  %s7 = inlined_call_operand.vmem [shape: f32[1,32], index: 7, kind: input, shape index: {}]
  %s8 = inlined_call_operand.vmem [shape: bf16[160,96], index: 8, kind: input, shape index: {}]
  %s9 = inlined_call_operand.vmem [shape: bf16[160,64], index: 9, kind: input, shape index: {}]
  %s10 = inlined_call_operand.vmem [shape: bf16[160,32], index: 10, kind: input, shape index: {}]
  %s11 = inlined_call_operand.vmem [shape: f32[1,64], index: 11, kind: input, shape index: {}]
  %s12 = inlined_call_operand.vmem [shape: f32[1,32], index: 12, kind: input, shape index: {}]
  %s13 = inlined_call_operand.hbm [shape: f32[2,2,16,32], index: 13, kind: output, shape index: {}]
  %s14 = sld [smem:[#allocation0]]
  $region123: #{tpu_custom_call.1} parent=0
    _
  %s16 = ssub.s32 1, %s14
  %s17 = scalar_select 0, %s16, %s14
  $region1: #{tpu_custom_call.1} parent=0
    #allocation2 [shape = 'u8[32768]{0}', space=vmem, size = 0x8000, scoped, tag = 'input window, operand 1']
    #allocation3 [shape = 'u8[32768]{0}', space=vmem, size = 0x8000, scoped, tag = 'output window, operand 0']
    #allocation4 [shape = 's32[2]{0}', space=sflag, size = 0x8, scoped, tag = 'scoped memory for tpu_custom_call.1']
    %18 = vsyncpa [#allocation4], 0
    %s19 = scalar_lea.sflag [#allocation4], 1
    %20 = vsyncpa %s19, 0
    loop: start=0, step=1, limit=4
    $region2: #{tpu_custom_call.1} parent=1 // loop_pre_header
      _
    $region3: #{tpu_custom_call.1} parent=1 // loop_header
      %s22 = sphi 0, %s26
      %p23 = scmp.ge.s32.totalorder %s22, 4
      %s32 = sphi 0, %s34
      %s35 = sphi 0, %s32
      %s36 = sphi 0, %s35
      %s52 = sphi 0, %s36
      %s58 = sphi 0, %s60
      %s61 = sphi 0, %s58
      %s62 = sphi 0, %s61
      %s78 = sphi 0, %s62
      %s82 = sphi 0, %s82
      %s84 = sphi 0, %s82
      %s85 = sphi 0, %s84
      %s99 = sphi 0, %s85
      %s103 = sphi 0, %s103
      %s105 = sphi 0, %s103
      %s106 = sphi 0, %s105
      %s120 = sphi 0, %s106
      %s124 = sphi 0, %s124
      %s126 = sphi 0, %s124
      %s127 = sphi 0, %s126
      %s141 = sphi 0, %s127
      %s145 = sphi 0, %s145
      %s147 = sphi 0, %s145
      %s148 = sphi 0, %s147
      %s162 = sphi 0, %s148
      %s166 = sphi 0, %s166
      %s168 = sphi 0, %s166
      %s169 = sphi 0, %s168
      %s183 = sphi 0, %s169
      %s187 = sphi 0, %s187
      %s189 = sphi 0, %s187
      %s190 = sphi 0, %s189
      %s204 = sphi 0, %s190
      %s208 = sphi 0, %s208
      %s210 = sphi 0, %s208
      %s211 = sphi 0, %s210
      %s225 = sphi 0, %s211
      %s229 = sphi 0, %s229
      %s231 = sphi 0, %s229
      %s232 = sphi 0, %s231
      %s246 = sphi 0, %s232
      %s250 = sphi 0, %s250
      %s252 = sphi 0, %s250
      %s253 = sphi 0, %s252
      %s267 = sphi 0, %s253
      %s271 = sphi 0, %s271
      %s273 = sphi 0, %s271
      %s274 = sphi 0, %s273
      %s288 = sphi 0, %s274
      %s292 = sphi 0, %s292
      %s294 = sphi 0, %s292
      %s295 = sphi 0, %s294
      %s309 = sphi 0, %s295
      %s315 = sphi 0, %s317
      %s318 = sphi 0, %s315
      %s319 = sphi 0, %s318
      %s335 = sphi 0, %s319
    $region4: #{tpu_custom_call.1} parent=1 // loop_header_branch
      %25 = sbr.rel (%p23) target = $region8
    $region5: #{tpu_custom_call.1} parent=1 // loop_body
      %s27 = ssub.s32 %s22, 1
      %s28 = ssub.s32 %s22, 2
      %s29 = sadd.s32 %s22, 1
      %s30 = ssub.s32 %s22, %s29
      %p31 = scmp.eq.s32.totalorder %s30, 0
      %s33 = sadd.s32 %s32, 1
      %s34 = scalar_select %p31, %s32, %s33
      %p37 = pneg %p31
      %p38 = scmp.eq.s32.totalorder %s22, 1
      %p39 = por %p37, %p38
      %p40 = scmp.ne.s32.totalorder %s32, %s35
      %p41 = scmp.eq.s32.totalorder %s22, 0
      %p42 = por %p40, %p41
      %p43 = scmp.ne.s32.totalorder %s32, %s35
      %p44 = scmp.eq.s32.totalorder %s27, 1
      %p45 = por %p43, %p44
      %p46 = scmp.ne.s32.totalorder %s35, %s36
      %p47 = scmp.eq.s32.totalorder %s27, 0
      %p48 = por %p46, %p47
      %p49 = scmp.ne.s32.totalorder %s35, %s36
      %p50 = scmp.eq.s32.totalorder %s28, 1
      %p51 = por %p49, %p50
      %p53 = scmp.ne.s32.totalorder %s36, %s52
      %p54 = scmp.eq.s32.totalorder %s28, 0
      %p55 = por %p53, %p54
      %s56 = ssub.s32 %s22, %s29
      %p57 = scmp.eq.s32.totalorder %s56, 0
      %s59 = sadd.s32 %s58, 1
      %s60 = scalar_select %p57, %s58, %s59
      %p63 = pneg %p57
      %p64 = scmp.eq.s32.totalorder %s22, 1
      %p65 = por %p63, %p64
      %p66 = scmp.ne.s32.totalorder %s58, %s61
      %p67 = scmp.eq.s32.totalorder %s22, 0
      %p68 = por %p66, %p67
      %p69 = scmp.ne.s32.totalorder %s58, %s61
      %p70 = scmp.eq.s32.totalorder %s27, 1
      %p71 = por %p69, %p70
      %p72 = scmp.ne.s32.totalorder %s61, %s62
      %p73 = scmp.eq.s32.totalorder %s27, 0
      %p74 = por %p72, %p73
      %p75 = scmp.ne.s32.totalorder %s61, %s62
      %p76 = scmp.eq.s32.totalorder %s28, 1
      %p77 = por %p75, %p76
      %p79 = scmp.ne.s32.totalorder %s62, %s78
      %p80 = scmp.eq.s32.totalorder %s28, 0
      %p81 = por %p79, %p80
      %s83 = sadd.s32 %s82, 1
      %p86 = scmp.eq.s32.totalorder %s22, 1
      %p87 = scmp.ne.s32.totalorder %s82, %s84
      %p88 = scmp.eq.s32.totalorder %s22, 0
      %p89 = por %p87, %p88
      %p90 = scmp.ne.s32.totalorder %s82, %s84
      %p91 = scmp.eq.s32.totalorder %s27, 1
      %p92 = por %p90, %p91
      %p93 = scmp.ne.s32.totalorder %s84, %s85
      %p94 = scmp.eq.s32.totalorder %s27, 0
      %p95 = por %p93, %p94
      %p96 = scmp.ne.s32.totalorder %s84, %s85
      %p97 = scmp.eq.s32.totalorder %s28, 1
      %p98 = por %p96, %p97
      %p100 = scmp.ne.s32.totalorder %s85, %s99
      %p101 = scmp.eq.s32.totalorder %s28, 0
      %p102 = por %p100, %p101
      %s104 = sadd.s32 %s103, 1
      %p107 = scmp.eq.s32.totalorder %s22, 1
      %p108 = scmp.ne.s32.totalorder %s103, %s105
      %p109 = scmp.eq.s32.totalorder %s22, 0
      %p110 = por %p108, %p109
      %p111 = scmp.ne.s32.totalorder %s103, %s105
      %p112 = scmp.eq.s32.totalorder %s27, 1
      %p113 = por %p111, %p112
      %p114 = scmp.ne.s32.totalorder %s105, %s106
      %p115 = scmp.eq.s32.totalorder %s27, 0
      %p116 = por %p114, %p115
      %p117 = scmp.ne.s32.totalorder %s105, %s106
      %p118 = scmp.eq.s32.totalorder %s28, 1
      %p119 = por %p117, %p118
      %p121 = scmp.ne.s32.totalorder %s106, %s120
      %p122 = scmp.eq.s32.totalorder %s28, 0
      %p123 = por %p121, %p122
      %s125 = sadd.s32 %s124, 1
      %p128 = scmp.eq.s32.totalorder %s22, 1
      %p129 = scmp.ne.s32.totalorder %s124, %s126
      %p130 = scmp.eq.s32.totalorder %s22, 0
      %p131 = por %p129, %p130
      %p132 = scmp.ne.s32.totalorder %s124, %s126
      %p133 = scmp.eq.s32.totalorder %s27, 1
      %p134 = por %p132, %p133
      %p135 = scmp.ne.s32.totalorder %s126, %s127
      %p136 = scmp.eq.s32.totalorder %s27, 0
      %p137 = por %p135, %p136
      %p138 = scmp.ne.s32.totalorder %s126, %s127
      %p139 = scmp.eq.s32.totalorder %s28, 1
      %p140 = por %p138, %p139
      %p142 = scmp.ne.s32.totalorder %s127, %s141
      %p143 = scmp.eq.s32.totalorder %s28, 0
      %p144 = por %p142, %p143
      %s146 = sadd.s32 %s145, 1
      %p149 = scmp.eq.s32.totalorder %s22, 1
      %p150 = scmp.ne.s32.totalorder %s145, %s147
      %p151 = scmp.eq.s32.totalorder %s22, 0
      %p152 = por %p150, %p151
      %p153 = scmp.ne.s32.totalorder %s145, %s147
      %p154 = scmp.eq.s32.totalorder %s27, 1
      %p155 = por %p153, %p154
      %p156 = scmp.ne.s32.totalorder %s147, %s148
      %p157 = scmp.eq.s32.totalorder %s27, 0
      %p158 = por %p156, %p157
      %p159 = scmp.ne.s32.totalorder %s147, %s148
      %p160 = scmp.eq.s32.totalorder %s28, 1
      %p161 = por %p159, %p160
      %p163 = scmp.ne.s32.totalorder %s148, %s162
      %p164 = scmp.eq.s32.totalorder %s28, 0
      %p165 = por %p163, %p164
      %s167 = sadd.s32 %s166, 1
      %p170 = scmp.eq.s32.totalorder %s22, 1
      %p171 = scmp.ne.s32.totalorder %s166, %s168
      %p172 = scmp.eq.s32.totalorder %s22, 0
      %p173 = por %p171, %p172
      %p174 = scmp.ne.s32.totalorder %s166, %s168
      %p175 = scmp.eq.s32.totalorder %s27, 1
      %p176 = por %p174, %p175
      %p177 = scmp.ne.s32.totalorder %s168, %s169
      %p178 = scmp.eq.s32.totalorder %s27, 0
      %p179 = por %p177, %p178
      %p180 = scmp.ne.s32.totalorder %s168, %s169
      %p181 = scmp.eq.s32.totalorder %s28, 1
      %p182 = por %p180, %p181
      %p184 = scmp.ne.s32.totalorder %s169, %s183
      %p185 = scmp.eq.s32.totalorder %s28, 0
      %p186 = por %p184, %p185
      %s188 = sadd.s32 %s187, 1
      %p191 = scmp.eq.s32.totalorder %s22, 1
      %p192 = scmp.ne.s32.totalorder %s187, %s189
      %p193 = scmp.eq.s32.totalorder %s22, 0
      %p194 = por %p192, %p193
      %p195 = scmp.ne.s32.totalorder %s187, %s189
      %p196 = scmp.eq.s32.totalorder %s27, 1
      %p197 = por %p195, %p196
      %p198 = scmp.ne.s32.totalorder %s189, %s190
      %p199 = scmp.eq.s32.totalorder %s27, 0
      %p200 = por %p198, %p199
      %p201 = scmp.ne.s32.totalorder %s189, %s190
      %p202 = scmp.eq.s32.totalorder %s28, 1
      %p203 = por %p201, %p202
      %p205 = scmp.ne.s32.totalorder %s190, %s204
      %p206 = scmp.eq.s32.totalorder %s28, 0
      %p207 = por %p205, %p206
      %s209 = sadd.s32 %s208, 1
      %p212 = scmp.eq.s32.totalorder %s22, 1
      %p213 = scmp.ne.s32.totalorder %s208, %s210
      %p214 = scmp.eq.s32.totalorder %s22, 0
      %p215 = por %p213, %p214
      %p216 = scmp.ne.s32.totalorder %s208, %s210
      %p217 = scmp.eq.s32.totalorder %s27, 1
      %p218 = por %p216, %p217
      %p219 = scmp.ne.s32.totalorder %s210, %s211
      %p220 = scmp.eq.s32.totalorder %s27, 0
      %p221 = por %p219, %p220
      %p222 = scmp.ne.s32.totalorder %s210, %s211
      %p223 = scmp.eq.s32.totalorder %s28, 1
      %p224 = por %p222, %p223
      %p226 = scmp.ne.s32.totalorder %s211, %s225
      %p227 = scmp.eq.s32.totalorder %s28, 0
      %p228 = por %p226, %p227
      %s230 = sadd.s32 %s229, 1
      %p233 = scmp.eq.s32.totalorder %s22, 1
      %p234 = scmp.ne.s32.totalorder %s229, %s231
      %p235 = scmp.eq.s32.totalorder %s22, 0
      %p236 = por %p234, %p235
      %p237 = scmp.ne.s32.totalorder %s229, %s231
      %p238 = scmp.eq.s32.totalorder %s27, 1
      %p239 = por %p237, %p238
      %p240 = scmp.ne.s32.totalorder %s231, %s232
      %p241 = scmp.eq.s32.totalorder %s27, 0
      %p242 = por %p240, %p241
      %p243 = scmp.ne.s32.totalorder %s231, %s232
      %p244 = scmp.eq.s32.totalorder %s28, 1
      %p245 = por %p243, %p244
      %p247 = scmp.ne.s32.totalorder %s232, %s246
      %p248 = scmp.eq.s32.totalorder %s28, 0
      %p249 = por %p247, %p248
      %s251 = sadd.s32 %s250, 1
      %p254 = scmp.eq.s32.totalorder %s22, 1
      %p255 = scmp.ne.s32.totalorder %s250, %s252
      %p256 = scmp.eq.s32.totalorder %s22, 0
      %p257 = por %p255, %p256
      %p258 = scmp.ne.s32.totalorder %s250, %s252
      %p259 = scmp.eq.s32.totalorder %s27, 1
      %p260 = por %p258, %p259
      %p261 = scmp.ne.s32.totalorder %s252, %s253
      %p262 = scmp.eq.s32.totalorder %s27, 0
      %p263 = por %p261, %p262
      %p264 = scmp.ne.s32.totalorder %s252, %s253
      %p265 = scmp.eq.s32.totalorder %s28, 1
      %p266 = por %p264, %p265
      %p268 = scmp.ne.s32.totalorder %s253, %s267
      %p269 = scmp.eq.s32.totalorder %s28, 0
      %p270 = por %p268, %p269
      %s272 = sadd.s32 %s271, 1
      %p275 = scmp.eq.s32.totalorder %s22, 1
      %p276 = scmp.ne.s32.totalorder %s271, %s273
      %p277 = scmp.eq.s32.totalorder %s22, 0
      %p278 = por %p276, %p277
      %p279 = scmp.ne.s32.totalorder %s271, %s273
      %p280 = scmp.eq.s32.totalorder %s27, 1
      %p281 = por %p279, %p280
      %p282 = scmp.ne.s32.totalorder %s273, %s274
      %p283 = scmp.eq.s32.totalorder %s27, 0
      %p284 = por %p282, %p283
      %p285 = scmp.ne.s32.totalorder %s273, %s274
      %p286 = scmp.eq.s32.totalorder %s28, 1
      %p287 = por %p285, %p286
      %p289 = scmp.ne.s32.totalorder %s274, %s288
      %p290 = scmp.eq.s32.totalorder %s28, 0
      %p291 = por %p289, %p290
      %s293 = sadd.s32 %s292, 1
      %p296 = scmp.eq.s32.totalorder %s22, 1
      %p297 = scmp.ne.s32.totalorder %s292, %s294
      %p298 = scmp.eq.s32.totalorder %s22, 0
      %p299 = por %p297, %p298
      %p300 = scmp.ne.s32.totalorder %s292, %s294
      %p301 = scmp.eq.s32.totalorder %s27, 1
      %p302 = por %p300, %p301
      %p303 = scmp.ne.s32.totalorder %s294, %s295
      %p304 = scmp.eq.s32.totalorder %s27, 0
      %p305 = por %p303, %p304
      %p306 = scmp.ne.s32.totalorder %s294, %s295
      %p307 = scmp.eq.s32.totalorder %s28, 1
      %p308 = por %p306, %p307
      %p310 = scmp.ne.s32.totalorder %s295, %s309
      %p311 = scmp.eq.s32.totalorder %s28, 0
      %p312 = por %p310, %p311
      %s313 = ssub.s32 %s22, %s29
      %p314 = scmp.eq.s32.totalorder %s313, 0
      %s316 = sadd.s32 %s315, 1
      %s317 = scalar_select %p314, %s315, %s316
      %p320 = pneg %p314
      %p321 = scmp.eq.s32.totalorder %s22, 1
      %p322 = por %p320, %p321
      %p323 = scmp.ne.s32.totalorder %s315, %s318
      %p324 = scmp.eq.s32.totalorder %s22, 0
      %p325 = por %p323, %p324
      %p326 = scmp.ne.s32.totalorder %s315, %s318
      %p327 = scmp.eq.s32.totalorder %s27, 1
      %p328 = por %p326, %p327
      %p329 = scmp.ne.s32.totalorder %s318, %s319
      %p330 = scmp.eq.s32.totalorder %s27, 0
      %p331 = por %p329, %p330
      %p332 = scmp.ne.s32.totalorder %s318, %s319
      %p333 = scmp.eq.s32.totalorder %s28, 1
      %p334 = por %p332, %p333
      %p336 = scmp.ne.s32.totalorder %s319, %s335
      %p337 = scmp.eq.s32.totalorder %s28, 0
      %p338 = por %p336, %p337
      %p339 = scmp.le.s32.totalorder 1, %s22
      %p340 = scmp.lt.s32.totalorder %s22, 3
      %p341 = pnand %p339, %p340
      %p342 = pneg %p341
      // Predicated region
      $region9: #{tpu_custom_call.1} parent=5 // pred_check
        _
      $region10: #{tpu_custom_call.1} parent=5 // pred_check_branch
        %344 = sbr.rel (%p341) target = $region12
      $region11: #{tpu_custom_call.1} parent=5 // pred_region
        %s345 = ssub.s32 %s22, 1
        // Predicated region
        $region13: #{tpu_custom_call.1} parent=11 // pred_check
          %p346 = pneg %p95
        $region14: #{tpu_custom_call.1} parent=11 // pred_check_branch
          %348 = sbr.rel (%p346) target = $region16
        $region15: #{tpu_custom_call.1} parent=11 // pred_region
          _
        $region16: #{tpu_custom_call.1} parent=11 // pred_fallthru
          _
        // Predicated region
        $region17: #{tpu_custom_call.1} parent=11 // pred_check
          %p349 = pneg %p116
        $region18: #{tpu_custom_call.1} parent=11 // pred_check_branch
          %351 = sbr.rel (%p349) target = $region20
        $region19: #{tpu_custom_call.1} parent=11 // pred_region
          _
        $region20: #{tpu_custom_call.1} parent=11 // pred_fallthru
          _
        // Predicated region
        $region21: #{tpu_custom_call.1} parent=11 // pred_check
          %p352 = pneg %p137
        $region22: #{tpu_custom_call.1} parent=11 // pred_check_branch
          %354 = sbr.rel (%p352) target = $region24
        $region23: #{tpu_custom_call.1} parent=11 // pred_region
          _
        $region24: #{tpu_custom_call.1} parent=11 // pred_fallthru
          _
        // Predicated region
        $region25: #{tpu_custom_call.1} parent=11 // pred_check
          %p355 = pneg %p158
        $region26: #{tpu_custom_call.1} parent=11 // pred_check_branch
          %357 = sbr.rel (%p355) target = $region28
        $region27: #{tpu_custom_call.1} parent=11 // pred_region
          _
        $region28: #{tpu_custom_call.1} parent=11 // pred_fallthru
          _
        // Predicated region
        $region29: #{tpu_custom_call.1} parent=11 // pred_check
          %p358 = pneg %p179
        $region30: #{tpu_custom_call.1} parent=11 // pred_check_branch
          %360 = sbr.rel (%p358) target = $region32
        $region31: #{tpu_custom_call.1} parent=11 // pred_region
          _
        $region32: #{tpu_custom_call.1} parent=11 // pred_fallthru
          _
        // Predicated region
        $region33: #{tpu_custom_call.1} parent=11 // pred_check
          %p361 = pneg %p200
        $region34: #{tpu_custom_call.1} parent=11 // pred_check_branch
          %363 = sbr.rel (%p361) target = $region36
        $region35: #{tpu_custom_call.1} parent=11 // pred_region
          _
        $region36: #{tpu_custom_call.1} parent=11 // pred_fallthru
          _
        // Predicated region
        $region37: #{tpu_custom_call.1} parent=11 // pred_check
          %p364 = pneg %p221
        $region38: #{tpu_custom_call.1} parent=11 // pred_check_branch
          %366 = sbr.rel (%p364) target = $region40
        $region39: #{tpu_custom_call.1} parent=11 // pred_region
          _
        $region40: #{tpu_custom_call.1} parent=11 // pred_fallthru
          _
        // Predicated region
        $region41: #{tpu_custom_call.1} parent=11 // pred_check
          %p367 = pneg %p242
        $region42: #{tpu_custom_call.1} parent=11 // pred_check_branch
          %369 = sbr.rel (%p367) target = $region44
        $region43: #{tpu_custom_call.1} parent=11 // pred_region
          _
        $region44: #{tpu_custom_call.1} parent=11 // pred_fallthru
          _
        // Predicated region
        $region45: #{tpu_custom_call.1} parent=11 // pred_check
          %p370 = pneg %p263
        $region46: #{tpu_custom_call.1} parent=11 // pred_check_branch
          %372 = sbr.rel (%p370) target = $region48
        $region47: #{tpu_custom_call.1} parent=11 // pred_region
          _
        $region48: #{tpu_custom_call.1} parent=11 // pred_fallthru
          _
        // Predicated region
        $region49: #{tpu_custom_call.1} parent=11 // pred_check
          %p373 = pneg %p284
        $region50: #{tpu_custom_call.1} parent=11 // pred_check_branch
          %375 = sbr.rel (%p373) target = $region52
        $region51: #{tpu_custom_call.1} parent=11 // pred_region
          _
        $region52: #{tpu_custom_call.1} parent=11 // pred_fallthru
          _
        // Predicated region
        $region53: #{tpu_custom_call.1} parent=11 // pred_check
          %p376 = pneg %p305
        $region54: #{tpu_custom_call.1} parent=11 // pred_check_branch
          %378 = sbr.rel (%p376) target = $region56
        $region55: #{tpu_custom_call.1} parent=11 // pred_region
          _
        $region56: #{tpu_custom_call.1} parent=11 // pred_fallthru
          _
      $region12: #{tpu_custom_call.1} parent=5 // pred_fallthru
        _
      %p379 = scmp.lt.s32.totalorder %s22, 2
      // Predicated region
      $region57: #{tpu_custom_call.1} parent=5 // pred_check
        %p380 = pneg %p379
      $region58: #{tpu_custom_call.1} parent=5 // pred_check_branch
        %382 = sbr.rel (%p380) target = $region60
      $region59: #{tpu_custom_call.1} parent=5 // pred_region
        // Predicated region
        $region61: #{tpu_custom_call.1} parent=59 // pred_check
          %p383 = pneg %p42
        $region62: #{tpu_custom_call.1} parent=59 // pred_check_branch
          %385 = sbr.rel (%p383) target = $region64
        $region63: #{tpu_custom_call.1} parent=59 // pred_region
          %p386 = scmp.lt.s32.totalorder %s22, 1
          %s387 = scalar_select %p386, %s22, 1
          %s388 = smul.addr %s387, 2
          %s389 = smul.addr %s388, 8
          %s390 = scalar_lea.vmem %s0, %s389
        $region64: #{tpu_custom_call.1} parent=59 // pred_fallthru
          _
        // Predicated region
        $region65: #{tpu_custom_call.1} parent=59 // pred_check
          %p391 = pneg %p68
        $region66: #{tpu_custom_call.1} parent=59 // pred_check_branch
          %393 = sbr.rel (%p391) target = $region68
        $region67: #{tpu_custom_call.1} parent=59 // pred_region
          %s394 = sand.u32 %s58, 1
          %s395 = sand.u32 %s58, 1
          %s396 = smul.addr %s395, 32
          %s397 = scalar_lea.vmem [#allocation2], %s396
          %s398 = smul.addr %s22, 2
          %s399 = smul.addr %s398, 8
          %s400 = scalar_lea.vmem %s1, %s399
          // Predicated region
          $region69: #{tpu_custom_call.1} parent=67 // pred_check
            _
          $region70: #{tpu_custom_call.1} parent=67 // pred_check_branch
            %402 = sbr.rel (0) target = $region72
          $region71: #{tpu_custom_call.1} parent=67 // pred_region
            // Predicated region
            $region73: #{tpu_custom_call.1} parent=71 // pred_check
              _
            $region74: #{tpu_custom_call.1} parent=71 // pred_check_branch
              %404 = sbr.rel (0) target = $region76
            $region75: #{tpu_custom_call.1} parent=71 // pred_region
              // Predicated region
              $region88: #{tpu_custom_call.1} parent=75 // pred_check
                _
              $region89: #{tpu_custom_call.1} parent=75 // pred_check_branch
                %426 = sbr.rel (0) target = $region91
              $region90: #{tpu_custom_call.1} parent=75 // pred_region
                loop: start=0, step=1, limit=1
                $region92: #{tpu_custom_call.1} parent=90 // loop_pre_header
                  _
                $region93: #{tpu_custom_call.1} parent=90 // loop_header
                  %s428 = sphi 0, %s432
                  %p429 = scmp.ge.s32.totalorder %s428, 1
                  %s433 = sphi %s400, %s400
                  %s434 = sphi %s397, %s397
                $region94: #{tpu_custom_call.1} parent=90 // loop_header_branch
                  %431 = sbr.rel (%p429) target = $region98
                $region95: #{tpu_custom_call.1} parent=90 // loop_body
                  %v435 = vld [vmem:[%s433] sm:$0xff]
                  %436 = vst [vmem:[%s434] sm:$0xff] %v435
                  %v437 = vld [vmem:[%s433 + $0x8] sm:$0xff]
                  %438 = vst [vmem:[%s434 + $0x8] sm:$0xff] %v437
                  %v439 = vld [vmem:[%s433 + $0x20] sm:$0xff]
                  %440 = vst [vmem:[%s434 + $0x10] sm:$0xff] %v439
                  %v441 = vld [vmem:[%s433 + $0x28] sm:$0xff]
                  %442 = vst [vmem:[%s434 + $0x18] sm:$0xff] %v441
                $region96: #{tpu_custom_call.1} parent=90 // loop_footer
                  %s432 = sadd.s32 1, %s428
                $region97: #{tpu_custom_call.1} parent=90 // loop_footer_branch
                  %427 = sbr.rel target = $region93
                $region98: #{tpu_custom_call.1} parent=90 // loop_exit
                  _
              $region91: #{tpu_custom_call.1} parent=75 // pred_fallthru
                _
              // Predicated region
              $region99: #{tpu_custom_call.1} parent=75 // pred_check
                _
              $region100: #{tpu_custom_call.1} parent=75 // pred_check_branch
                %444 = sbr.rel target = $region102
              $region101: #{tpu_custom_call.1} parent=75 // pred_region
                _
              $region102: #{tpu_custom_call.1} parent=75 // pred_fallthru
                _
            $region76: #{tpu_custom_call.1} parent=71 // pred_fallthru
              _
            // Predicated region
            $region77: #{tpu_custom_call.1} parent=71 // pred_check
              _
            $region78: #{tpu_custom_call.1} parent=71 // pred_check_branch
              %406 = sbr.rel target = $region80
            $region79: #{tpu_custom_call.1} parent=71 // pred_region
              %s408 = ssub.s32 256, 1
              loop: start=0, step=1, limit=1
              $region81: #{tpu_custom_call.1} parent=79 // loop_pre_header
                _
              $region82: #{tpu_custom_call.1} parent=79 // loop_header
                %s410 = sphi 0, %s414
                %p411 = scmp.ge.s32.totalorder %s410, 1
                %s415 = sphi %s400, %s400
                %s416 = sphi %s397, %s397
              $region83: #{tpu_custom_call.1} parent=79 // loop_header_branch
                %413 = sbr.rel (%p411) target = $region87
              $region84: #{tpu_custom_call.1} parent=79 // loop_body
                %v417 = vld [vmem:[%s415] sm:%s408]
                %418 = vst [vmem:[%s416] sm:%s408] %v417
                %v419 = vld [vmem:[%s415 + $0x8] sm:%s408]
                %420 = vst [vmem:[%s416 + $0x8] sm:%s408] %v419
                %v421 = vld [vmem:[%s415 + $0x20] sm:%s408]
                %422 = vst [vmem:[%s416 + $0x10] sm:%s408] %v421
                %v423 = vld [vmem:[%s415 + $0x28] sm:%s408]
                %424 = vst [vmem:[%s416 + $0x18] sm:%s408] %v423
              $region85: #{tpu_custom_call.1} parent=79 // loop_footer
                %s414 = sadd.s32 1, %s410
              $region86: #{tpu_custom_call.1} parent=79 // loop_footer_branch
                %409 = sbr.rel target = $region82
              $region87: #{tpu_custom_call.1} parent=79 // loop_exit
                _
            $region80: #{tpu_custom_call.1} parent=71 // pred_fallthru
              _
          $region72: #{tpu_custom_call.1} parent=67 // pred_fallthru
            _
          %445 = vnop
        $region68: #{tpu_custom_call.1} parent=59 // pred_fallthru
          _
      $region60: #{tpu_custom_call.1} parent=5 // pred_fallthru
        _
      %p446 = scmp.le.s32.totalorder 1, %s22
      %p447 = scmp.lt.s32.totalorder %s22, 3
      %p448 = pnand %p446, %p447
      %p449 = pneg %p448
      // Predicated region
      $region103: #{tpu_custom_call.1} parent=5 // pred_check
        _
      $region104: #{tpu_custom_call.1} parent=5 // pred_check_branch
        %451 = sbr.rel (%p448) target = $region106
      $region105: #{tpu_custom_call.1} parent=5 // pred_region
        %s452 = ssub.s32 %s22, 1
        %s453 = sand.u32 %s61, 1
        %s454 = sand.u32 %s61, 1
        %s455 = smul.addr %s454, 32
        %s456 = scalar_lea.vmem [#allocation2], %s455
        // Predicated region
        $region107: #{tpu_custom_call.1} parent=105 // pred_check
          %p457 = pneg %p74
        $region108: #{tpu_custom_call.1} parent=105 // pred_check_branch
          %459 = sbr.rel (%p457) target = $region110
        $region109: #{tpu_custom_call.1} parent=105 // pred_region
          _
        $region110: #{tpu_custom_call.1} parent=105 // pred_fallthru
          _
        %p460 = scmp.lt.s32.totalorder %s27, 1
        %s461 = scalar_select %p460, %s27, 1
        %s462 = smul.addr %s461, 2
        %s463 = smul.addr %s462, 8
        %s464 = scalar_lea.vmem %s0, %s463
        %p465 = pneg %p48
        %p466 = pneg %p45
        %s467 = sand.u32 %s61, 1
        %s468 = sand.u32 %s61, 1
        %s469 = smul.addr %s468, 32
        %s470 = scalar_lea.vmem [#allocation2], %s469
        %p471 = pneg %p74
        %p472 = pneg %p71
        %p473 = pneg %p95
        %p474 = pneg %p92
        %p475 = pneg %p116
        %p476 = pneg %p113
        %p477 = pneg %p137
        %p478 = pneg %p134
        %p479 = pneg %p158
        %p480 = pneg %p155
        %p481 = pneg %p179
        %p482 = pneg %p176
        %p483 = pneg %p200
        %p484 = pneg %p197
        %p485 = pneg %p221
        %p486 = pneg %p218
        %p487 = pneg %p242
        %p488 = pneg %p239
        %p489 = pneg %p263
        %p490 = pneg %p260
        %p491 = pneg %p284
        %p492 = pneg %p281
        %p493 = pneg %p305
        %p494 = pneg %p302
        %p495 = pneg %p331
        %p496 = pneg %p328
        %s497 = sand.u32 %s318, 1
        %s498 = scalar_lea.sflag [#allocation4], %s497
        %s499 = sand.u32 %s318, 1
        %s500 = smul.addr %s499, 32
        %s501 = scalar_lea.vmem [#allocation3], %s500
        %p502 = scmp.lt.s32.totalorder %s27, 1
        %s503 = scalar_select %p502, %s27, 1
        %s504 = smul.addr %s503, 2
        %s505 = smul.addr %s504, 8
        %s506 = scalar_lea.vmem %s0, %s505
        %v508 = vld [vmem:[%s506] sm:$0xff]
        %v509 = vld [vmem:[%s506 + $0x8] sm:$0xff]
        %v510 = vld [vmem:[%s3] sm:$0xf]
        %v511 = vld [vmem:[%s3 + $0x4] sm:$0xf]
        %v512 = vld [vmem:[%s3 + $0x8] sm:$0xf]
        %v513 = vld [vmem:[%s3 + $0xc] sm:$0xf]
        %v514 = vld [vmem:[%s3 + $0x10] sm:$0xf]
        %v515 = vld [vmem:[%s4] sm:$0xf]
        %v516 = vld [vmem:[%s4 + $0x4] sm:$0xf]
        %v517 = vld [vmem:[%s4 + $0x8] sm:$0xf]
        %v518 = vld [vmem:[%s4 + $0xc] sm:$0xf]
        %v519 = vld [vmem:[%s4 + $0x10] sm:$0xf]
        %v520 = vld [vmem:[%s4 + $0x14] sm:$0xf]
        %v521 = vld [vmem:[%s4 + $0x18] sm:$0xf]
        %v522 = vld [vmem:[%s4 + $0x1c] sm:$0xf]
        %v523 = vld [vmem:[%s4 + $0x20] sm:$0xf]
        %v524 = vld [vmem:[%s4 + $0x24] sm:$0xf]
        %v525 = vld [vmem:[%s4 + $0x28] sm:$0xf]
        %v526 = vld [vmem:[%s4 + $0x2c] sm:$0xf]
        %v527 = vld [vmem:[%s4 + $0x30] sm:$0xf]
        %v528 = vld [vmem:[%s4 + $0x34] sm:$0xf]
        %v529 = vld [vmem:[%s4 + $0x38] sm:$0xf]
        %v530 = vld [vmem:[%s4 + $0x3c] sm:$0xf]
        %v531 = vld [vmem:[%s4 + $0x40] sm:$0xf]
        %v532 = vld [vmem:[%s4 + $0x44] sm:$0xf]
        %v533 = vld [vmem:[%s4 + $0x48] sm:$0xf]
        %v534 = vld [vmem:[%s4 + $0x4c] sm:$0xf]
        %v535 = vld [vmem:[%s5] sm:$0xf]
        %v536 = vld [vmem:[%s5 + $0x4] sm:$0xf]
        %v537 = vld [vmem:[%s5 + $0x8] sm:$0xf]
        %v538 = vld [vmem:[%s5 + $0xc] sm:$0xf]
        %v539 = vld [vmem:[%s5 + $0x10] sm:$0xf]
        %v540 = vld [vmem:[%s5 + $0x14] sm:$0xf]
        %v541 = vld [vmem:[%s5 + $0x18] sm:$0xf]
        %v542 = vld [vmem:[%s5 + $0x1c] sm:$0xf]
        %v543 = vld [vmem:[%s5 + $0x20] sm:$0xf]
        %v544 = vld [vmem:[%s5 + $0x24] sm:$0xf]
        %v545 = vld [vmem:[%s5 + $0x28] sm:$0xf]
        %v546 = vld [vmem:[%s5 + $0x2c] sm:$0xf]
        %v547 = vld [vmem:[%s5 + $0x30] sm:$0xf]
        %v548 = vld [vmem:[%s5 + $0x34] sm:$0xf]
        %v549 = vld [vmem:[%s5 + $0x38] sm:$0xf]
        %v550 = vld [vmem:[%s5 + $0x3c] sm:$0xf]
        %v551 = vld [vmem:[%s5 + $0x40] sm:$0xf]
        %v552 = vld [vmem:[%s5 + $0x44] sm:$0xf]
        %v553 = vld [vmem:[%s5 + $0x48] sm:$0xf]
        %v554 = vld [vmem:[%s5 + $0x4c] sm:$0xf]
        %v555 = vld [vmem:[%s6] sm:$0x1]
        %v556 = vld [vmem:[%s7] sm:$0x1]
        %v557 = vld [vmem:[%s456] sm:$0xff]
        %v558 = vld [vmem:[%s456 + $0x8] sm:$0xff]
        %v559 = vld [vmem:[%s2] sm:$0xf]
        %v560 = vld [vmem:[%s2 + $0x4] sm:$0xf]
        %v561 = vpack.c.bf16 %v509, %v508
        %v564 = vunpack.c.l.b16 %v559
        %v565 = vunpack.c.l.b16 %v560
        %v566 = vpack.c.b16 %v565, %v564
        %vm567 = vcmask 130048
        %v569 = vsel %vm567, %v566, 0
        %571 = vmatprep.subr.bf16.mxu0 0
        %572 = vmatpush1.bf16.msra.mxu0 0
        %573 = vmatprep.subr.bf16.mxu0 0
        %574 = vmatpush1.bf16.msra.mxu0 0
        %575 = vmatprep.subr.bf16.mxu0 0
        %576 = vmatpush1.bf16.msra.mxu0 0
        %577 = vmatprep.subr.bf16.mxu0 0
        %578 = vmatpush1.bf16.msra.mxu0 0
        %579 = vmatprep.subr.bf16.mxu0 0
        %580 = vmatpush1.bf16.msra.mxu0 0
        %581 = vmatprep.subr.bf16.mxu0 0
        %582 = vmatpush1.bf16.msra.mxu0 0
        %583 = vmatprep.subr.bf16.mxu0 0
        %584 = vmatpush1.bf16.msra.mxu0 0
        %585 = vmatprep.subr.bf16.mxu0 0
        %586 = vmatpush1.bf16.msra.mxu0 %v561
        %587 = vmatprep.subr.bf16.mxu0 0
        %588 = vmatpush2.bf16.msra.mxu0 0
        %589 = vmatprep.subr.bf16.mxu0 0
        %590 = vmatpush2.bf16.msra.mxu0 0
        %591 = vmatprep.subr.bf16.mxu0 0
        %592 = vmatpush2.bf16.msra.mxu0 0
        %593 = vmatprep.subr.bf16.mxu0 0
        %594 = vmatpush2.bf16.msra.mxu0 0
        %595 = vmatprep.subr.bf16.mxu0 0
        %596 = vmatpush2.bf16.msra.mxu0 0
        %597 = vmatprep.subr.bf16.mxu0 0
        %598 = vmatpush2.bf16.msra.mxu0 0
        %599 = vmatprep.subr.bf16.mxu0 0
        %600 = vmatpush2.bf16.msra.mxu0 0
        %601 = vmatprep.subr.bf16.mxu0 0
        %602 = vmatpush2.bf16.msra.mxu0 0
        %603 = vmatprep.mubr.bf16.mxu0 0
        %604 = vmatmul.mubr.bf16.gmra.mxu0 %v569
        %v605 = vpop.f32.mrf.mxu0
        %v606 = vadd.f32 0.0, %v605
        %v607 = vpop.f32.mrf.mxu0
        %v608 = vpop.f32.mrf.mxu0
        %v609 = vadd.f32 0.0, %v608
        %v610 = vpop.f32.mrf.mxu0
        %611 = vdwg.mxu0
        %v612 = vpack.c.bf16 %v609, %v606
        %613 = vmatprep.subr.bf16.mxu0 0
        %614 = vmatpush1.bf16.msra.mxu0 0
        %615 = vmatprep.subr.bf16.mxu0 0
        %616 = vmatpush1.bf16.msra.mxu0 0
        %617 = vmatprep.subr.bf16.mxu0 0
        %618 = vmatpush1.bf16.msra.mxu0 0
        %619 = vmatprep.subr.bf16.mxu0 0
        %620 = vmatpush1.bf16.msra.mxu0 0
        %621 = vmatprep.subr.bf16.mxu0 0
        %622 = vmatpush1.bf16.msra.mxu0 0
        %623 = vmatprep.subr.bf16.mxu0 0
        %624 = vmatpush1.bf16.msra.mxu0 0
        %625 = vmatprep.subr.bf16.mxu0 0
        %626 = vmatpush1.bf16.msra.mxu0 0
        %627 = vmatprep.subr.bf16.mxu0 0
        %628 = vmatpush1.bf16.msra.mxu0 %v612
        %629 = vmatprep.subr.bf16.mxu0 0
        %630 = vmatpush2.bf16.msra.mxu0 0
        %631 = vmatprep.subr.bf16.mxu0 0
        %632 = vmatpush2.bf16.msra.mxu0 0
        %633 = vmatprep.subr.bf16.mxu0 0
        %634 = vmatpush2.bf16.msra.mxu0 0
        %635 = vmatprep.subr.bf16.mxu0 0
        %636 = vmatpush2.bf16.msra.mxu0 0
        %637 = vmatprep.subr.bf16.mxu0 0
        %638 = vmatpush2.bf16.msra.mxu0 0
        %639 = vmatprep.subr.bf16.mxu0 0
        %640 = vmatpush2.bf16.msra.mxu0 0
        %641 = vmatprep.subr.bf16.mxu0 0
        %642 = vmatpush2.bf16.msra.mxu0 0
        %643 = vmatprep.subr.bf16.mxu0 0
        %644 = vmatpush2.bf16.msra.mxu0 0
        %645 = vmatprep.mubr.bf16.mxu0 0
        %646 = vmatmul.mubr.bf16.gmra.mxu0 %v569
        %v647 = vpop.f32.mrf.mxu0
        %v648 = vadd.f32 0.0, %v647
        %v649 = vpop.f32.mrf.mxu0
        %v650 = vpop.f32.mrf.mxu0
        %v651 = vadd.f32 0.0, %v650
        %v652 = vpop.f32.mrf.mxu0
        %653 = vdwg.mxu0
        %v654 = vmul.f32 %v648, 2.0
        %v655 = vmul.f32 %v651, 2.0
        %v656 = vsub.f32 %v654, %v508
        %v657 = vsub.f32 %v655, %v509
        %s658 = scalar_lea.vmem %s2, 8
        %v659 = vld [vmem:[%s658] sm:$0xf]
        %v660 = vld [vmem:[%s658 + $0x4] sm:$0xf]
        %v663 = vunpack.c.l.b16 %v659
        %v664 = vunpack.c.l.b16 %v660
        %v665 = vpack.c.b16 %v664, %v663
        %v667 = vsel %vm567, %v665, 0
        %669 = vmatprep.subr.bf16.mxu0 0
        %670 = vmatpush1.bf16.msra.mxu0 0
        %671 = vmatprep.subr.bf16.mxu0 0
        %672 = vmatpush1.bf16.msra.mxu0 0
        %673 = vmatprep.subr.bf16.mxu0 0
        %674 = vmatpush1.bf16.msra.mxu0 0
        %675 = vmatprep.subr.bf16.mxu0 0
        %676 = vmatpush1.bf16.msra.mxu0 0
        %677 = vmatprep.subr.bf16.mxu0 0
        %678 = vmatpush1.bf16.msra.mxu0 0
        %679 = vmatprep.subr.bf16.mxu0 0
        %680 = vmatpush1.bf16.msra.mxu0 0
        %681 = vmatprep.subr.bf16.mxu0 0
        %682 = vmatpush1.bf16.msra.mxu0 0
        %683 = vmatprep.subr.bf16.mxu0 0
        %684 = vmatpush1.bf16.msra.mxu0 %v561
        %685 = vmatprep.subr.bf16.mxu0 0
        %686 = vmatpush2.bf16.msra.mxu0 0
        %687 = vmatprep.subr.bf16.mxu0 0
        %688 = vmatpush2.bf16.msra.mxu0 0
        %689 = vmatprep.subr.bf16.mxu0 0
        %690 = vmatpush2.bf16.msra.mxu0 0
        %691 = vmatprep.subr.bf16.mxu0 0
        %692 = vmatpush2.bf16.msra.mxu0 0
        %693 = vmatprep.subr.bf16.mxu0 0
        %694 = vmatpush2.bf16.msra.mxu0 0
        %695 = vmatprep.subr.bf16.mxu0 0
        %696 = vmatpush2.bf16.msra.mxu0 0
        %697 = vmatprep.subr.bf16.mxu0 0
        %698 = vmatpush2.bf16.msra.mxu0 0
        %699 = vmatprep.subr.bf16.mxu0 0
        %700 = vmatpush2.bf16.msra.mxu0 0
        %701 = vmatprep.mubr.bf16.mxu0 0
        %702 = vmatmul.mubr.bf16.gmra.mxu0 %v667
        %v703 = vpop.f32.mrf.mxu0
        %v704 = vadd.f32 0.0, %v703
        %v705 = vpop.f32.mrf.mxu0
        %v706 = vpop.f32.mrf.mxu0
        %v707 = vadd.f32 0.0, %v706
        %v708 = vpop.f32.mrf.mxu0
        %709 = vdwg.mxu0
        %v710 = vpack.c.bf16 %v707, %v704
        %711 = vmatprep.subr.bf16.mxu0 0
        %712 = vmatpush1.bf16.msra.mxu0 0
        %713 = vmatprep.subr.bf16.mxu0 0
        %714 = vmatpush1.bf16.msra.mxu0 0
        %715 = vmatprep.subr.bf16.mxu0 0
        %716 = vmatpush1.bf16.msra.mxu0 0
        %717 = vmatprep.subr.bf16.mxu0 0
        %718 = vmatpush1.bf16.msra.mxu0 0
        %719 = vmatprep.subr.bf16.mxu0 0
        %720 = vmatpush1.bf16.msra.mxu0 0
        %721 = vmatprep.subr.bf16.mxu0 0
        %722 = vmatpush1.bf16.msra.mxu0 0
        %723 = vmatprep.subr.bf16.mxu0 0
        %724 = vmatpush1.bf16.msra.mxu0 0
        %725 = vmatprep.subr.bf16.mxu0 0
        %726 = vmatpush1.bf16.msra.mxu0 %v710
        %727 = vmatprep.subr.bf16.mxu0 0
        %728 = vmatpush2.bf16.msra.mxu0 0
        %729 = vmatprep.subr.bf16.mxu0 0
        %730 = vmatpush2.bf16.msra.mxu0 0
        %731 = vmatprep.subr.bf16.mxu0 0
        %732 = vmatpush2.bf16.msra.mxu0 0
        %733 = vmatprep.subr.bf16.mxu0 0
        %734 = vmatpush2.bf16.msra.mxu0 0
        %735 = vmatprep.subr.bf16.mxu0 0
        %736 = vmatpush2.bf16.msra.mxu0 0
        %737 = vmatprep.subr.bf16.mxu0 0
        %738 = vmatpush2.bf16.msra.mxu0 0
        %739 = vmatprep.subr.bf16.mxu0 0
        %740 = vmatpush2.bf16.msra.mxu0 0
        %741 = vmatprep.subr.bf16.mxu0 0
        %742 = vmatpush2.bf16.msra.mxu0 0
        %743 = vmatprep.mubr.bf16.mxu0 0
        %744 = vmatmul.mubr.bf16.gmra.mxu0 %v667
        %v745 = vpop.f32.mrf.mxu0
        %v746 = vadd.f32 0.0, %v745
        %v747 = vpop.f32.mrf.mxu0
        %v748 = vpop.f32.mrf.mxu0
        %v749 = vadd.f32 0.0, %v748
        %v750 = vpop.f32.mrf.mxu0
        %751 = vdwg.mxu0
        %v752 = vmul.f32 %v746, 2.0
        %v753 = vmul.f32 %v749, 2.0
        %v754 = vsub.f32 %v752, %v508
        %v755 = vsub.f32 %v753, %v509
        %758 = vrot.lane.b32.xlu0 %v606, 8
        %v759 = vpop.permute.xlu0 %758
        %760 = vrot.lane.b32.xlu0 %v609, 8
        %v761 = vpop.permute.xlu0 %760
        %766 = vrot.lane.b32.xlu0 %v656, 16
        %v767 = vpop.permute.xlu0 %766
        %768 = vrot.lane.b32.xlu0 %v657, 16
        %v769 = vpop.permute.xlu0 %768
        %774 = vrot.lane.b32.xlu0 %v704, 24
        %v775 = vpop.permute.xlu0 %774
        %776 = vrot.lane.b32.xlu0 %v707, 24
        %v777 = vpop.permute.xlu0 %776
        %782 = vrot.lane.b32.xlu0 %v754, 32
        %v783 = vpop.permute.xlu0 %782
        %784 = vrot.lane.b32.xlu0 %v755, 32
        %v785 = vpop.permute.xlu0 %784
        %vm788 = vcmask 64512
        %v789 = vsel %vm788, %v508, %v759
        %v790 = vsel %vm788, %v509, %v761
        %v791 = vsel %vm567, %v789, %v767
        %v792 = vsel %vm567, %v790, %v769
        %vm793 = vcmask 195584
        %v794 = vsel %vm793, %v791, %v775
        %v795 = vsel %vm793, %v792, %v777
        %vm796 = vcmask 261120
        %v797 = vsel %vm796, %v794, %v783
        %v798 = vsel %vm796, %v795, %v785
        %v799 = vpack.c.bf16 %v798, %v797
        %v800 = vpack.c.bf16 %v558, %v557
        %801 = vmatprep.subr.bf16.mxu0 0
        %802 = vmatpush1.bf16.msra.mxu0 0
        %803 = vmatprep.subr.bf16.mxu0 0
        %804 = vmatpush1.bf16.msra.mxu0 0
        %805 = vmatprep.subr.bf16.mxu0 0
        %806 = vmatpush1.bf16.msra.mxu0 0
        %807 = vmatprep.subr.bf16.mxu0 0
        %808 = vmatpush1.bf16.msra.mxu0 0
        %809 = vmatprep.subr.bf16.mxu0 0
        %810 = vmatpush1.bf16.msra.mxu0 0
        %811 = vmatprep.subr.bf16.mxu0 0
        %812 = vmatpush1.bf16.msra.mxu0 0
        %813 = vmatprep.subr.bf16.mxu0 0
        %814 = vmatpush1.bf16.msra.mxu0 0
        %815 = vmatprep.subr.bf16.mxu0 0
        %816 = vmatpush1.bf16.msra.mxu0 %v800
        %817 = vmatprep.subr.bf16.mxu0 0
        %818 = vmatpush2.bf16.msra.mxu0 0
        %819 = vmatprep.subr.bf16.mxu0 0
        %820 = vmatpush2.bf16.msra.mxu0 0
        %821 = vmatprep.subr.bf16.mxu0 0
        %822 = vmatpush2.bf16.msra.mxu0 0
        %823 = vmatprep.subr.bf16.mxu0 0
        %824 = vmatpush2.bf16.msra.mxu0 0
        %825 = vmatprep.subr.bf16.mxu0 0
        %826 = vmatpush2.bf16.msra.mxu0 0
        %827 = vmatprep.subr.bf16.mxu0 0
        %828 = vmatpush2.bf16.msra.mxu0 0
        %829 = vmatprep.subr.bf16.mxu0 0
        %830 = vmatpush2.bf16.msra.mxu0 0
        %831 = vmatprep.subr.bf16.mxu0 0
        %832 = vmatpush2.bf16.msra.mxu0 0
        %833 = vmatprep.mubr.bf16.mxu0 0
        %834 = vmatmul.mubr.bf16.gmra.mxu0 %v569
        %v835 = vpop.f32.mrf.mxu0
        %v836 = vadd.f32 0.0, %v835
        %v837 = vpop.f32.mrf.mxu0
        %v838 = vpop.f32.mrf.mxu0
        %v839 = vadd.f32 0.0, %v838
        %v840 = vpop.f32.mrf.mxu0
        %841 = vdwg.mxu0
        %v842 = vpack.c.bf16 %v839, %v836
        %843 = vmatprep.subr.bf16.mxu0 0
        %844 = vmatpush1.bf16.msra.mxu0 0
        %845 = vmatprep.subr.bf16.mxu0 0
        %846 = vmatpush1.bf16.msra.mxu0 0
        %847 = vmatprep.subr.bf16.mxu0 0
        %848 = vmatpush1.bf16.msra.mxu0 0
        %849 = vmatprep.subr.bf16.mxu0 0
        %850 = vmatpush1.bf16.msra.mxu0 0
        %851 = vmatprep.subr.bf16.mxu0 0
        %852 = vmatpush1.bf16.msra.mxu0 0
        %853 = vmatprep.subr.bf16.mxu0 0
        %854 = vmatpush1.bf16.msra.mxu0 0
        %855 = vmatprep.subr.bf16.mxu0 0
        %856 = vmatpush1.bf16.msra.mxu0 0
        %857 = vmatprep.subr.bf16.mxu0 0
        %858 = vmatpush1.bf16.msra.mxu0 %v842
        %859 = vmatprep.subr.bf16.mxu0 0
        %860 = vmatpush2.bf16.msra.mxu0 0
        %861 = vmatprep.subr.bf16.mxu0 0
        %862 = vmatpush2.bf16.msra.mxu0 0
        %863 = vmatprep.subr.bf16.mxu0 0
        %864 = vmatpush2.bf16.msra.mxu0 0
        %865 = vmatprep.subr.bf16.mxu0 0
        %866 = vmatpush2.bf16.msra.mxu0 0
        %867 = vmatprep.subr.bf16.mxu0 0
        %868 = vmatpush2.bf16.msra.mxu0 0
        %869 = vmatprep.subr.bf16.mxu0 0
        %870 = vmatpush2.bf16.msra.mxu0 0
        %871 = vmatprep.subr.bf16.mxu0 0
        %872 = vmatpush2.bf16.msra.mxu0 0
        %873 = vmatprep.subr.bf16.mxu0 0
        %874 = vmatpush2.bf16.msra.mxu0 0
        %875 = vmatprep.mubr.bf16.mxu0 0
        %876 = vmatmul.mubr.bf16.gmra.mxu0 %v569
        %v877 = vpop.f32.mrf.mxu0
        %v878 = vadd.f32 0.0, %v877
        %v879 = vpop.f32.mrf.mxu0
        %v880 = vpop.f32.mrf.mxu0
        %v881 = vadd.f32 0.0, %v880
        %v882 = vpop.f32.mrf.mxu0
        %883 = vdwg.mxu0
        %v884 = vmul.f32 %v878, 2.0
        %v885 = vmul.f32 %v881, 2.0
        %v886 = vsub.f32 %v884, %v557
        %v887 = vsub.f32 %v885, %v558
        %888 = vmatprep.subr.bf16.mxu0 0
        %889 = vmatpush1.bf16.msra.mxu0 0
        %890 = vmatprep.subr.bf16.mxu0 0
        %891 = vmatpush1.bf16.msra.mxu0 0
        %892 = vmatprep.subr.bf16.mxu0 0
        %893 = vmatpush1.bf16.msra.mxu0 0
        %894 = vmatprep.subr.bf16.mxu0 0
        %895 = vmatpush1.bf16.msra.mxu0 0
        %896 = vmatprep.subr.bf16.mxu0 0
        %897 = vmatpush1.bf16.msra.mxu0 0
        %898 = vmatprep.subr.bf16.mxu0 0
        %899 = vmatpush1.bf16.msra.mxu0 0
        %900 = vmatprep.subr.bf16.mxu0 0
        %901 = vmatpush1.bf16.msra.mxu0 0
        %902 = vmatprep.subr.bf16.mxu0 0
        %903 = vmatpush1.bf16.msra.mxu0 %v800
        %904 = vmatprep.subr.bf16.mxu0 0
        %905 = vmatpush2.bf16.msra.mxu0 0
        %906 = vmatprep.subr.bf16.mxu0 0
        %907 = vmatpush2.bf16.msra.mxu0 0
        %908 = vmatprep.subr.bf16.mxu0 0
        %909 = vmatpush2.bf16.msra.mxu0 0
        %910 = vmatprep.subr.bf16.mxu0 0
        %911 = vmatpush2.bf16.msra.mxu0 0
        %912 = vmatprep.subr.bf16.mxu0 0
        %913 = vmatpush2.bf16.msra.mxu0 0
        %914 = vmatprep.subr.bf16.mxu0 0
        %915 = vmatpush2.bf16.msra.mxu0 0
        %916 = vmatprep.subr.bf16.mxu0 0
        %917 = vmatpush2.bf16.msra.mxu0 0
        %918 = vmatprep.subr.bf16.mxu0 0
        %919 = vmatpush2.bf16.msra.mxu0 0
        %920 = vmatprep.mubr.bf16.mxu0 0
        %921 = vmatmul.mubr.bf16.gmra.mxu0 %v667
        %v922 = vpop.f32.mrf.mxu0
        %v923 = vadd.f32 0.0, %v922
        %v924 = vpop.f32.mrf.mxu0
        %v925 = vpop.f32.mrf.mxu0
        %v926 = vadd.f32 0.0, %v925
        %v927 = vpop.f32.mrf.mxu0
        %928 = vdwg.mxu0
        %v929 = vpack.c.bf16 %v926, %v923
        %930 = vmatprep.subr.bf16.mxu0 0
        %931 = vmatpush1.bf16.msra.mxu0 0
        %932 = vmatprep.subr.bf16.mxu0 0
        %933 = vmatpush1.bf16.msra.mxu0 0
        %934 = vmatprep.subr.bf16.mxu0 0
        %935 = vmatpush1.bf16.msra.mxu0 0
        %936 = vmatprep.subr.bf16.mxu0 0
        %937 = vmatpush1.bf16.msra.mxu0 0
        %938 = vmatprep.subr.bf16.mxu0 0
        %939 = vmatpush1.bf16.msra.mxu0 0
        %940 = vmatprep.subr.bf16.mxu0 0
        %941 = vmatpush1.bf16.msra.mxu0 0
        %942 = vmatprep.subr.bf16.mxu0 0
        %943 = vmatpush1.bf16.msra.mxu0 0
        %944 = vmatprep.subr.bf16.mxu0 0
        %945 = vmatpush1.bf16.msra.mxu0 %v929
        %946 = vmatprep.subr.bf16.mxu0 0
        %947 = vmatpush2.bf16.msra.mxu0 0
        %948 = vmatprep.subr.bf16.mxu0 0
        %949 = vmatpush2.bf16.msra.mxu0 0
        %950 = vmatprep.subr.bf16.mxu0 0
        %951 = vmatpush2.bf16.msra.mxu0 0
        %952 = vmatprep.subr.bf16.mxu0 0
        %953 = vmatpush2.bf16.msra.mxu0 0
        %954 = vmatprep.subr.bf16.mxu0 0
        %955 = vmatpush2.bf16.msra.mxu0 0
        %956 = vmatprep.subr.bf16.mxu0 0
        %957 = vmatpush2.bf16.msra.mxu0 0
        %958 = vmatprep.subr.bf16.mxu0 0
        %959 = vmatpush2.bf16.msra.mxu0 0
        %960 = vmatprep.subr.bf16.mxu0 0
        %961 = vmatpush2.bf16.msra.mxu0 0
        %962 = vmatprep.mubr.bf16.mxu0 0
        %963 = vmatmul.mubr.bf16.gmra.mxu0 %v667
        %v964 = vpop.f32.mrf.mxu0
        %v965 = vadd.f32 0.0, %v964
        %v966 = vpop.f32.mrf.mxu0
        %v967 = vpop.f32.mrf.mxu0
        %v968 = vadd.f32 0.0, %v967
        %v969 = vpop.f32.mrf.mxu0
        %970 = vdwg.mxu0
        %v971 = vmul.f32 %v965, 2.0
        %v972 = vmul.f32 %v968, 2.0
        %v973 = vsub.f32 %v971, %v557
        %v974 = vsub.f32 %v972, %v558
        %977 = vrot.lane.b32.xlu0 %v836, 32
        %v978 = vpop.permute.xlu0 %977
        %979 = vrot.lane.b32.xlu0 %v839, 32
        %v980 = vpop.permute.xlu0 %979
        %985 = vrot.lane.b32.xlu0 %v886, 64
        %v986 = vpop.permute.xlu0 %985
        %987 = vrot.lane.b32.xlu0 %v887, 64
        %v988 = vpop.permute.xlu0 %987
        %993 = vrot.lane.b32.xlu0 %v923, 96
        %v994 = vpop.permute.xlu0 %993
        %995 = vrot.lane.b32.xlu0 %v926, 96
        %v996 = vpop.permute.xlu0 %995
        %v999 = vsel %vm796, %v557, %v978
        %v1000 = vsel %vm796, %v558, %v980
        %vm1001 = vcmask 523264
        %v1002 = vsel %vm1001, %v999, %v986
        %v1003 = vsel %vm1001, %v1000, %v988
        %vm1004 = vcmask 785408
        %v1005 = vsel %vm1004, %v1002, %v994
        %v1006 = vsel %vm1004, %v1003, %v996
        %v1007 = vpack.c.bf16 %v1006, %v1005
        %v1008 = vpack.c.bf16 %v974, %v973
        %v1014 = vunpack.c.l.b16 %v510
        %v1015 = vunpack.c.l.b16 %v511
        %v1016 = vunpack.c.l.b16 %v512
        %v1017 = vunpack.c.l.b16 %v513
        %v1018 = vunpack.c.l.b16 %v514
        %v1019 = vpack.c.b16 %v1015, %v1014
        %v1020 = vpack.c.b16 %v1017, %v1016
        %v1021 = vpack.c.b16 %v1018, %v1018
        %vm1024 = vcmask 326656
        %v1026 = vsel %vm1024, %v799, 0
        %vm1028 = vcmask 1043456
        %v1030 = vsel %vm1028, %v1021, 0
        %1032 = vmatprep.subr.bf16.mxu0 0
        %1033 = vmatpush1.bf16.msra.mxu0 0
        %1034 = vmatprep.subr.bf16.mxu0 0
        %1035 = vmatpush1.bf16.msra.mxu0 0
        %1036 = vmatprep.subr.bf16.mxu0 0
        %1037 = vmatpush1.bf16.msra.mxu0 0
        %1038 = vmatprep.subr.bf16.mxu0 0
        %1039 = vmatpush1.bf16.msra.mxu0 0
        %1040 = vmatprep.subr.bf16.mxu0 0
        %1041 = vmatpush1.bf16.msra.mxu0 0
        %1042 = vmatprep.subr.bf16.mxu0 0
        %1043 = vmatpush1.bf16.msra.mxu0 %v1030
        %1044 = vmatprep.subr.bf16.mxu0 0
        %1045 = vmatpush1.bf16.msra.mxu0 %v1020
        %1046 = vmatprep.subr.bf16.mxu0 0
        %1047 = vmatpush1.bf16.msra.mxu0 %v1019
        %1048 = vmatprep.subr.bf16.mxu0 0
        %1049 = vmatpush2.bf16.msra.mxu0 0
        %1050 = vmatprep.subr.bf16.mxu0 0
        %1051 = vmatpush2.bf16.msra.mxu0 0
        %1052 = vmatprep.subr.bf16.mxu0 0
        %1053 = vmatpush2.bf16.msra.mxu0 0
        %1054 = vmatprep.subr.bf16.mxu0 0
        %1055 = vmatpush2.bf16.msra.mxu0 0
        %1056 = vmatprep.subr.bf16.mxu0 0
        %1057 = vmatpush2.bf16.msra.mxu0 0
        %1058 = vmatprep.subr.bf16.mxu0 0
        %1059 = vmatpush2.bf16.msra.mxu0 0
        %1060 = vmatprep.subr.bf16.mxu0 0
        %1061 = vmatpush2.bf16.msra.mxu0 0
        %1062 = vmatprep.subr.bf16.mxu0 0
        %1063 = vmatpush2.bf16.msra.mxu0 0
        %1064 = vmatprep.mubr.bf16.mxu0 0
        %1065 = vmatmul.mubr.bf16.gmra.mxu0 %v1026
        %v1066 = vpop.f32.mrf.mxu0
        %v1067 = vadd.f32 0.0, %v1066
        %v1068 = vpop.f32.mrf.mxu0
        %v1069 = vpop.f32.mrf.mxu0
        %v1070 = vadd.f32 0.0, %v1069
        %v1071 = vpop.f32.mrf.mxu0
        %1072 = vdwg.mxu0
        %v1093 = vunpack.c.l.b16 %v515
        %v1094 = vunpack.c.l.b16 %v516
        %v1095 = vunpack.c.l.b16 %v517
        %v1096 = vunpack.c.l.b16 %v518
        %v1097 = vunpack.c.l.b16 %v519
        %v1098 = vunpack.c.l.b16 %v520
        %v1099 = vunpack.c.l.b16 %v521
        %v1100 = vunpack.c.l.b16 %v522
        %v1101 = vunpack.c.l.b16 %v523
        %v1102 = vunpack.c.l.b16 %v524
        %v1103 = vunpack.c.l.b16 %v525
        %v1104 = vunpack.c.l.b16 %v526
        %v1105 = vunpack.c.l.b16 %v527
        %v1106 = vunpack.c.l.b16 %v528
        %v1107 = vunpack.c.l.b16 %v529
        %v1108 = vunpack.c.l.b16 %v530
        %v1109 = vunpack.c.l.b16 %v531
        %v1110 = vunpack.c.l.b16 %v532
        %v1111 = vunpack.c.l.b16 %v533
        %v1112 = vunpack.c.l.b16 %v534
        %v1113 = vpack.c.b16 %v1094, %v1093
        %v1114 = vpack.c.b16 %v1096, %v1095
        %v1115 = vpack.c.b16 %v1098, %v1097
        %v1116 = vpack.c.b16 %v1100, %v1099
        %v1117 = vpack.c.b16 %v1102, %v1101
        %v1118 = vpack.c.b16 %v1104, %v1103
        %v1119 = vpack.c.b16 %v1106, %v1105
        %v1120 = vpack.c.b16 %v1108, %v1107
        %v1121 = vpack.c.b16 %v1110, %v1109
        %v1122 = vpack.c.b16 %v1112, %v1111
        %v1134 = vsel %vm796, %v1008, 0
        %1136 = vmatprep.subr.bf16.mxu0 0
        %1137 = vmatpush1.bf16.msra.mxu0 %v1120
        %1138 = vmatprep.subr.bf16.mxu0 0
        %1139 = vmatpush1.bf16.msra.mxu0 %v1119
        %1140 = vmatprep.subr.bf16.mxu0 0
        %1141 = vmatpush1.bf16.msra.mxu0 %v1118
        %1142 = vmatprep.subr.bf16.mxu0 0
        %1143 = vmatpush1.bf16.msra.mxu0 %v1117
        %1144 = vmatprep.subr.bf16.mxu0 0
        %1145 = vmatpush1.bf16.msra.mxu0 %v1116
        %1146 = vmatprep.subr.bf16.mxu0 0
        %1147 = vmatpush1.bf16.msra.mxu0 %v1115
        %1148 = vmatprep.subr.bf16.mxu0 0
        %1149 = vmatpush1.bf16.msra.mxu0 %v1114
        %1150 = vmatprep.subr.bf16.mxu0 0
        %1151 = vmatpush1.bf16.msra.mxu0 %v1113
        %1152 = vmatprep.subr.bf16.mxu0 0
        %1153 = vmatpush2.bf16.msra.mxu0 0
        %1154 = vmatprep.subr.bf16.mxu0 0
        %1155 = vmatpush2.bf16.msra.mxu0 0
        %1156 = vmatprep.subr.bf16.mxu0 0
        %1157 = vmatpush2.bf16.msra.mxu0 0
        %1158 = vmatprep.subr.bf16.mxu0 0
        %1159 = vmatpush2.bf16.msra.mxu0 0
        %1160 = vmatprep.subr.bf16.mxu0 0
        %1161 = vmatpush2.bf16.msra.mxu0 0
        %1162 = vmatprep.subr.bf16.mxu0 0
        %1163 = vmatpush2.bf16.msra.mxu0 0
        %1164 = vmatprep.subr.bf16.mxu0 0
        %1165 = vmatpush2.bf16.msra.mxu0 %v1122
        %1166 = vmatprep.subr.bf16.mxu0 0
        %1167 = vmatpush2.bf16.msra.mxu0 %v1121
        %1168 = vmatprep.mubr.bf16.mxu0 %v1134
        %1169 = vmatmul.mubr.bf16.gmra.mxu0 %v1007
        %v1170 = vpop.f32.mrf.mxu0
        %v1171 = vadd.f32 0.0, %v1170
        %v1172 = vpop.f32.mrf.mxu0
        %v1173 = vpop.f32.mrf.mxu0
        %v1174 = vadd.f32 0.0, %v1173
        %v1175 = vpop.f32.mrf.mxu0
        %1176 = vdwg.mxu0
        %v1177 = vadd.f32 %v1067, %v1171
        %v1178 = vadd.f32 %v1070, %v1174
        %v1180 = vlaneseq
        %v1181 = vshrl.u32 %v1180, 7
        %v1182 = vsub.s32 0, %v1181
        %v1183 = vrot.slane %v555, %v1182
        %v1185 = vadd.f32 %v1177, %v1183
        %v1186 = vadd.f32 %v1178, %v1183
        %v1187 = vxor.u32 %v1185, 2147483648
        %v1188 = vxor.u32 %v1186, 2147483648
        %v1189 = vmul.f32 %v1187, 1.442695
        %v1190 = vpow.pop %v1189
        %v1191 = vmul.f32 %v1188, 1.442695
        %v1192 = vpow.pop %v1191
        %v1193 = vadd.f32 %v1190, 1.0
        %v1194 = vadd.f32 %v1192, 1.0
        %v1195 = vrcp.pop %v1193
        %v1196 = vmul.f32 1.0, %v1195
        %v1197 = vrcp.pop %v1194
        %v1198 = vmul.f32 1.0, %v1197
        %v1199 = vmul.f32 %v1196, %v557
        %v1200 = vmul.f32 %v1198, %v558
        %v1201 = vpack.c.bf16 %v1200, %v1199
        %1202 = vmatprep.subr.bf16.mxu0 0
        %1203 = vmatpush1.bf16.msra.mxu0 0
        %1204 = vmatprep.subr.bf16.mxu0 0
        %1205 = vmatpush1.bf16.msra.mxu0 0
        %1206 = vmatprep.subr.bf16.mxu0 0
        %1207 = vmatpush1.bf16.msra.mxu0 0
        %1208 = vmatprep.subr.bf16.mxu0 0
        %1209 = vmatpush1.bf16.msra.mxu0 0
        %1210 = vmatprep.subr.bf16.mxu0 0
        %1211 = vmatpush1.bf16.msra.mxu0 0
        %1212 = vmatprep.subr.bf16.mxu0 0
        %1213 = vmatpush1.bf16.msra.mxu0 0
        %1214 = vmatprep.subr.bf16.mxu0 0
        %1215 = vmatpush1.bf16.msra.mxu0 0
        %1216 = vmatprep.subr.bf16.mxu0 0
        %1217 = vmatpush1.bf16.msra.mxu0 %v1201
        %1218 = vmatprep.subr.bf16.mxu0 0
        %1219 = vmatpush2.bf16.msra.mxu0 0
        %1220 = vmatprep.subr.bf16.mxu0 0
        %1221 = vmatpush2.bf16.msra.mxu0 0
        %1222 = vmatprep.subr.bf16.mxu0 0
        %1223 = vmatpush2.bf16.msra.mxu0 0
        %1224 = vmatprep.subr.bf16.mxu0 0
        %1225 = vmatpush2.bf16.msra.mxu0 0
        %1226 = vmatprep.subr.bf16.mxu0 0
        %1227 = vmatpush2.bf16.msra.mxu0 0
        %1228 = vmatprep.subr.bf16.mxu0 0
        %1229 = vmatpush2.bf16.msra.mxu0 0
        %1230 = vmatprep.subr.bf16.mxu0 0
        %1231 = vmatpush2.bf16.msra.mxu0 0
        %1232 = vmatprep.subr.bf16.mxu0 0
        %1233 = vmatpush2.bf16.msra.mxu0 0
        %1234 = vmatprep.mubr.bf16.mxu0 0
        %1235 = vmatmul.mubr.bf16.gmra.mxu0 %v569
        %v1236 = vpop.f32.mrf.mxu0
        %v1237 = vadd.f32 0.0, %v1236
        %v1238 = vpop.f32.mrf.mxu0
        %v1239 = vpop.f32.mrf.mxu0
        %v1240 = vadd.f32 0.0, %v1239
        %v1241 = vpop.f32.mrf.mxu0
        %1242 = vdwg.mxu0
        %v1243 = vpack.c.bf16 %v1240, %v1237
        %1244 = vmatprep.subr.bf16.mxu0 0
        %1245 = vmatpush1.bf16.msra.mxu0 0
        %1246 = vmatprep.subr.bf16.mxu0 0
        %1247 = vmatpush1.bf16.msra.mxu0 0
        %1248 = vmatprep.subr.bf16.mxu0 0
        %1249 = vmatpush1.bf16.msra.mxu0 0
        %1250 = vmatprep.subr.bf16.mxu0 0
        %1251 = vmatpush1.bf16.msra.mxu0 0
        %1252 = vmatprep.subr.bf16.mxu0 0
        %1253 = vmatpush1.bf16.msra.mxu0 0
        %1254 = vmatprep.subr.bf16.mxu0 0
        %1255 = vmatpush1.bf16.msra.mxu0 0
        %1256 = vmatprep.subr.bf16.mxu0 0
        %1257 = vmatpush1.bf16.msra.mxu0 0
        %1258 = vmatprep.subr.bf16.mxu0 0
        %1259 = vmatpush1.bf16.msra.mxu0 %v1243
        %1260 = vmatprep.subr.bf16.mxu0 0
        %1261 = vmatpush2.bf16.msra.mxu0 0
        %1262 = vmatprep.subr.bf16.mxu0 0
        %1263 = vmatpush2.bf16.msra.mxu0 0
        %1264 = vmatprep.subr.bf16.mxu0 0
        %1265 = vmatpush2.bf16.msra.mxu0 0
        %1266 = vmatprep.subr.bf16.mxu0 0
        %1267 = vmatpush2.bf16.msra.mxu0 0
        %1268 = vmatprep.subr.bf16.mxu0 0
        %1269 = vmatpush2.bf16.msra.mxu0 0
        %1270 = vmatprep.subr.bf16.mxu0 0
        %1271 = vmatpush2.bf16.msra.mxu0 0
        %1272 = vmatprep.subr.bf16.mxu0 0
        %1273 = vmatpush2.bf16.msra.mxu0 0
        %1274 = vmatprep.subr.bf16.mxu0 0
        %1275 = vmatpush2.bf16.msra.mxu0 0
        %1276 = vmatprep.mubr.bf16.mxu0 0
        %1277 = vmatmul.mubr.bf16.gmra.mxu0 %v569
        %v1278 = vpop.f32.mrf.mxu0
        %v1279 = vadd.f32 0.0, %v1278
        %v1280 = vpop.f32.mrf.mxu0
        %v1281 = vpop.f32.mrf.mxu0
        %v1282 = vadd.f32 0.0, %v1281
        %v1283 = vpop.f32.mrf.mxu0
        %1284 = vdwg.mxu0
        %v1285 = vmul.f32 %v1279, 2.0
        %v1286 = vmul.f32 %v1282, 2.0
        %v1287 = vsub.f32 %v1285, %v1199
        %v1288 = vsub.f32 %v1286, %v1200
        %1289 = vmatprep.subr.bf16.mxu0 0
        %1290 = vmatpush1.bf16.msra.mxu0 0
        %1291 = vmatprep.subr.bf16.mxu0 0
        %1292 = vmatpush1.bf16.msra.mxu0 0
        %1293 = vmatprep.subr.bf16.mxu0 0
        %1294 = vmatpush1.bf16.msra.mxu0 0
        %1295 = vmatprep.subr.bf16.mxu0 0
        %1296 = vmatpush1.bf16.msra.mxu0 0
        %1297 = vmatprep.subr.bf16.mxu0 0
        %1298 = vmatpush1.bf16.msra.mxu0 0
        %1299 = vmatprep.subr.bf16.mxu0 0
        %1300 = vmatpush1.bf16.msra.mxu0 0
        %1301 = vmatprep.subr.bf16.mxu0 0
        %1302 = vmatpush1.bf16.msra.mxu0 0
        %1303 = vmatprep.subr.bf16.mxu0 0
        %1304 = vmatpush1.bf16.msra.mxu0 %v1201
        %1305 = vmatprep.subr.bf16.mxu0 0
        %1306 = vmatpush2.bf16.msra.mxu0 0
        %1307 = vmatprep.subr.bf16.mxu0 0
        %1308 = vmatpush2.bf16.msra.mxu0 0
        %1309 = vmatprep.subr.bf16.mxu0 0
        %1310 = vmatpush2.bf16.msra.mxu0 0
        %1311 = vmatprep.subr.bf16.mxu0 0
        %1312 = vmatpush2.bf16.msra.mxu0 0
        %1313 = vmatprep.subr.bf16.mxu0 0
        %1314 = vmatpush2.bf16.msra.mxu0 0
        %1315 = vmatprep.subr.bf16.mxu0 0
        %1316 = vmatpush2.bf16.msra.mxu0 0
        %1317 = vmatprep.subr.bf16.mxu0 0
        %1318 = vmatpush2.bf16.msra.mxu0 0
        %1319 = vmatprep.subr.bf16.mxu0 0
        %1320 = vmatpush2.bf16.msra.mxu0 0
        %1321 = vmatprep.mubr.bf16.mxu0 0
        %1322 = vmatmul.mubr.bf16.gmra.mxu0 %v667
        %v1323 = vpop.f32.mrf.mxu0
        %v1324 = vadd.f32 0.0, %v1323
        %v1325 = vpop.f32.mrf.mxu0
        %v1326 = vpop.f32.mrf.mxu0
        %v1327 = vadd.f32 0.0, %v1326
        %v1328 = vpop.f32.mrf.mxu0
        %1329 = vdwg.mxu0
        %v1330 = vpack.c.bf16 %v1327, %v1324
        %1331 = vmatprep.subr.bf16.mxu0 0
        %1332 = vmatpush1.bf16.msra.mxu0 0
        %1333 = vmatprep.subr.bf16.mxu0 0
        %1334 = vmatpush1.bf16.msra.mxu0 0
        %1335 = vmatprep.subr.bf16.mxu0 0
        %1336 = vmatpush1.bf16.msra.mxu0 0
        %1337 = vmatprep.subr.bf16.mxu0 0
        %1338 = vmatpush1.bf16.msra.mxu0 0
        %1339 = vmatprep.subr.bf16.mxu0 0
        %1340 = vmatpush1.bf16.msra.mxu0 0
        %1341 = vmatprep.subr.bf16.mxu0 0
        %1342 = vmatpush1.bf16.msra.mxu0 0
        %1343 = vmatprep.subr.bf16.mxu0 0
        %1344 = vmatpush1.bf16.msra.mxu0 0
        %1345 = vmatprep.subr.bf16.mxu0 0
        %1346 = vmatpush1.bf16.msra.mxu0 %v1330
        %1347 = vmatprep.subr.bf16.mxu0 0
        %1348 = vmatpush2.bf16.msra.mxu0 0
        %1349 = vmatprep.subr.bf16.mxu0 0
        %1350 = vmatpush2.bf16.msra.mxu0 0
        %1351 = vmatprep.subr.bf16.mxu0 0
        %1352 = vmatpush2.bf16.msra.mxu0 0
        %1353 = vmatprep.subr.bf16.mxu0 0
        %1354 = vmatpush2.bf16.msra.mxu0 0
        %1355 = vmatprep.subr.bf16.mxu0 0
        %1356 = vmatpush2.bf16.msra.mxu0 0
        %1357 = vmatprep.subr.bf16.mxu0 0
        %1358 = vmatpush2.bf16.msra.mxu0 0
        %1359 = vmatprep.subr.bf16.mxu0 0
        %1360 = vmatpush2.bf16.msra.mxu0 0
        %1361 = vmatprep.subr.bf16.mxu0 0
        %1362 = vmatpush2.bf16.msra.mxu0 0
        %1363 = vmatprep.mubr.bf16.mxu0 0
        %1364 = vmatmul.mubr.bf16.gmra.mxu0 %v667
        %v1365 = vpop.f32.mrf.mxu0
        %v1366 = vadd.f32 0.0, %v1365
        %v1367 = vpop.f32.mrf.mxu0
        %v1368 = vpop.f32.mrf.mxu0
        %v1369 = vadd.f32 0.0, %v1368
        %v1370 = vpop.f32.mrf.mxu0
        %1371 = vdwg.mxu0
        %v1372 = vmul.f32 %v1366, 2.0
        %v1373 = vmul.f32 %v1369, 2.0
        %v1374 = vsub.f32 %v1372, %v1199
        %v1375 = vsub.f32 %v1373, %v1200
        %1378 = vrot.lane.b32.xlu0 %v1237, 32
        %v1379 = vpop.permute.xlu0 %1378
        %1380 = vrot.lane.b32.xlu0 %v1240, 32
        %v1381 = vpop.permute.xlu0 %1380
        %1386 = vrot.lane.b32.xlu0 %v1287, 64
        %v1387 = vpop.permute.xlu0 %1386
        %1388 = vrot.lane.b32.xlu0 %v1288, 64
        %v1389 = vpop.permute.xlu0 %1388
        %1394 = vrot.lane.b32.xlu0 %v1324, 96
        %v1395 = vpop.permute.xlu0 %1394
        %1396 = vrot.lane.b32.xlu0 %v1327, 96
        %v1397 = vpop.permute.xlu0 %1396
        %v1400 = vsel %vm796, %v1199, %v1379
        %v1401 = vsel %vm796, %v1200, %v1381
        %v1402 = vsel %vm1001, %v1400, %v1387
        %v1403 = vsel %vm1001, %v1401, %v1389
        %v1404 = vsel %vm1004, %v1402, %v1395
        %v1405 = vsel %vm1004, %v1403, %v1397
        %v1406 = vpack.c.bf16 %v1405, %v1404
        %v1407 = vpack.c.bf16 %v1375, %v1374
        %v1428 = vunpack.c.l.b16 %v535
        %v1429 = vunpack.c.l.b16 %v536
        %v1430 = vunpack.c.l.b16 %v537
        %v1431 = vunpack.c.l.b16 %v538
        %v1432 = vunpack.c.l.b16 %v539
        %v1433 = vunpack.c.l.b16 %v540
        %v1434 = vunpack.c.l.b16 %v541
        %v1435 = vunpack.c.l.b16 %v542
        %v1436 = vunpack.c.l.b16 %v543
        %v1437 = vunpack.c.l.b16 %v544
        %v1438 = vunpack.c.l.b16 %v545
        %v1439 = vunpack.c.l.b16 %v546
        %v1440 = vunpack.c.l.b16 %v547
        %v1441 = vunpack.c.l.b16 %v548
        %v1442 = vunpack.c.l.b16 %v549
        %v1443 = vunpack.c.l.b16 %v550
        %v1444 = vunpack.c.l.b16 %v551
        %v1445 = vunpack.c.l.b16 %v552
        %v1446 = vunpack.c.l.b16 %v553
        %v1447 = vunpack.c.l.b16 %v554
        %v1448 = vpack.c.b16 %v1429, %v1428
        %v1449 = vpack.c.b16 %v1431, %v1430
        %v1450 = vpack.c.b16 %v1433, %v1432
        %v1451 = vpack.c.b16 %v1435, %v1434
        %v1452 = vpack.c.b16 %v1437, %v1436
        %v1453 = vpack.c.b16 %v1439, %v1438
        %v1454 = vpack.c.b16 %v1441, %v1440
        %v1455 = vpack.c.b16 %v1443, %v1442
        %v1456 = vpack.c.b16 %v1445, %v1444
        %v1457 = vpack.c.b16 %v1447, %v1446
        %v1469 = vsel %vm796, %v1407, 0
        %1471 = vmatprep.subr.bf16.mxu0 0
        %1472 = vmatpush1.bf16.msra.mxu0 %v1455
        %1473 = vmatprep.subr.bf16.mxu0 0
        %1474 = vmatpush1.bf16.msra.mxu0 %v1454
        %1475 = vmatprep.subr.bf16.mxu0 0
        %1476 = vmatpush1.bf16.msra.mxu0 %v1453
        %1477 = vmatprep.subr.bf16.mxu0 0
        %1478 = vmatpush1.bf16.msra.mxu0 %v1452
        %1479 = vmatprep.subr.bf16.mxu0 0
        %1480 = vmatpush1.bf16.msra.mxu0 %v1451
        %1481 = vmatprep.subr.bf16.mxu0 0
        %1482 = vmatpush1.bf16.msra.mxu0 %v1450
        %1483 = vmatprep.subr.bf16.mxu0 0
        %1484 = vmatpush1.bf16.msra.mxu0 %v1449
        %1485 = vmatprep.subr.bf16.mxu0 0
        %1486 = vmatpush1.bf16.msra.mxu0 %v1448
        %1487 = vmatprep.subr.bf16.mxu0 0
        %1488 = vmatpush2.bf16.msra.mxu0 0
        %1489 = vmatprep.subr.bf16.mxu0 0
        %1490 = vmatpush2.bf16.msra.mxu0 0
        %1491 = vmatprep.subr.bf16.mxu0 0
        %1492 = vmatpush2.bf16.msra.mxu0 0
        %1493 = vmatprep.subr.bf16.mxu0 0
        %1494 = vmatpush2.bf16.msra.mxu0 0
        %1495 = vmatprep.subr.bf16.mxu0 0
        %1496 = vmatpush2.bf16.msra.mxu0 0
        %1497 = vmatprep.subr.bf16.mxu0 0
        %1498 = vmatpush2.bf16.msra.mxu0 0
        %1499 = vmatprep.subr.bf16.mxu0 0
        %1500 = vmatpush2.bf16.msra.mxu0 %v1457
        %1501 = vmatprep.subr.bf16.mxu0 0
        %1502 = vmatpush2.bf16.msra.mxu0 %v1456
        %1503 = vmatprep.mubr.bf16.mxu0 %v1469
        %1504 = vmatmul.mubr.bf16.gmra.mxu0 %v1406
        %v1505 = vpop.f32.mrf.mxu0
        %v1506 = vadd.f32 0.0, %v1505
        %v1507 = vpop.f32.mrf.mxu0
        %v1508 = vpop.f32.mrf.mxu0
        %v1509 = vadd.f32 0.0, %v1508
        %v1510 = vpop.f32.mrf.mxu0
        %1511 = vdwg.mxu0
        %1514 = vrot.lane.b32.xlu0 %v1506, 64
        %v1515 = vpop.permute.xlu0 %1514
        %1516 = vrot.lane.b32.xlu0 %v1509, 64
        %v1517 = vpop.permute.xlu0 %1516
        %v1520 = vadd.f32 %v1067, %v1515
        %v1521 = vadd.f32 %v1070, %v1517
        %v1523 = vlaneseq
        %v1524 = vshrl.u32 %v1523, 7
        %v1525 = vsub.s32 0, %v1524
        %v1526 = vrot.slane %v556, %v1525
        %1527 = vrot.lane.b32.xlu0 %v1526, 64
        %v1528 = vpop.permute.xlu0 %1527
        %v1530 = vadd.f32 %v1520, %v1528
        %v1531 = vadd.f32 %v1521, %v1528
        %v1532 = vtanh.pop %v1530
        %v1533 = vtanh.pop %v1531
        %1536 = vrot.lane.b32.xlu0 %v557, 32
        %v1537 = vpop.permute.xlu0 %1536
        %1538 = vrot.lane.b32.xlu0 %v558, 32
        %v1539 = vpop.permute.xlu0 %1538
        %v1542 = vmul.f32 %v1196, %v1537
        %v1543 = vmul.f32 %v1198, %v1539
        %v1544 = vsub.f32 1.0, %v1196
        %v1545 = vsub.f32 1.0, %v1198
        %1548 = vrot.lane.b32.xlu0 %v1532, 96
        %v1549 = vpop.permute.xlu0 %1548
        %1550 = vrot.lane.b32.xlu0 %v1533, 96
        %v1551 = vpop.permute.xlu0 %1550
        %v1554 = vmul.f32 %v1544, %v1549
        %v1555 = vmul.f32 %v1545, %v1551
        %v1556 = vadd.f32 %v1542, %v1554
        %v1557 = vadd.f32 %v1543, %v1555
        %1560 = vrot.lane.b32.xlu0 %v1556, 96
        %v1561 = vpop.permute.xlu0 %1560
        %1562 = vrot.lane.b32.xlu0 %v1557, 96
        %v1563 = vpop.permute.xlu0 %1562
        %1566 = vst.msk [vmem:[%s501] sm:$0xff] %vm796, %v1561
        %1567 = vst.msk [vmem:[%s501 + $0x8] sm:$0xff] %vm796, %v1563
        %v1568 = vld [vmem:[%s8] sm:$0xf]
        %v1569 = vld [vmem:[%s8 + $0x4] sm:$0xf]
        %v1570 = vld [vmem:[%s8 + $0x8] sm:$0xf]
        %v1571 = vld [vmem:[%s8 + $0xc] sm:$0xf]
        %v1572 = vld [vmem:[%s8 + $0x10] sm:$0xf]
        %v1573 = vld [vmem:[%s8 + $0x14] sm:$0xf]
        %v1574 = vld [vmem:[%s8 + $0x18] sm:$0xf]
        %v1575 = vld [vmem:[%s8 + $0x1c] sm:$0xf]
        %v1576 = vld [vmem:[%s8 + $0x20] sm:$0xf]
        %v1577 = vld [vmem:[%s8 + $0x24] sm:$0xf]
        %v1578 = vld [vmem:[%s8 + $0x28] sm:$0xf]
        %v1579 = vld [vmem:[%s8 + $0x2c] sm:$0xf]
        %v1580 = vld [vmem:[%s8 + $0x30] sm:$0xf]
        %v1581 = vld [vmem:[%s8 + $0x34] sm:$0xf]
        %v1582 = vld [vmem:[%s8 + $0x38] sm:$0xf]
        %v1583 = vld [vmem:[%s8 + $0x3c] sm:$0xf]
        %v1584 = vld [vmem:[%s8 + $0x40] sm:$0xf]
        %v1585 = vld [vmem:[%s8 + $0x44] sm:$0xf]
        %v1586 = vld [vmem:[%s8 + $0x48] sm:$0xf]
        %v1587 = vld [vmem:[%s8 + $0x4c] sm:$0xf]
        %v1588 = vld [vmem:[%s9] sm:$0xf]
        %v1589 = vld [vmem:[%s9 + $0x4] sm:$0xf]
        %v1590 = vld [vmem:[%s9 + $0x8] sm:$0xf]
        %v1591 = vld [vmem:[%s9 + $0xc] sm:$0xf]
        %v1592 = vld [vmem:[%s9 + $0x10] sm:$0xf]
        %v1593 = vld [vmem:[%s9 + $0x14] sm:$0xf]
        %v1594 = vld [vmem:[%s9 + $0x18] sm:$0xf]
        %v1595 = vld [vmem:[%s9 + $0x1c] sm:$0xf]
        %v1596 = vld [vmem:[%s9 + $0x20] sm:$0xf]
        %v1597 = vld [vmem:[%s9 + $0x24] sm:$0xf]
        %v1598 = vld [vmem:[%s9 + $0x28] sm:$0xf]
        %v1599 = vld [vmem:[%s9 + $0x2c] sm:$0xf]
        %v1600 = vld [vmem:[%s9 + $0x30] sm:$0xf]
        %v1601 = vld [vmem:[%s9 + $0x34] sm:$0xf]
        %v1602 = vld [vmem:[%s9 + $0x38] sm:$0xf]
        %v1603 = vld [vmem:[%s9 + $0x3c] sm:$0xf]
        %v1604 = vld [vmem:[%s9 + $0x40] sm:$0xf]
        %v1605 = vld [vmem:[%s9 + $0x44] sm:$0xf]
        %v1606 = vld [vmem:[%s9 + $0x48] sm:$0xf]
        %v1607 = vld [vmem:[%s9 + $0x4c] sm:$0xf]
        %v1608 = vld [vmem:[%s10] sm:$0xf]
        %v1609 = vld [vmem:[%s10 + $0x4] sm:$0xf]
        %v1610 = vld [vmem:[%s10 + $0x8] sm:$0xf]
        %v1611 = vld [vmem:[%s10 + $0xc] sm:$0xf]
        %v1612 = vld [vmem:[%s10 + $0x10] sm:$0xf]
        %v1613 = vld [vmem:[%s10 + $0x14] sm:$0xf]
        %v1614 = vld [vmem:[%s10 + $0x18] sm:$0xf]
        %v1615 = vld [vmem:[%s10 + $0x1c] sm:$0xf]
        %v1616 = vld [vmem:[%s10 + $0x20] sm:$0xf]
        %v1617 = vld [vmem:[%s10 + $0x24] sm:$0xf]
        %v1618 = vld [vmem:[%s10 + $0x28] sm:$0xf]
        %v1619 = vld [vmem:[%s10 + $0x2c] sm:$0xf]
        %v1620 = vld [vmem:[%s10 + $0x30] sm:$0xf]
        %v1621 = vld [vmem:[%s10 + $0x34] sm:$0xf]
        %v1622 = vld [vmem:[%s10 + $0x38] sm:$0xf]
        %v1623 = vld [vmem:[%s10 + $0x3c] sm:$0xf]
        %v1624 = vld [vmem:[%s10 + $0x40] sm:$0xf]
        %v1625 = vld [vmem:[%s10 + $0x44] sm:$0xf]
        %v1626 = vld [vmem:[%s10 + $0x48] sm:$0xf]
        %v1627 = vld [vmem:[%s10 + $0x4c] sm:$0xf]
        %v1628 = vld [vmem:[%s11] sm:$0x1]
        %v1629 = vld [vmem:[%s12] sm:$0x1]
        %s1630 = scalar_lea.vmem %s456, 16 [#allocation2]
        %v1631 = vld [vmem:[%s1630] sm:$0xff]
        %v1632 = vld [vmem:[%s1630 + $0x8] sm:$0xff]
        %v1633 = vld [vmem:[%s2] sm:$0xf]
        %v1634 = vld [vmem:[%s2 + $0x4] sm:$0xf]
        %v1635 = vpack.c.bf16 %v1557, %v1556
        %v1638 = vunpack.c.l.b16 %v1633
        %v1639 = vunpack.c.l.b16 %v1634
        %v1640 = vpack.c.b16 %v1639, %v1638
        %1642 = vrot.lane.b32.xlu0 %v1635, 96
        %v1643 = vpop.permute.xlu0 %1642
        %v1646 = vsel %vm567, %v1640, 0
        %1648 = vmatprep.subr.bf16.mxu0 0
        %1649 = vmatpush1.bf16.msra.mxu0 0
        %1650 = vmatprep.subr.bf16.mxu0 0
        %1651 = vmatpush1.bf16.msra.mxu0 0
        %1652 = vmatprep.subr.bf16.mxu0 0
        %1653 = vmatpush1.bf16.msra.mxu0 0
        %1654 = vmatprep.subr.bf16.mxu0 0
        %1655 = vmatpush1.bf16.msra.mxu0 0
        %1656 = vmatprep.subr.bf16.mxu0 0
        %1657 = vmatpush1.bf16.msra.mxu0 0
        %1658 = vmatprep.subr.bf16.mxu0 0
        %1659 = vmatpush1.bf16.msra.mxu0 0
        %1660 = vmatprep.subr.bf16.mxu0 0
        %1661 = vmatpush1.bf16.msra.mxu0 0
        %1662 = vmatprep.subr.bf16.mxu0 0
        %1663 = vmatpush1.bf16.msra.mxu0 %v1643
        %1664 = vmatprep.subr.bf16.mxu0 0
        %1665 = vmatpush2.bf16.msra.mxu0 0
        %1666 = vmatprep.subr.bf16.mxu0 0
        %1667 = vmatpush2.bf16.msra.mxu0 0
        %1668 = vmatprep.subr.bf16.mxu0 0
        %1669 = vmatpush2.bf16.msra.mxu0 0
        %1670 = vmatprep.subr.bf16.mxu0 0
        %1671 = vmatpush2.bf16.msra.mxu0 0
        %1672 = vmatprep.subr.bf16.mxu0 0
        %1673 = vmatpush2.bf16.msra.mxu0 0
        %1674 = vmatprep.subr.bf16.mxu0 0
        %1675 = vmatpush2.bf16.msra.mxu0 0
        %1676 = vmatprep.subr.bf16.mxu0 0
        %1677 = vmatpush2.bf16.msra.mxu0 0
        %1678 = vmatprep.subr.bf16.mxu0 0
        %1679 = vmatpush2.bf16.msra.mxu0 0
        %1680 = vmatprep.mubr.bf16.mxu0 0
        %1681 = vmatmul.mubr.bf16.gmra.mxu0 %v1646
        %v1682 = vpop.f32.mrf.mxu0
        %v1683 = vadd.f32 0.0, %v1682
        %v1684 = vpop.f32.mrf.mxu0
        %v1685 = vpop.f32.mrf.mxu0
        %v1686 = vadd.f32 0.0, %v1685
        %v1687 = vpop.f32.mrf.mxu0
        %1688 = vdwg.mxu0
        %v1689 = vpack.c.bf16 %v1686, %v1683
        %1690 = vmatprep.subr.bf16.mxu0 0
        %1691 = vmatpush1.bf16.msra.mxu0 0
        %1692 = vmatprep.subr.bf16.mxu0 0
        %1693 = vmatpush1.bf16.msra.mxu0 0
        %1694 = vmatprep.subr.bf16.mxu0 0
        %1695 = vmatpush1.bf16.msra.mxu0 0
        %1696 = vmatprep.subr.bf16.mxu0 0
        %1697 = vmatpush1.bf16.msra.mxu0 0
        %1698 = vmatprep.subr.bf16.mxu0 0
        %1699 = vmatpush1.bf16.msra.mxu0 0
        %1700 = vmatprep.subr.bf16.mxu0 0
        %1701 = vmatpush1.bf16.msra.mxu0 0
        %1702 = vmatprep.subr.bf16.mxu0 0
        %1703 = vmatpush1.bf16.msra.mxu0 0
        %1704 = vmatprep.subr.bf16.mxu0 0
        %1705 = vmatpush1.bf16.msra.mxu0 %v1689
        %1706 = vmatprep.subr.bf16.mxu0 0
        %1707 = vmatpush2.bf16.msra.mxu0 0
        %1708 = vmatprep.subr.bf16.mxu0 0
        %1709 = vmatpush2.bf16.msra.mxu0 0
        %1710 = vmatprep.subr.bf16.mxu0 0
        %1711 = vmatpush2.bf16.msra.mxu0 0
        %1712 = vmatprep.subr.bf16.mxu0 0
        %1713 = vmatpush2.bf16.msra.mxu0 0
        %1714 = vmatprep.subr.bf16.mxu0 0
        %1715 = vmatpush2.bf16.msra.mxu0 0
        %1716 = vmatprep.subr.bf16.mxu0 0
        %1717 = vmatpush2.bf16.msra.mxu0 0
        %1718 = vmatprep.subr.bf16.mxu0 0
        %1719 = vmatpush2.bf16.msra.mxu0 0
        %1720 = vmatprep.subr.bf16.mxu0 0
        %1721 = vmatpush2.bf16.msra.mxu0 0
        %1722 = vmatprep.mubr.bf16.mxu0 0
        %1723 = vmatmul.mubr.bf16.gmra.mxu0 %v1646
        %v1724 = vpop.f32.mrf.mxu0
        %v1725 = vadd.f32 0.0, %v1724
        %v1726 = vpop.f32.mrf.mxu0
        %v1727 = vpop.f32.mrf.mxu0
        %v1728 = vadd.f32 0.0, %v1727
        %v1729 = vpop.f32.mrf.mxu0
        %1730 = vdwg.mxu0
        %v1731 = vmul.f32 %v1725, 2.0
        %v1732 = vmul.f32 %v1728, 2.0
        %v1733 = vsub.f32 %v1731, %v1561
        %v1734 = vsub.f32 %v1732, %v1563
        %v1735 = vld [vmem:[%s658] sm:$0xf]
        %v1736 = vld [vmem:[%s658 + $0x4] sm:$0xf]
        %v1739 = vunpack.c.l.b16 %v1735
        %v1740 = vunpack.c.l.b16 %v1736
        %v1741 = vpack.c.b16 %v1740, %v1739
        %v1743 = vsel %vm567, %v1741, 0
        %1745 = vmatprep.subr.bf16.mxu0 0
        %1746 = vmatpush1.bf16.msra.mxu0 0
        %1747 = vmatprep.subr.bf16.mxu0 0
        %1748 = vmatpush1.bf16.msra.mxu0 0
        %1749 = vmatprep.subr.bf16.mxu0 0
        %1750 = vmatpush1.bf16.msra.mxu0 0
        %1751 = vmatprep.subr.bf16.mxu0 0
        %1752 = vmatpush1.bf16.msra.mxu0 0
        %1753 = vmatprep.subr.bf16.mxu0 0
        %1754 = vmatpush1.bf16.msra.mxu0 0
        %1755 = vmatprep.subr.bf16.mxu0 0
        %1756 = vmatpush1.bf16.msra.mxu0 0
        %1757 = vmatprep.subr.bf16.mxu0 0
        %1758 = vmatpush1.bf16.msra.mxu0 0
        %1759 = vmatprep.subr.bf16.mxu0 0
        %1760 = vmatpush1.bf16.msra.mxu0 %v1643
        %1761 = vmatprep.subr.bf16.mxu0 0
        %1762 = vmatpush2.bf16.msra.mxu0 0
        %1763 = vmatprep.subr.bf16.mxu0 0
        %1764 = vmatpush2.bf16.msra.mxu0 0
        %1765 = vmatprep.subr.bf16.mxu0 0
        %1766 = vmatpush2.bf16.msra.mxu0 0
        %1767 = vmatprep.subr.bf16.mxu0 0
        %1768 = vmatpush2.bf16.msra.mxu0 0
        %1769 = vmatprep.subr.bf16.mxu0 0
        %1770 = vmatpush2.bf16.msra.mxu0 0
        %1771 = vmatprep.subr.bf16.mxu0 0
        %1772 = vmatpush2.bf16.msra.mxu0 0
        %1773 = vmatprep.subr.bf16.mxu0 0
        %1774 = vmatpush2.bf16.msra.mxu0 0
        %1775 = vmatprep.subr.bf16.mxu0 0
        %1776 = vmatpush2.bf16.msra.mxu0 0
        %1777 = vmatprep.mubr.bf16.mxu0 0
        %1778 = vmatmul.mubr.bf16.gmra.mxu0 %v1743
        %v1779 = vpop.f32.mrf.mxu0
        %v1780 = vadd.f32 0.0, %v1779
        %v1781 = vpop.f32.mrf.mxu0
        %v1782 = vpop.f32.mrf.mxu0
        %v1783 = vadd.f32 0.0, %v1782
        %v1784 = vpop.f32.mrf.mxu0
        %1785 = vdwg.mxu0
        %v1786 = vpack.c.bf16 %v1783, %v1780
        %1787 = vmatprep.subr.bf16.mxu0 0
        %1788 = vmatpush1.bf16.msra.mxu0 0
        %1789 = vmatprep.subr.bf16.mxu0 0
        %1790 = vmatpush1.bf16.msra.mxu0 0
        %1791 = vmatprep.subr.bf16.mxu0 0
        %1792 = vmatpush1.bf16.msra.mxu0 0
        %1793 = vmatprep.subr.bf16.mxu0 0
        %1794 = vmatpush1.bf16.msra.mxu0 0
        %1795 = vmatprep.subr.bf16.mxu0 0
        %1796 = vmatpush1.bf16.msra.mxu0 0
        %1797 = vmatprep.subr.bf16.mxu0 0
        %1798 = vmatpush1.bf16.msra.mxu0 0
        %1799 = vmatprep.subr.bf16.mxu0 0
        %1800 = vmatpush1.bf16.msra.mxu0 0
        %1801 = vmatprep.subr.bf16.mxu0 0
        %1802 = vmatpush1.bf16.msra.mxu0 %v1786
        %1803 = vmatprep.subr.bf16.mxu0 0
        %1804 = vmatpush2.bf16.msra.mxu0 0
        %1805 = vmatprep.subr.bf16.mxu0 0
        %1806 = vmatpush2.bf16.msra.mxu0 0
        %1807 = vmatprep.subr.bf16.mxu0 0
        %1808 = vmatpush2.bf16.msra.mxu0 0
        %1809 = vmatprep.subr.bf16.mxu0 0
        %1810 = vmatpush2.bf16.msra.mxu0 0
        %1811 = vmatprep.subr.bf16.mxu0 0
        %1812 = vmatpush2.bf16.msra.mxu0 0
        %1813 = vmatprep.subr.bf16.mxu0 0
        %1814 = vmatpush2.bf16.msra.mxu0 0
        %1815 = vmatprep.subr.bf16.mxu0 0
        %1816 = vmatpush2.bf16.msra.mxu0 0
        %1817 = vmatprep.subr.bf16.mxu0 0
        %1818 = vmatpush2.bf16.msra.mxu0 0
        %1819 = vmatprep.mubr.bf16.mxu0 0
        %1820 = vmatmul.mubr.bf16.gmra.mxu0 %v1743
        %v1821 = vpop.f32.mrf.mxu0
        %v1822 = vadd.f32 0.0, %v1821
        %v1823 = vpop.f32.mrf.mxu0
        %v1824 = vpop.f32.mrf.mxu0
        %v1825 = vadd.f32 0.0, %v1824
        %v1826 = vpop.f32.mrf.mxu0
        %1827 = vdwg.mxu0
        %v1828 = vmul.f32 %v1822, 2.0
        %v1829 = vmul.f32 %v1825, 2.0
        %v1830 = vsub.f32 %v1828, %v1561
        %v1831 = vsub.f32 %v1829, %v1563
        %1834 = vrot.lane.b32.xlu0 %v1683, 32
        %v1835 = vpop.permute.xlu0 %1834
        %1836 = vrot.lane.b32.xlu0 %v1686, 32
        %v1837 = vpop.permute.xlu0 %1836
        %1842 = vrot.lane.b32.xlu0 %v1733, 64
        %v1843 = vpop.permute.xlu0 %1842
        %1844 = vrot.lane.b32.xlu0 %v1734, 64
        %v1845 = vpop.permute.xlu0 %1844
        %1850 = vrot.lane.b32.xlu0 %v1780, 96
        %v1851 = vpop.permute.xlu0 %1850
        %1852 = vrot.lane.b32.xlu0 %v1783, 96
        %v1853 = vpop.permute.xlu0 %1852
        %v1856 = vsel %vm796, %v1561, %v1835
        %v1857 = vsel %vm796, %v1563, %v1837
        %v1858 = vsel %vm1001, %v1856, %v1843
        %v1859 = vsel %vm1001, %v1857, %v1845
        %v1860 = vsel %vm1004, %v1858, %v1851
        %v1861 = vsel %vm1004, %v1859, %v1853
        %v1862 = vpack.c.bf16 %v1861, %v1860
        %v1863 = vpack.c.bf16 %v1831, %v1830
        %v1864 = vpack.c.bf16 %v1632, %v1631
        %1865 = vmatprep.subr.bf16.mxu0 0
        %1866 = vmatpush1.bf16.msra.mxu0 0
        %1867 = vmatprep.subr.bf16.mxu0 0
        %1868 = vmatpush1.bf16.msra.mxu0 0
        %1869 = vmatprep.subr.bf16.mxu0 0
        %1870 = vmatpush1.bf16.msra.mxu0 0
        %1871 = vmatprep.subr.bf16.mxu0 0
        %1872 = vmatpush1.bf16.msra.mxu0 0
        %1873 = vmatprep.subr.bf16.mxu0 0
        %1874 = vmatpush1.bf16.msra.mxu0 0
        %1875 = vmatprep.subr.bf16.mxu0 0
        %1876 = vmatpush1.bf16.msra.mxu0 0
        %1877 = vmatprep.subr.bf16.mxu0 0
        %1878 = vmatpush1.bf16.msra.mxu0 0
        %1879 = vmatprep.subr.bf16.mxu0 0
        %1880 = vmatpush1.bf16.msra.mxu0 %v1864
        %1881 = vmatprep.subr.bf16.mxu0 0
        %1882 = vmatpush2.bf16.msra.mxu0 0
        %1883 = vmatprep.subr.bf16.mxu0 0
        %1884 = vmatpush2.bf16.msra.mxu0 0
        %1885 = vmatprep.subr.bf16.mxu0 0
        %1886 = vmatpush2.bf16.msra.mxu0 0
        %1887 = vmatprep.subr.bf16.mxu0 0
        %1888 = vmatpush2.bf16.msra.mxu0 0
        %1889 = vmatprep.subr.bf16.mxu0 0
        %1890 = vmatpush2.bf16.msra.mxu0 0
        %1891 = vmatprep.subr.bf16.mxu0 0
        %1892 = vmatpush2.bf16.msra.mxu0 0
        %1893 = vmatprep.subr.bf16.mxu0 0
        %1894 = vmatpush2.bf16.msra.mxu0 0
        %1895 = vmatprep.subr.bf16.mxu0 0
        %1896 = vmatpush2.bf16.msra.mxu0 0
        %1897 = vmatprep.mubr.bf16.mxu0 0
        %1898 = vmatmul.mubr.bf16.gmra.mxu0 %v1646
        %v1899 = vpop.f32.mrf.mxu0
        %v1900 = vadd.f32 0.0, %v1899
        %v1901 = vpop.f32.mrf.mxu0
        %v1902 = vpop.f32.mrf.mxu0
        %v1903 = vadd.f32 0.0, %v1902
        %v1904 = vpop.f32.mrf.mxu0
        %1905 = vdwg.mxu0
        %v1906 = vpack.c.bf16 %v1903, %v1900
        %1907 = vmatprep.subr.bf16.mxu0 0
        %1908 = vmatpush1.bf16.msra.mxu0 0
        %1909 = vmatprep.subr.bf16.mxu0 0
        %1910 = vmatpush1.bf16.msra.mxu0 0
        %1911 = vmatprep.subr.bf16.mxu0 0
        %1912 = vmatpush1.bf16.msra.mxu0 0
        %1913 = vmatprep.subr.bf16.mxu0 0
        %1914 = vmatpush1.bf16.msra.mxu0 0
        %1915 = vmatprep.subr.bf16.mxu0 0
        %1916 = vmatpush1.bf16.msra.mxu0 0
        %1917 = vmatprep.subr.bf16.mxu0 0
        %1918 = vmatpush1.bf16.msra.mxu0 0
        %1919 = vmatprep.subr.bf16.mxu0 0
        %1920 = vmatpush1.bf16.msra.mxu0 0
        %1921 = vmatprep.subr.bf16.mxu0 0
        %1922 = vmatpush1.bf16.msra.mxu0 %v1906
        %1923 = vmatprep.subr.bf16.mxu0 0
        %1924 = vmatpush2.bf16.msra.mxu0 0
        %1925 = vmatprep.subr.bf16.mxu0 0
        %1926 = vmatpush2.bf16.msra.mxu0 0
        %1927 = vmatprep.subr.bf16.mxu0 0
        %1928 = vmatpush2.bf16.msra.mxu0 0
        %1929 = vmatprep.subr.bf16.mxu0 0
        %1930 = vmatpush2.bf16.msra.mxu0 0
        %1931 = vmatprep.subr.bf16.mxu0 0
        %1932 = vmatpush2.bf16.msra.mxu0 0
        %1933 = vmatprep.subr.bf16.mxu0 0
        %1934 = vmatpush2.bf16.msra.mxu0 0
        %1935 = vmatprep.subr.bf16.mxu0 0
        %1936 = vmatpush2.bf16.msra.mxu0 0
        %1937 = vmatprep.subr.bf16.mxu0 0
        %1938 = vmatpush2.bf16.msra.mxu0 0
        %1939 = vmatprep.mubr.bf16.mxu0 0
        %1940 = vmatmul.mubr.bf16.gmra.mxu0 %v1646
        %v1941 = vpop.f32.mrf.mxu0
        %v1942 = vadd.f32 0.0, %v1941
        %v1943 = vpop.f32.mrf.mxu0
        %v1944 = vpop.f32.mrf.mxu0
        %v1945 = vadd.f32 0.0, %v1944
        %v1946 = vpop.f32.mrf.mxu0
        %1947 = vdwg.mxu0
        %v1948 = vmul.f32 %v1942, 2.0
        %v1949 = vmul.f32 %v1945, 2.0
        %v1950 = vsub.f32 %v1948, %v1631
        %v1951 = vsub.f32 %v1949, %v1632
        %1952 = vmatprep.subr.bf16.mxu0 0
        %1953 = vmatpush1.bf16.msra.mxu0 0
        %1954 = vmatprep.subr.bf16.mxu0 0
        %1955 = vmatpush1.bf16.msra.mxu0 0
        %1956 = vmatprep.subr.bf16.mxu0 0
        %1957 = vmatpush1.bf16.msra.mxu0 0
        %1958 = vmatprep.subr.bf16.mxu0 0
        %1959 = vmatpush1.bf16.msra.mxu0 0
        %1960 = vmatprep.subr.bf16.mxu0 0
        %1961 = vmatpush1.bf16.msra.mxu0 0
        %1962 = vmatprep.subr.bf16.mxu0 0
        %1963 = vmatpush1.bf16.msra.mxu0 0
        %1964 = vmatprep.subr.bf16.mxu0 0
        %1965 = vmatpush1.bf16.msra.mxu0 0
        %1966 = vmatprep.subr.bf16.mxu0 0
        %1967 = vmatpush1.bf16.msra.mxu0 %v1864
        %1968 = vmatprep.subr.bf16.mxu0 0
        %1969 = vmatpush2.bf16.msra.mxu0 0
        %1970 = vmatprep.subr.bf16.mxu0 0
        %1971 = vmatpush2.bf16.msra.mxu0 0
        %1972 = vmatprep.subr.bf16.mxu0 0
        %1973 = vmatpush2.bf16.msra.mxu0 0
        %1974 = vmatprep.subr.bf16.mxu0 0
        %1975 = vmatpush2.bf16.msra.mxu0 0
        %1976 = vmatprep.subr.bf16.mxu0 0
        %1977 = vmatpush2.bf16.msra.mxu0 0
        %1978 = vmatprep.subr.bf16.mxu0 0
        %1979 = vmatpush2.bf16.msra.mxu0 0
        %1980 = vmatprep.subr.bf16.mxu0 0
        %1981 = vmatpush2.bf16.msra.mxu0 0
        %1982 = vmatprep.subr.bf16.mxu0 0
        %1983 = vmatpush2.bf16.msra.mxu0 0
        %1984 = vmatprep.mubr.bf16.mxu0 0
        %1985 = vmatmul.mubr.bf16.gmra.mxu0 %v1743
        %v1986 = vpop.f32.mrf.mxu0
        %v1987 = vadd.f32 0.0, %v1986
        %v1988 = vpop.f32.mrf.mxu0
        %v1989 = vpop.f32.mrf.mxu0
        %v1990 = vadd.f32 0.0, %v1989
        %v1991 = vpop.f32.mrf.mxu0
        %1992 = vdwg.mxu0
        %v1993 = vpack.c.bf16 %v1990, %v1987
        %1994 = vmatprep.subr.bf16.mxu0 0
        %1995 = vmatpush1.bf16.msra.mxu0 0
        %1996 = vmatprep.subr.bf16.mxu0 0
        %1997 = vmatpush1.bf16.msra.mxu0 0
        %1998 = vmatprep.subr.bf16.mxu0 0
        %1999 = vmatpush1.bf16.msra.mxu0 0
        %2000 = vmatprep.subr.bf16.mxu0 0
        %2001 = vmatpush1.bf16.msra.mxu0 0
        %2002 = vmatprep.subr.bf16.mxu0 0
        %2003 = vmatpush1.bf16.msra.mxu0 0
        %2004 = vmatprep.subr.bf16.mxu0 0
        %2005 = vmatpush1.bf16.msra.mxu0 0
        %2006 = vmatprep.subr.bf16.mxu0 0
        %2007 = vmatpush1.bf16.msra.mxu0 0
        %2008 = vmatprep.subr.bf16.mxu0 0
        %2009 = vmatpush1.bf16.msra.mxu0 %v1993
        %2010 = vmatprep.subr.bf16.mxu0 0
        %2011 = vmatpush2.bf16.msra.mxu0 0
        %2012 = vmatprep.subr.bf16.mxu0 0
        %2013 = vmatpush2.bf16.msra.mxu0 0
        %2014 = vmatprep.subr.bf16.mxu0 0
        %2015 = vmatpush2.bf16.msra.mxu0 0
        %2016 = vmatprep.subr.bf16.mxu0 0
        %2017 = vmatpush2.bf16.msra.mxu0 0
        %2018 = vmatprep.subr.bf16.mxu0 0
        %2019 = vmatpush2.bf16.msra.mxu0 0
        %2020 = vmatprep.subr.bf16.mxu0 0
        %2021 = vmatpush2.bf16.msra.mxu0 0
        %2022 = vmatprep.subr.bf16.mxu0 0
        %2023 = vmatpush2.bf16.msra.mxu0 0
        %2024 = vmatprep.subr.bf16.mxu0 0
        %2025 = vmatpush2.bf16.msra.mxu0 0
        %2026 = vmatprep.mubr.bf16.mxu0 0
        %2027 = vmatmul.mubr.bf16.gmra.mxu0 %v1743
        %v2028 = vpop.f32.mrf.mxu0
        %v2029 = vadd.f32 0.0, %v2028
        %v2030 = vpop.f32.mrf.mxu0
        %v2031 = vpop.f32.mrf.mxu0
        %v2032 = vadd.f32 0.0, %v2031
        %v2033 = vpop.f32.mrf.mxu0
        %2034 = vdwg.mxu0
        %v2035 = vmul.f32 %v2029, 2.0
        %v2036 = vmul.f32 %v2032, 2.0
        %v2037 = vsub.f32 %v2035, %v1631
        %v2038 = vsub.f32 %v2036, %v1632
        %2041 = vrot.lane.b32.xlu0 %v1900, 32
        %v2042 = vpop.permute.xlu0 %2041
        %2043 = vrot.lane.b32.xlu0 %v1903, 32
        %v2044 = vpop.permute.xlu0 %2043
        %2049 = vrot.lane.b32.xlu0 %v1950, 64
        %v2050 = vpop.permute.xlu0 %2049
        %2051 = vrot.lane.b32.xlu0 %v1951, 64
        %v2052 = vpop.permute.xlu0 %2051
        %2057 = vrot.lane.b32.xlu0 %v1987, 96
        %v2058 = vpop.permute.xlu0 %2057
        %2059 = vrot.lane.b32.xlu0 %v1990, 96
        %v2060 = vpop.permute.xlu0 %2059
        %v2063 = vsel %vm796, %v1631, %v2042
        %v2064 = vsel %vm796, %v1632, %v2044
        %v2065 = vsel %vm1001, %v2063, %v2050
        %v2066 = vsel %vm1001, %v2064, %v2052
        %v2067 = vsel %vm1004, %v2065, %v2058
        %v2068 = vsel %vm1004, %v2066, %v2060
        %v2069 = vpack.c.bf16 %v2068, %v2067
        %v2070 = vpack.c.bf16 %v2038, %v2037
        %v2091 = vunpack.c.l.b16 %v1568
        %v2092 = vunpack.c.l.b16 %v1569
        %v2093 = vunpack.c.l.b16 %v1570
        %v2094 = vunpack.c.l.b16 %v1571
        %v2095 = vunpack.c.l.b16 %v1572
        %v2096 = vunpack.c.l.b16 %v1573
        %v2097 = vunpack.c.l.b16 %v1574
        %v2098 = vunpack.c.l.b16 %v1575
        %v2099 = vunpack.c.l.b16 %v1576
        %v2100 = vunpack.c.l.b16 %v1577
        %v2101 = vunpack.c.l.b16 %v1578
        %v2102 = vunpack.c.l.b16 %v1579
        %v2103 = vunpack.c.l.b16 %v1580
        %v2104 = vunpack.c.l.b16 %v1581
        %v2105 = vunpack.c.l.b16 %v1582
        %v2106 = vunpack.c.l.b16 %v1583
        %v2107 = vunpack.c.l.b16 %v1584
        %v2108 = vunpack.c.l.b16 %v1585
        %v2109 = vunpack.c.l.b16 %v1586
        %v2110 = vunpack.c.l.b16 %v1587
        %v2111 = vpack.c.b16 %v2092, %v2091
        %v2112 = vpack.c.b16 %v2094, %v2093
        %v2113 = vpack.c.b16 %v2096, %v2095
        %v2114 = vpack.c.b16 %v2098, %v2097
        %v2115 = vpack.c.b16 %v2100, %v2099
        %v2116 = vpack.c.b16 %v2102, %v2101
        %v2117 = vpack.c.b16 %v2104, %v2103
        %v2118 = vpack.c.b16 %v2106, %v2105
        %v2119 = vpack.c.b16 %v2108, %v2107
        %v2120 = vpack.c.b16 %v2110, %v2109
        %v2132 = vsel %vm796, %v1863, 0
        %2134 = vmatprep.subr.bf16.mxu0 0
        %2135 = vmatpush1.bf16.msra.mxu0 %v2118
        %2136 = vmatprep.subr.bf16.mxu0 0
        %2137 = vmatpush1.bf16.msra.mxu0 %v2117
        %2138 = vmatprep.subr.bf16.mxu0 0
        %2139 = vmatpush1.bf16.msra.mxu0 %v2116
        %2140 = vmatprep.subr.bf16.mxu0 0
        %2141 = vmatpush1.bf16.msra.mxu0 %v2115
        %2142 = vmatprep.subr.bf16.mxu0 0
        %2143 = vmatpush1.bf16.msra.mxu0 %v2114
        %2144 = vmatprep.subr.bf16.mxu0 0
        %2145 = vmatpush1.bf16.msra.mxu0 %v2113
        %2146 = vmatprep.subr.bf16.mxu0 0
        %2147 = vmatpush1.bf16.msra.mxu0 %v2112
        %2148 = vmatprep.subr.bf16.mxu0 0
        %2149 = vmatpush1.bf16.msra.mxu0 %v2111
        %2150 = vmatprep.subr.bf16.mxu0 0
        %2151 = vmatpush2.bf16.msra.mxu0 0
        %2152 = vmatprep.subr.bf16.mxu0 0
        %2153 = vmatpush2.bf16.msra.mxu0 0
        %2154 = vmatprep.subr.bf16.mxu0 0
        %2155 = vmatpush2.bf16.msra.mxu0 0
        %2156 = vmatprep.subr.bf16.mxu0 0
        %2157 = vmatpush2.bf16.msra.mxu0 0
        %2158 = vmatprep.subr.bf16.mxu0 0
        %2159 = vmatpush2.bf16.msra.mxu0 0
        %2160 = vmatprep.subr.bf16.mxu0 0
        %2161 = vmatpush2.bf16.msra.mxu0 0
        %2162 = vmatprep.subr.bf16.mxu0 0
        %2163 = vmatpush2.bf16.msra.mxu0 %v2120
        %2164 = vmatprep.subr.bf16.mxu0 0
        %2165 = vmatpush2.bf16.msra.mxu0 %v2119
        %2166 = vmatprep.mubr.bf16.mxu0 %v2132
        %2167 = vmatmul.mubr.bf16.gmra.mxu0 %v1862
        %v2168 = vpop.f32.mrf.mxu0
        %v2169 = vadd.f32 0.0, %v2168
        %v2170 = vpop.f32.mrf.mxu0
        %v2171 = vpop.f32.mrf.mxu0
        %v2172 = vadd.f32 0.0, %v2171
        %v2173 = vpop.f32.mrf.mxu0
        %2174 = vdwg.mxu0
        %v2195 = vunpack.c.l.b16 %v1588
        %v2196 = vunpack.c.l.b16 %v1589
        %v2197 = vunpack.c.l.b16 %v1590
        %v2198 = vunpack.c.l.b16 %v1591
        %v2199 = vunpack.c.l.b16 %v1592
        %v2200 = vunpack.c.l.b16 %v1593
        %v2201 = vunpack.c.l.b16 %v1594
        %v2202 = vunpack.c.l.b16 %v1595
        %v2203 = vunpack.c.l.b16 %v1596
        %v2204 = vunpack.c.l.b16 %v1597
        %v2205 = vunpack.c.l.b16 %v1598
        %v2206 = vunpack.c.l.b16 %v1599
        %v2207 = vunpack.c.l.b16 %v1600
        %v2208 = vunpack.c.l.b16 %v1601
        %v2209 = vunpack.c.l.b16 %v1602
        %v2210 = vunpack.c.l.b16 %v1603
        %v2211 = vunpack.c.l.b16 %v1604
        %v2212 = vunpack.c.l.b16 %v1605
        %v2213 = vunpack.c.l.b16 %v1606
        %v2214 = vunpack.c.l.b16 %v1607
        %v2215 = vpack.c.b16 %v2196, %v2195
        %v2216 = vpack.c.b16 %v2198, %v2197
        %v2217 = vpack.c.b16 %v2200, %v2199
        %v2218 = vpack.c.b16 %v2202, %v2201
        %v2219 = vpack.c.b16 %v2204, %v2203
        %v2220 = vpack.c.b16 %v2206, %v2205
        %v2221 = vpack.c.b16 %v2208, %v2207
        %v2222 = vpack.c.b16 %v2210, %v2209
        %v2223 = vpack.c.b16 %v2212, %v2211
        %v2224 = vpack.c.b16 %v2214, %v2213
        %v2236 = vsel %vm796, %v2070, 0
        %2238 = vmatprep.subr.bf16.mxu0 0
        %2239 = vmatpush1.bf16.msra.mxu0 %v2222
        %2240 = vmatprep.subr.bf16.mxu0 0
        %2241 = vmatpush1.bf16.msra.mxu0 %v2221
        %2242 = vmatprep.subr.bf16.mxu0 0
        %2243 = vmatpush1.bf16.msra.mxu0 %v2220
        %2244 = vmatprep.subr.bf16.mxu0 0
        %2245 = vmatpush1.bf16.msra.mxu0 %v2219
        %2246 = vmatprep.subr.bf16.mxu0 0
        %2247 = vmatpush1.bf16.msra.mxu0 %v2218
        %2248 = vmatprep.subr.bf16.mxu0 0
        %2249 = vmatpush1.bf16.msra.mxu0 %v2217
        %2250 = vmatprep.subr.bf16.mxu0 0
        %2251 = vmatpush1.bf16.msra.mxu0 %v2216
        %2252 = vmatprep.subr.bf16.mxu0 0
        %2253 = vmatpush1.bf16.msra.mxu0 %v2215
        %2254 = vmatprep.subr.bf16.mxu0 0
        %2255 = vmatpush2.bf16.msra.mxu0 0
        %2256 = vmatprep.subr.bf16.mxu0 0
        %2257 = vmatpush2.bf16.msra.mxu0 0
        %2258 = vmatprep.subr.bf16.mxu0 0
        %2259 = vmatpush2.bf16.msra.mxu0 0
        %2260 = vmatprep.subr.bf16.mxu0 0
        %2261 = vmatpush2.bf16.msra.mxu0 0
        %2262 = vmatprep.subr.bf16.mxu0 0
        %2263 = vmatpush2.bf16.msra.mxu0 0
        %2264 = vmatprep.subr.bf16.mxu0 0
        %2265 = vmatpush2.bf16.msra.mxu0 0
        %2266 = vmatprep.subr.bf16.mxu0 0
        %2267 = vmatpush2.bf16.msra.mxu0 %v2224
        %2268 = vmatprep.subr.bf16.mxu0 0
        %2269 = vmatpush2.bf16.msra.mxu0 %v2223
        %2270 = vmatprep.mubr.bf16.mxu0 %v2236
        %2271 = vmatmul.mubr.bf16.gmra.mxu0 %v2069
        %v2272 = vpop.f32.mrf.mxu0
        %v2273 = vadd.f32 0.0, %v2272
        %v2274 = vpop.f32.mrf.mxu0
        %v2275 = vpop.f32.mrf.mxu0
        %v2276 = vadd.f32 0.0, %v2275
        %v2277 = vpop.f32.mrf.mxu0
        %2278 = vdwg.mxu0
        %v2279 = vadd.f32 %v2169, %v2273
        %v2280 = vadd.f32 %v2172, %v2276
        %v2282 = vlaneseq
        %v2283 = vshrl.u32 %v2282, 7
        %v2284 = vsub.s32 0, %v2283
        %v2285 = vrot.slane %v1628, %v2284
        %v2287 = vadd.f32 %v2279, %v2285
        %v2288 = vadd.f32 %v2280, %v2285
        %v2289 = vxor.u32 %v2287, 2147483648
        %v2290 = vxor.u32 %v2288, 2147483648
        %v2291 = vmul.f32 %v2289, 1.442695
        %v2292 = vpow.pop %v2291
        %v2293 = vmul.f32 %v2290, 1.442695
        %v2294 = vpow.pop %v2293
        %v2295 = vadd.f32 %v2292, 1.0
        %v2296 = vadd.f32 %v2294, 1.0
        %v2297 = vrcp.pop %v2295
        %v2298 = vmul.f32 1.0, %v2297
        %v2299 = vrcp.pop %v2296
        %v2300 = vmul.f32 1.0, %v2299
        %v2301 = vmul.f32 %v2298, %v1631
        %v2302 = vmul.f32 %v2300, %v1632
        %v2303 = vpack.c.bf16 %v2302, %v2301
        %2304 = vmatprep.subr.bf16.mxu0 0
        %2305 = vmatpush1.bf16.msra.mxu0 0
        %2306 = vmatprep.subr.bf16.mxu0 0
        %2307 = vmatpush1.bf16.msra.mxu0 0
        %2308 = vmatprep.subr.bf16.mxu0 0
        %2309 = vmatpush1.bf16.msra.mxu0 0
        %2310 = vmatprep.subr.bf16.mxu0 0
        %2311 = vmatpush1.bf16.msra.mxu0 0
        %2312 = vmatprep.subr.bf16.mxu0 0
        %2313 = vmatpush1.bf16.msra.mxu0 0
        %2314 = vmatprep.subr.bf16.mxu0 0
        %2315 = vmatpush1.bf16.msra.mxu0 0
        %2316 = vmatprep.subr.bf16.mxu0 0
        %2317 = vmatpush1.bf16.msra.mxu0 0
        %2318 = vmatprep.subr.bf16.mxu0 0
        %2319 = vmatpush1.bf16.msra.mxu0 %v2303
        %2320 = vmatprep.subr.bf16.mxu0 0
        %2321 = vmatpush2.bf16.msra.mxu0 0
        %2322 = vmatprep.subr.bf16.mxu0 0
        %2323 = vmatpush2.bf16.msra.mxu0 0
        %2324 = vmatprep.subr.bf16.mxu0 0
        %2325 = vmatpush2.bf16.msra.mxu0 0
        %2326 = vmatprep.subr.bf16.mxu0 0
        %2327 = vmatpush2.bf16.msra.mxu0 0
        %2328 = vmatprep.subr.bf16.mxu0 0
        %2329 = vmatpush2.bf16.msra.mxu0 0
        %2330 = vmatprep.subr.bf16.mxu0 0
        %2331 = vmatpush2.bf16.msra.mxu0 0
        %2332 = vmatprep.subr.bf16.mxu0 0
        %2333 = vmatpush2.bf16.msra.mxu0 0
        %2334 = vmatprep.subr.bf16.mxu0 0
        %2335 = vmatpush2.bf16.msra.mxu0 0
        %2336 = vmatprep.mubr.bf16.mxu0 0
        %2337 = vmatmul.mubr.bf16.gmra.mxu0 %v1646
        %v2338 = vpop.f32.mrf.mxu0
        %v2339 = vadd.f32 0.0, %v2338
        %v2340 = vpop.f32.mrf.mxu0
        %v2341 = vpop.f32.mrf.mxu0
        %v2342 = vadd.f32 0.0, %v2341
        %v2343 = vpop.f32.mrf.mxu0
        %2344 = vdwg.mxu0
        %v2345 = vpack.c.bf16 %v2342, %v2339
        %2346 = vmatprep.subr.bf16.mxu0 0
        %2347 = vmatpush1.bf16.msra.mxu0 0
        %2348 = vmatprep.subr.bf16.mxu0 0
        %2349 = vmatpush1.bf16.msra.mxu0 0
        %2350 = vmatprep.subr.bf16.mxu0 0
        %2351 = vmatpush1.bf16.msra.mxu0 0
        %2352 = vmatprep.subr.bf16.mxu0 0
        %2353 = vmatpush1.bf16.msra.mxu0 0
        %2354 = vmatprep.subr.bf16.mxu0 0
        %2355 = vmatpush1.bf16.msra.mxu0 0
        %2356 = vmatprep.subr.bf16.mxu0 0
        %2357 = vmatpush1.bf16.msra.mxu0 0
        %2358 = vmatprep.subr.bf16.mxu0 0
        %2359 = vmatpush1.bf16.msra.mxu0 0
        %2360 = vmatprep.subr.bf16.mxu0 0
        %2361 = vmatpush1.bf16.msra.mxu0 %v2345
        %2362 = vmatprep.subr.bf16.mxu0 0
        %2363 = vmatpush2.bf16.msra.mxu0 0
        %2364 = vmatprep.subr.bf16.mxu0 0
        %2365 = vmatpush2.bf16.msra.mxu0 0
        %2366 = vmatprep.subr.bf16.mxu0 0
        %2367 = vmatpush2.bf16.msra.mxu0 0
        %2368 = vmatprep.subr.bf16.mxu0 0
        %2369 = vmatpush2.bf16.msra.mxu0 0
        %2370 = vmatprep.subr.bf16.mxu0 0
        %2371 = vmatpush2.bf16.msra.mxu0 0
        %2372 = vmatprep.subr.bf16.mxu0 0
        %2373 = vmatpush2.bf16.msra.mxu0 0
        %2374 = vmatprep.subr.bf16.mxu0 0
        %2375 = vmatpush2.bf16.msra.mxu0 0
        %2376 = vmatprep.subr.bf16.mxu0 0
        %2377 = vmatpush2.bf16.msra.mxu0 0
        %2378 = vmatprep.mubr.bf16.mxu0 0
        %2379 = vmatmul.mubr.bf16.gmra.mxu0 %v1646
        %v2380 = vpop.f32.mrf.mxu0
        %v2381 = vadd.f32 0.0, %v2380
        %v2382 = vpop.f32.mrf.mxu0
        %v2383 = vpop.f32.mrf.mxu0
        %v2384 = vadd.f32 0.0, %v2383
        %v2385 = vpop.f32.mrf.mxu0
        %2386 = vdwg.mxu0
        %v2387 = vmul.f32 %v2381, 2.0
        %v2388 = vmul.f32 %v2384, 2.0
        %v2389 = vsub.f32 %v2387, %v2301
        %v2390 = vsub.f32 %v2388, %v2302
        %2391 = vmatprep.subr.bf16.mxu0 0
        %2392 = vmatpush1.bf16.msra.mxu0 0
        %2393 = vmatprep.subr.bf16.mxu0 0
        %2394 = vmatpush1.bf16.msra.mxu0 0
        %2395 = vmatprep.subr.bf16.mxu0 0
        %2396 = vmatpush1.bf16.msra.mxu0 0
        %2397 = vmatprep.subr.bf16.mxu0 0
        %2398 = vmatpush1.bf16.msra.mxu0 0
        %2399 = vmatprep.subr.bf16.mxu0 0
        %2400 = vmatpush1.bf16.msra.mxu0 0
        %2401 = vmatprep.subr.bf16.mxu0 0
        %2402 = vmatpush1.bf16.msra.mxu0 0
        %2403 = vmatprep.subr.bf16.mxu0 0
        %2404 = vmatpush1.bf16.msra.mxu0 0
        %2405 = vmatprep.subr.bf16.mxu0 0
        %2406 = vmatpush1.bf16.msra.mxu0 %v2303
        %2407 = vmatprep.subr.bf16.mxu0 0
        %2408 = vmatpush2.bf16.msra.mxu0 0
        %2409 = vmatprep.subr.bf16.mxu0 0
        %2410 = vmatpush2.bf16.msra.mxu0 0
        %2411 = vmatprep.subr.bf16.mxu0 0
        %2412 = vmatpush2.bf16.msra.mxu0 0
        %2413 = vmatprep.subr.bf16.mxu0 0
        %2414 = vmatpush2.bf16.msra.mxu0 0
        %2415 = vmatprep.subr.bf16.mxu0 0
        %2416 = vmatpush2.bf16.msra.mxu0 0
        %2417 = vmatprep.subr.bf16.mxu0 0
        %2418 = vmatpush2.bf16.msra.mxu0 0
        %2419 = vmatprep.subr.bf16.mxu0 0
        %2420 = vmatpush2.bf16.msra.mxu0 0
        %2421 = vmatprep.subr.bf16.mxu0 0
        %2422 = vmatpush2.bf16.msra.mxu0 0
        %2423 = vmatprep.mubr.bf16.mxu0 0
        %2424 = vmatmul.mubr.bf16.gmra.mxu0 %v1743
        %v2425 = vpop.f32.mrf.mxu0
        %v2426 = vadd.f32 0.0, %v2425
        %v2427 = vpop.f32.mrf.mxu0
        %v2428 = vpop.f32.mrf.mxu0
        %v2429 = vadd.f32 0.0, %v2428
        %v2430 = vpop.f32.mrf.mxu0
        %2431 = vdwg.mxu0
        %v2432 = vpack.c.bf16 %v2429, %v2426
        %2433 = vmatprep.subr.bf16.mxu0 0
        %2434 = vmatpush1.bf16.msra.mxu0 0
        %2435 = vmatprep.subr.bf16.mxu0 0
        %2436 = vmatpush1.bf16.msra.mxu0 0
        %2437 = vmatprep.subr.bf16.mxu0 0
        %2438 = vmatpush1.bf16.msra.mxu0 0
        %2439 = vmatprep.subr.bf16.mxu0 0
        %2440 = vmatpush1.bf16.msra.mxu0 0
        %2441 = vmatprep.subr.bf16.mxu0 0
        %2442 = vmatpush1.bf16.msra.mxu0 0
        %2443 = vmatprep.subr.bf16.mxu0 0
        %2444 = vmatpush1.bf16.msra.mxu0 0
        %2445 = vmatprep.subr.bf16.mxu0 0
        %2446 = vmatpush1.bf16.msra.mxu0 0
        %2447 = vmatprep.subr.bf16.mxu0 0
        %2448 = vmatpush1.bf16.msra.mxu0 %v2432
        %2449 = vmatprep.subr.bf16.mxu0 0
        %2450 = vmatpush2.bf16.msra.mxu0 0
        %2451 = vmatprep.subr.bf16.mxu0 0
        %2452 = vmatpush2.bf16.msra.mxu0 0
        %2453 = vmatprep.subr.bf16.mxu0 0
        %2454 = vmatpush2.bf16.msra.mxu0 0
        %2455 = vmatprep.subr.bf16.mxu0 0
        %2456 = vmatpush2.bf16.msra.mxu0 0
        %2457 = vmatprep.subr.bf16.mxu0 0
        %2458 = vmatpush2.bf16.msra.mxu0 0
        %2459 = vmatprep.subr.bf16.mxu0 0
        %2460 = vmatpush2.bf16.msra.mxu0 0
        %2461 = vmatprep.subr.bf16.mxu0 0
        %2462 = vmatpush2.bf16.msra.mxu0 0
        %2463 = vmatprep.subr.bf16.mxu0 0
        %2464 = vmatpush2.bf16.msra.mxu0 0
        %2465 = vmatprep.mubr.bf16.mxu0 0
        %2466 = vmatmul.mubr.bf16.gmra.mxu0 %v1743
        %v2467 = vpop.f32.mrf.mxu0
        %v2468 = vadd.f32 0.0, %v2467
        %v2469 = vpop.f32.mrf.mxu0
        %v2470 = vpop.f32.mrf.mxu0
        %v2471 = vadd.f32 0.0, %v2470
        %v2472 = vpop.f32.mrf.mxu0
        %2473 = vdwg.mxu0
        %v2474 = vmul.f32 %v2468, 2.0
        %v2475 = vmul.f32 %v2471, 2.0
        %v2476 = vsub.f32 %v2474, %v2301
        %v2477 = vsub.f32 %v2475, %v2302
        %2480 = vrot.lane.b32.xlu0 %v2339, 32
        %v2481 = vpop.permute.xlu0 %2480
        %2482 = vrot.lane.b32.xlu0 %v2342, 32
        %v2483 = vpop.permute.xlu0 %2482
        %2488 = vrot.lane.b32.xlu0 %v2389, 64
        %v2489 = vpop.permute.xlu0 %2488
        %2490 = vrot.lane.b32.xlu0 %v2390, 64
        %v2491 = vpop.permute.xlu0 %2490
        %2496 = vrot.lane.b32.xlu0 %v2426, 96
        %v2497 = vpop.permute.xlu0 %2496
        %2498 = vrot.lane.b32.xlu0 %v2429, 96
        %v2499 = vpop.permute.xlu0 %2498
        %v2502 = vsel %vm796, %v2301, %v2481
        %v2503 = vsel %vm796, %v2302, %v2483
        %v2504 = vsel %vm1001, %v2502, %v2489
        %v2505 = vsel %vm1001, %v2503, %v2491
        %v2506 = vsel %vm1004, %v2504, %v2497
        %v2507 = vsel %vm1004, %v2505, %v2499
        %v2508 = vpack.c.bf16 %v2507, %v2506
        %v2509 = vpack.c.bf16 %v2477, %v2476
        %v2530 = vunpack.c.l.b16 %v1608
        %v2531 = vunpack.c.l.b16 %v1609
        %v2532 = vunpack.c.l.b16 %v1610
        %v2533 = vunpack.c.l.b16 %v1611
        %v2534 = vunpack.c.l.b16 %v1612
        %v2535 = vunpack.c.l.b16 %v1613
        %v2536 = vunpack.c.l.b16 %v1614
        %v2537 = vunpack.c.l.b16 %v1615
        %v2538 = vunpack.c.l.b16 %v1616
        %v2539 = vunpack.c.l.b16 %v1617
        %v2540 = vunpack.c.l.b16 %v1618
        %v2541 = vunpack.c.l.b16 %v1619
        %v2542 = vunpack.c.l.b16 %v1620
        %v2543 = vunpack.c.l.b16 %v1621
        %v2544 = vunpack.c.l.b16 %v1622
        %v2545 = vunpack.c.l.b16 %v1623
        %v2546 = vunpack.c.l.b16 %v1624
        %v2547 = vunpack.c.l.b16 %v1625
        %v2548 = vunpack.c.l.b16 %v1626
        %v2549 = vunpack.c.l.b16 %v1627
        %v2550 = vpack.c.b16 %v2531, %v2530
        %v2551 = vpack.c.b16 %v2533, %v2532
        %v2552 = vpack.c.b16 %v2535, %v2534
        %v2553 = vpack.c.b16 %v2537, %v2536
        %v2554 = vpack.c.b16 %v2539, %v2538
        %v2555 = vpack.c.b16 %v2541, %v2540
        %v2556 = vpack.c.b16 %v2543, %v2542
        %v2557 = vpack.c.b16 %v2545, %v2544
        %v2558 = vpack.c.b16 %v2547, %v2546
        %v2559 = vpack.c.b16 %v2549, %v2548
        %v2571 = vsel %vm796, %v2509, 0
        %2573 = vmatprep.subr.bf16.mxu0 0
        %2574 = vmatpush1.bf16.msra.mxu0 %v2557
        %2575 = vmatprep.subr.bf16.mxu0 0
        %2576 = vmatpush1.bf16.msra.mxu0 %v2556
        %2577 = vmatprep.subr.bf16.mxu0 0
        %2578 = vmatpush1.bf16.msra.mxu0 %v2555
        %2579 = vmatprep.subr.bf16.mxu0 0
        %2580 = vmatpush1.bf16.msra.mxu0 %v2554
        %2581 = vmatprep.subr.bf16.mxu0 0
        %2582 = vmatpush1.bf16.msra.mxu0 %v2553
        %2583 = vmatprep.subr.bf16.mxu0 0
        %2584 = vmatpush1.bf16.msra.mxu0 %v2552
        %2585 = vmatprep.subr.bf16.mxu0 0
        %2586 = vmatpush1.bf16.msra.mxu0 %v2551
        %2587 = vmatprep.subr.bf16.mxu0 0
        %2588 = vmatpush1.bf16.msra.mxu0 %v2550
        %2589 = vmatprep.subr.bf16.mxu0 0
        %2590 = vmatpush2.bf16.msra.mxu0 0
        %2591 = vmatprep.subr.bf16.mxu0 0
        %2592 = vmatpush2.bf16.msra.mxu0 0
        %2593 = vmatprep.subr.bf16.mxu0 0
        %2594 = vmatpush2.bf16.msra.mxu0 0
        %2595 = vmatprep.subr.bf16.mxu0 0
        %2596 = vmatpush2.bf16.msra.mxu0 0
        %2597 = vmatprep.subr.bf16.mxu0 0
        %2598 = vmatpush2.bf16.msra.mxu0 0
        %2599 = vmatprep.subr.bf16.mxu0 0
        %2600 = vmatpush2.bf16.msra.mxu0 0
        %2601 = vmatprep.subr.bf16.mxu0 0
        %2602 = vmatpush2.bf16.msra.mxu0 %v2559
        %2603 = vmatprep.subr.bf16.mxu0 0
        %2604 = vmatpush2.bf16.msra.mxu0 %v2558
        %2605 = vmatprep.mubr.bf16.mxu0 %v2571
        %2606 = vmatmul.mubr.bf16.gmra.mxu0 %v2508
        %v2607 = vpop.f32.mrf.mxu0
        %v2608 = vadd.f32 0.0, %v2607
        %v2609 = vpop.f32.mrf.mxu0
        %v2610 = vpop.f32.mrf.mxu0
        %v2611 = vadd.f32 0.0, %v2610
        %v2612 = vpop.f32.mrf.mxu0
        %2613 = vdwg.mxu0
        %2616 = vrot.lane.b32.xlu0 %v2608, 64
        %v2617 = vpop.permute.xlu0 %2616
        %2618 = vrot.lane.b32.xlu0 %v2611, 64
        %v2619 = vpop.permute.xlu0 %2618
        %v2622 = vadd.f32 %v2169, %v2617
        %v2623 = vadd.f32 %v2172, %v2619
        %v2625 = vlaneseq
        %v2626 = vshrl.u32 %v2625, 7
        %v2627 = vsub.s32 0, %v2626
        %v2628 = vrot.slane %v1629, %v2627
        %2629 = vrot.lane.b32.xlu0 %v2628, 64
        %v2630 = vpop.permute.xlu0 %2629
        %v2632 = vadd.f32 %v2622, %v2630
        %v2633 = vadd.f32 %v2623, %v2630
        %v2634 = vtanh.pop %v2632
        %v2635 = vtanh.pop %v2633
        %2638 = vrot.lane.b32.xlu0 %v1631, 32
        %v2639 = vpop.permute.xlu0 %2638
        %2640 = vrot.lane.b32.xlu0 %v1632, 32
        %v2641 = vpop.permute.xlu0 %2640
        %v2644 = vmul.f32 %v2298, %v2639
        %v2645 = vmul.f32 %v2300, %v2641
        %v2646 = vsub.f32 1.0, %v2298
        %v2647 = vsub.f32 1.0, %v2300
        %2650 = vrot.lane.b32.xlu0 %v2634, 96
        %v2651 = vpop.permute.xlu0 %2650
        %2652 = vrot.lane.b32.xlu0 %v2635, 96
        %v2653 = vpop.permute.xlu0 %2652
        %v2656 = vmul.f32 %v2646, %v2651
        %v2657 = vmul.f32 %v2647, %v2653
        %v2658 = vadd.f32 %v2644, %v2656
        %v2659 = vadd.f32 %v2645, %v2657
        %2662 = vrot.lane.b32.xlu0 %v2658, 96
        %v2663 = vpop.permute.xlu0 %2662
        %2664 = vrot.lane.b32.xlu0 %v2659, 96
        %v2665 = vpop.permute.xlu0 %2664
        %s2668 = scalar_lea.vmem %s501, 16 [#allocation3]
        %2669 = vst.msk [vmem:[%s2668] sm:$0xff] %vm796, %v2663
        %2670 = vst.msk [vmem:[%s2668 + $0x8] sm:$0xff] %vm796, %v2665
        %s2671 = sand.u32 %s318, 1
        %s2672 = scalar_lea.sflag [#allocation4], %s2671
        %s2673 = sand.u32 %s318, 1
        %s2674 = smul.addr %s2673, 32
        %s2675 = scalar_lea.vmem [#allocation3], %s2674
        // Predicated region
        $region111: #{tpu_custom_call.1} parent=105 // pred_check
          %p2676 = pneg %p328
        $region112: #{tpu_custom_call.1} parent=105 // pred_check_branch
          %2678 = sbr.rel (%p2676) target = $region114
        $region113: #{tpu_custom_call.1} parent=105 // pred_region
          #allocation6 [shape = 'u32[6]{0}', space=smem, size = 0x18, scoped, tag = 'DMA stride descriptor']
          %s2680 = ssub.s32 512, 512
          %2681 = vsyncadd %s2672, %s2680
          %s2682 = smul.addr %s27, 2
          %s2683 = smul.addr %s2682, 128
          %s2684 = scalar_lea.hbm %s13, %s2683
          %s2686 = sshll.u32 1, 14
          %s2687 = sxor.u32 4294967295, %s2686
          %s2690 = sshll.u32 7, 18
          %s2691 = sxor.u32 4294967295, %s2690
          %s2692 = sand.u32 0, %s2691
          %s2694 = sor.u32 %s2692, 0
          %s2695 = sshll.u32 %s2675, 4
          %s2696 = int_to_ptr.vmem [resolvable:$true] %s2695
          %2702 = sst [smem:[#allocation6]] 256
          %s2703 = scalar_lea.smem [#allocation6], 1
          %2704 = sst [smem:[%s2703]] 512
          %s2705 = scalar_lea.smem [#allocation6], 2
          %2706 = sst [smem:[%s2705]] 2
          %s2707 = scalar_lea.smem [#allocation6], 3
          %2708 = sst [smem:[%s2707]] 128
          %s2709 = scalar_lea.smem [#allocation6], 4
          %2710 = sst [smem:[%s2709]] 128
          %s2711 = scalar_lea.smem [#allocation6], 5
          %2712 = sst [smem:[%s2711]] 8
          %2714 = dma.general %s2696, 512, %s2684, %s2672, 131072, [#allocation6], %s2694, 0
        $region114: #{tpu_custom_call.1} parent=105 // pred_fallthru
          _
      $region106: #{tpu_custom_call.1} parent=5 // pred_fallthru
        _
      %p2715 = scmp.le.s32.totalorder 2, %s22
      // Predicated region
      $region115: #{tpu_custom_call.1} parent=5 // pred_check
        %p2716 = pneg %p2715
      $region116: #{tpu_custom_call.1} parent=5 // pred_check_branch
        %2718 = sbr.rel (%p2716) target = $region118
      $region117: #{tpu_custom_call.1} parent=5 // pred_region
        %s2719 = ssub.s32 %s22, 2
        // Predicated region
        $region119: #{tpu_custom_call.1} parent=117 // pred_check
          %p2720 = pneg %p334
        $region120: #{tpu_custom_call.1} parent=117 // pred_check_branch
          %2722 = sbr.rel (%p2720) target = $region122
        $region121: #{tpu_custom_call.1} parent=117 // pred_region
          %s2723 = sand.u32 %s319, 1
          %s2724 = scalar_lea.sflag [#allocation4], %s2723
          %s2725 = sand.u32 %s319, 1
          %s2726 = smul.addr %s2725, 32
          %s2727 = scalar_lea.vmem [#allocation3], %s2726
          %2728 = dma.done %s2724, 512
        $region122: #{tpu_custom_call.1} parent=117 // pred_fallthru
          _
      $region118: #{tpu_custom_call.1} parent=5 // pred_fallthru
        _
    $region6: #{tpu_custom_call.1} parent=1 // loop_footer
      %s26 = sadd.s32 1, %s22
    $region7: #{tpu_custom_call.1} parent=1 // loop_footer_branch
      %21 = sbr.rel target = $region3
    $region8: #{tpu_custom_call.1} parent=1 // loop_exit
      _
    %2729 = vsyncpa [#allocation4], 1
    %s2730 = scalar_lea.sflag [#allocation4], 1
    %2731 = vsyncpa %s2730, 1

</llo_original>
